<compile_context>
chip_gen: v7x
topology: tpu7x:2x2x1
jax: 0.10.0
libtpu: 0.0.40
codegen_flags: <defaults>
</compile_context>

<pallas_src>
import functools
import math

import jax
import jax.numpy as jnp
import numpy as np
from jax.experimental import pallas as pl
from jax.experimental.pallas import tpu as pltpu

C_PAD = 128        # lane-dense channel padding
NEG_SLOPE = 0.2    # LeakyReLU slope


# ---------------------------------------------------------------------------
# Fused Pallas kernel: from_rgb -> mbstd -> conv1 -> conv2 -> linear
# ---------------------------------------------------------------------------

def _disc_kernel(x_ref, w0_ref, b0_ref, sm_ref, w1_ref, b1_ref,
                 w2_ref, b2_ref, w3_ref, b3_ref, o_ref,
                 *, B, H, W, C, neg_slope):
    HW = H * W
    BHW = B * HW
    CP = x_ref.shape[-1]
    f32 = jnp.float32

    def lrelu(y):
        return jnp.where(y > 0, y, neg_slope * y)

    # ---- from_rgb: 1x1 equalized conv + LeakyReLU (scale pre-folded into w0) ----
    act0 = lrelu(jnp.dot(x_ref[...], w0_ref[...], preferred_element_type=f32)
                 + b0_ref[...])                                        # [BHW, CP]

    # ---- MinibatchStatConcat ----
    # per-(h,w) std over the batch, averaged over the C real channels, written into
    # the (previously zero) padded channel slot C of the lane axis ("concat").
    x3 = act0.reshape(B, HW, CP)                                       # cheap sublane split
    mu = jnp.mean(x3, axis=0)                                          # [HW, CP]
    std = jnp.sqrt(jnp.mean((x3 - mu[None, :, :]) ** 2, axis=0) + 1e-8)
    lane2 = jax.lax.broadcasted_iota(jnp.int32, (HW, CP), 1)
    vals = jnp.sum(jnp.where(lane2 < C, std, 0.0), axis=1, keepdims=True) * (1.0 / C)
    lane3 = jax.lax.broadcasted_iota(jnp.int32, (B, HW, CP), 2)
    act1 = jnp.where(lane3 == C, vals[None, :, :], x3).reshape(BHW, CP)

    # ---- conv1: 3x3 / pad 1 as 9 (spatial-shift matmul, weight matmul) pairs ----
    # sm_ref[t] is a constant 0/1 block-diagonal matrix that realizes the spatial shift
    # (with zero padding at the borders and no cross-batch leakage) on the MXU.
    acc = jnp.zeros((BHW, CP), f32)
    for t in range(9):
        shifted = jnp.dot(sm_ref[t], act1, preferred_element_type=f32)     # [BHW, CP]
        acc = acc + jnp.dot(shifted, w1_ref[t], preferred_element_type=f32)
    act2 = lrelu(acc + b1_ref[...])                                    # [BHW, CP]

    # ---- conv2: 4x4 valid over the whole 4x4 map -> one vector per batch sample ----
    # Each row r of act2 corresponds to spatial position p = r mod HW; select its tap
    # weight by lane-dense masking, matmul, then fold the HW spatial rows per batch
    # with a sublane reduction.
    pos = jax.lax.broadcasted_iota(jnp.int32, (B, HW, CP), 1).reshape(BHW, CP)
    z = jnp.zeros((BHW, CP), f32)
    for p in range(HW):
        z = z + jnp.dot(jnp.where(pos == p, act2, 0.0), w2_ref[p],
                        preferred_element_type=f32)
    act3 = lrelu(jnp.sum(z.reshape(B, HW, CP), axis=1) + b2_ref[...])  # [B, CP]

    # ---- final equalized linear C -> 1 (result lands in lane 0 of padded slab) ----
    o_ref[...] = (jnp.dot(act3, w3_ref[...], preferred_element_type=f32)
                  + b3_ref[...]).astype(o_ref.dtype)


# ---------------------------------------------------------------------------
# Host-side (trace-time) operand preparation + wrapper
# ---------------------------------------------------------------------------

def _pad_to(a, shape):
    return jnp.pad(a, [(0, t - s) for s, t in zip(a.shape, shape)])


def _shift_matrices(B, H, W, k, pad):
    """[k*k, B*HW, B*HW] 0/1 matrices: (I_B kron S_t), S_t the spatial shift for tap t."""
    HW = H * W
    s = np.zeros((k * k, HW, HW), np.float32)
    for kh in range(k):
        for kw in range(k):
            t = kh * k + kw
            for h in range(H):
                for w in range(W):
                    hi, wi = h + kh - pad, w + kw - pad
                    if 0 <= hi < H and 0 <= wi < W:
                        s[t, h * W + w, hi * W + wi] = 1.0
    eye = np.eye(B, dtype=np.float32)
    return jnp.asarray(np.stack([np.kron(eye, s[t]) for t in range(k * k)]))


def discriminator_forward(x, params):
    """Full Discriminator forward at MIN_RESOLUTION (input spatial 4x4), NCHW input."""
    B, Cin, H, W = x.shape
    HW, BHW = H * W, B * H * W

    w0, b0, s0 = params["from_rgb"]   # [nd, Cin, 1, 1]
    w1, b1, s1 = params["conv1"]      # [nd, nd+1, 3, 3]
    w2, b2, s2 = params["conv2"]      # [nd, nd, 4, 4]
    w3, b3, s3 = params["linear"]     # [1, nd]
    nd = w0.shape[0]
    assert nd + 1 <= C_PAD and Cin <= C_PAD
    assert w2.shape[2] == H and w2.shape[3] == W, "conv2 kernel must cover the full map"

    # Input: NCHW -> channels-last [B*HW, C_PAD] (single tiny re-layout at the boundary).
    x2d = _pad_to(x.transpose(0, 2, 3, 1).reshape(BHW, Cin), (BHW, C_PAD))

    # Weights: fold equalization scale, pad to lane-dense 128x128 tiles.
    # (In a real deployment these would be precomputed once outside the step.)
    w0p = _pad_to((w0.reshape(nd, Cin) * s0).T, (C_PAD, C_PAD))
    b0p = _pad_to(b0.reshape(1, nd), (1, C_PAD))
    w1p = _pad_to(jnp.transpose(w1, (2, 3, 1, 0)) * s1,
                  (3, 3, C_PAD, C_PAD)).reshape(9, C_PAD, C_PAD)
    b1p = _pad_to(b1.reshape(1, nd), (1, C_PAD))
    w2p = _pad_to(jnp.transpose(w2, (2, 3, 1, 0)) * s2,
                  (H, W, C_PAD, C_PAD)).reshape(HW, C_PAD, C_PAD)
    b2p = _pad_to(b2.reshape(1, nd), (1, C_PAD))
    w3p = _pad_to(w3.T * s3, (C_PAD, C_PAD))
    b3p = _pad_to(b3.reshape(1, -1), (1, C_PAD))

    sm = _shift_matrices(B, H, W, k=3, pad=1)          # compile-time constant [9, BHW, BHW]

    kern = functools.partial(_disc_kernel, B=B, H=H, W=W, C=nd, neg_slope=NEG_SLOPE)
    out = pl.pallas_call(
        kern,
        out_shape=jax.ShapeDtypeStruct((B, C_PAD), jnp.float32),
        in_specs=[pl.BlockSpec(memory_space=pltpu.MemorySpace.VMEM)] * 10,
        out_specs=pl.BlockSpec(memory_space=pltpu.MemorySpace.VMEM),
    )(x2d, w0p, b0p, sm, w1p, b1p, w2p, b2p, w3p, b3p)
    return out[:, :1]                                   # logit lives in lane 0


# ---------------------------------------------------------------------------
# Deterministic parameter construction (EqualizedConv2d / EqualizedLinear init)
# ---------------------------------------------------------------------------

def make_equalized_conv_params(key, cin, cout, k):
    fan_in = cin * k * k
    w0 = jax.random.normal(key, (cout, cin, k, k), jnp.float32) / math.sqrt(fan_in)
    scale = jnp.sqrt(jnp.mean(w0 ** 2))
    return w0 / scale, jnp.zeros((cout,), jnp.float32), scale


def make_equalized_linear_params(key, cin, cout):
    w0 = jax.random.normal(key, (cout, cin), jnp.float32) / math.sqrt(cin)
    scale = jnp.sqrt(jnp.mean(w0 ** 2))
    return w0 / scale, jnp.zeros((cout,), jnp.float32), scale


# ---------------------------------------------------------------------------
# Pure-JAX reference for validation (matches the PyTorch module semantics)
# ---------------------------------------------------------------------------

def ref_forward(x, params):
    def lrelu(y):
        return jnp.where(y > 0, y, NEG_SLOPE * y)

    def eq_conv(x, p, pad):
        w, b, s = p
        y = jax.lax.conv_general_dilated(
            x * s, w, (1, 1), [(pad, pad), (pad, pad)],
            dimension_numbers=("NCHW", "OIHW", "NCHW"))
        return y + b[None, :, None, None]

    x = lrelu(eq_conv(x, params["from_rgb"], 0))
    mean_b = jnp.mean(x, axis=0, keepdims=True)
    std = jnp.sqrt(jnp.mean((x - mean_b) ** 2, axis=0, keepdims=True) + 1e-8)
    vals = jnp.broadcast_to(jnp.mean(std, axis=1, keepdims=True),
                            (x.shape[0], 1) + x.shape[2:])
    x = jnp.concatenate([x, vals], axis=1)
    x = lrelu(eq_conv(x, params["conv1"], 1))
    x = lrelu(eq_conv(x, params["conv2"], 0))
    x = x.reshape(x.shape[0], -1)
    w, b, s = params["linear"]
    return (x * s) @ w.T + b[None, :]


# ---------------------------------------------------------------------------

if __name__ == "__main__":
    # Config stand-ins: N_CHANNEL=3, FEATURE_DIM_DISCRIMINATOR=32, MIN_RESOLUTION -> 4x4
    B, N_CHANNEL, NDIM, RES = 2, 3, 32, 4

    key = jax.random.PRNGKey(0)
    k0, k1, k2, k3, kx = jax.random.split(key, 5)
    params = {
        "from_rgb": make_equalized_conv_params(k0, N_CHANNEL, NDIM, 1),
        "conv1": make_equalized_conv_params(k1, NDIM + 1, NDIM, 3),
        "conv2": make_equalized_conv_params(k2, NDIM, NDIM, 4),
        "linear": make_equalized_linear_params(k3, NDIM, 1),
    }
    x = jax.random.normal(kx, (B, N_CHANNEL, RES, RES), jnp.float32)

    out = jax.jit(discriminator_forward)(x, params)
    out = jax.block_until_ready(out)

    ref = ref_forward(x, params)
    assert out.shape == (B, 1), out.shape
    assert jnp.allclose(out, ref, rtol=1e-3, atol=1e-3), (out, ref)

    print("KERNEL_OK")
</pallas_src>

<mosaic_0001>
module attributes {stable_mosaic.version = 11 : i64} {
  func.func @_disc_kernel(%arg0: memref<32x128xf32, #tpu.memory_space<vmem>>, %arg1: memref<128x128xf32, #tpu.memory_space<vmem>>, %arg2: memref<1x128xf32, #tpu.memory_space<vmem>>, %arg3: memref<9x32x32xf32, #tpu.memory_space<vmem>>, %arg4: memref<9x128x128xf32, #tpu.memory_space<vmem>>, %arg5: memref<1x128xf32, #tpu.memory_space<vmem>>, %arg6: memref<16x128x128xf32, #tpu.memory_space<vmem>>, %arg7: memref<1x128xf32, #tpu.memory_space<vmem>>, %arg8: memref<128x128xf32, #tpu.memory_space<vmem>>, %arg9: memref<1x128xf32, #tpu.memory_space<vmem>>, %arg10: memref<2x128xf32, #tpu.memory_space<vmem>>) attributes {dimension_semantics = [], scalar_prefetch = 0 : i64, scratch_operands = 0 : i64, tpu.core_type = #tpu.core_type<tc>} {
    %c0 = arith.constant 0 : index
    %c0_0 = arith.constant 0 : index
    %0 = vector.load %arg0[%c0, %c0_0] : memref<32x128xf32, #tpu.memory_space<vmem>>, vector<32x128xf32>
    %c0_1 = arith.constant 0 : index
    %c0_2 = arith.constant 0 : index
    %1 = vector.load %arg1[%c0_1, %c0_2] : memref<128x128xf32, #tpu.memory_space<vmem>>, vector<128x128xf32>
    %cst = arith.constant dense<0.000000e+00> : vector<32x128xf32>
    %2 = tpu.matmul %0, %1, %cst {dimension_numbers = #tpu.dot_dimension_numbers<[1], [0], [0], [1], [0, 0, 1, 1], [], []>} : vector<32x128xf32>, vector<128x128xf32>, vector<32x128xf32> -> vector<32x128xf32>
    %c0_3 = arith.constant 0 : index
    %c0_4 = arith.constant 0 : index
    %3 = vector.load %arg2[%c0_3, %c0_4] : memref<1x128xf32, #tpu.memory_space<vmem>>, vector<1x128xf32>
    %4 = vector.broadcast %3 : vector<1x128xf32> to vector<32x128xf32>
    %5 = arith.addf %2, %4 : vector<32x128xf32>
    %cst_5 = arith.constant 0.000000e+00 : f32
    %6 = vector.broadcast %cst_5 : f32 to vector<32x128xf32>
    %7 = arith.cmpf ogt, %5, %6 : vector<32x128xf32>
    %cst_6 = arith.constant 2.000000e-01 : f32
    %8 = vector.broadcast %cst_6 : f32 to vector<32x128xf32>
    %9 = arith.mulf %8, %5 : vector<32x128xf32>
    %10 = arith.select %7, %5, %9 : vector<32x128xi1>, vector<32x128xf32>
    %11 = vector.shape_cast %10 : vector<32x128xf32> to vector<2x16x128xf32>
    %cst_7 = arith.constant dense<0.000000e+00> : vector<16x128xf32>
    %12 = vector.multi_reduction <add>, %11, %cst_7 [0] : vector<2x16x128xf32> to vector<16x128xf32>
    %cst_8 = arith.constant 2.000000e+00 : f32
    %13 = vector.broadcast %cst_8 : f32 to vector<16x128xf32>
    %14 = arith.divf %12, %13 : vector<16x128xf32>
    %15 = vector.shape_cast %14 : vector<16x128xf32> to vector<1x16x128xf32>
    %16 = vector.broadcast %15 : vector<1x16x128xf32> to vector<2x16x128xf32>
    %17 = arith.subf %11, %16 : vector<2x16x128xf32>
    %18 = arith.mulf %17, %17 : vector<2x16x128xf32>
    %cst_9 = arith.constant dense<0.000000e+00> : vector<16x128xf32>
    %19 = vector.multi_reduction <add>, %18, %cst_9 [0] : vector<2x16x128xf32> to vector<16x128xf32>
    %cst_10 = arith.constant 2.000000e+00 : f32
    %20 = vector.broadcast %cst_10 : f32 to vector<16x128xf32>
    %21 = arith.divf %19, %20 : vector<16x128xf32>
    %cst_11 = arith.constant 9.99999993E-9 : f32
    %22 = vector.broadcast %cst_11 : f32 to vector<16x128xf32>
    %23 = arith.addf %21, %22 : vector<16x128xf32>
    %24 = math.sqrt %23 : vector<16x128xf32>
    %25 = tpu.iota {dimensions = array<i32: 1>} : vector<16x128xi32>
    %c32_i32 = arith.constant 32 : i32
    %26 = vector.broadcast %c32_i32 : i32 to vector<16x128xi32>
    %27 = arith.cmpi slt, %25, %26 : vector<16x128xi32>
    %cst_12 = arith.constant 0.000000e+00 : f32
    %28 = vector.broadcast %cst_12 : f32 to vector<16x128xf32>
    %29 = arith.select %27, %24, %28 : vector<16x128xi1>, vector<16x128xf32>
    %cst_13 = arith.constant dense<0.000000e+00> : vector<16xf32>
    %30 = vector.multi_reduction <add>, %29, %cst_13 [1] : vector<16x128xf32> to vector<16xf32>
    %31 = vector.shape_cast %30 : vector<16xf32> to vector<16x1xf32>
    %cst_14 = arith.constant 3.125000e-02 : f32
    %32 = vector.broadcast %cst_14 : f32 to vector<16x1xf32>
    %33 = arith.mulf %31, %32 : vector<16x1xf32>
    %34 = tpu.iota {dimensions = array<i32: 2>} : vector<2x16x128xi32>
    %c32_i32_15 = arith.constant 32 : i32
    %35 = vector.broadcast %c32_i32_15 : i32 to vector<2x16x128xi32>
    %36 = arith.cmpi eq, %34, %35 : vector<2x16x128xi32>
    %37 = vector.shape_cast %33 : vector<16x1xf32> to vector<1x16x1xf32>
    %38 = vector.shape_cast %37 : vector<1x16x1xf32> to vector<1x16x1xf32>
    %39 = vector.broadcast %38 : vector<1x16x1xf32> to vector<2x16x128xf32>
    %40 = arith.select %36, %39, %11 : vector<2x16x128xi1>, vector<2x16x128xf32>
    %41 = vector.shape_cast %40 : vector<2x16x128xf32> to vector<32x128xf32>
    %cst_16 = arith.constant 0.000000e+00 : f32
    %42 = vector.broadcast %cst_16 : f32 to vector<32x128xf32>
    %c0_17 = arith.constant 0 : index
    %c0_18 = arith.constant 0 : index
    %c0_19 = arith.constant 0 : index
    %43 = vector.load %arg3[%c0_17, %c0_18, %c0_19] : memref<9x32x32xf32, #tpu.memory_space<vmem>>, vector<1x32x32xf32>
    %44 = vector.shape_cast %43 : vector<1x32x32xf32> to vector<32x32xf32>
    %cst_20 = arith.constant dense<0.000000e+00> : vector<32x128xf32>
    %45 = tpu.matmul %44, %41, %cst_20 {dimension_numbers = #tpu.dot_dimension_numbers<[1], [0], [0], [1], [0, 0, 1, 1], [], []>} : vector<32x32xf32>, vector<32x128xf32>, vector<32x128xf32> -> vector<32x128xf32>
    %c0_21 = arith.constant 0 : index
    %c0_22 = arith.constant 0 : index
    %c0_23 = arith.constant 0 : index
    %46 = vector.load %arg4[%c0_21, %c0_22, %c0_23] : memref<9x128x128xf32, #tpu.memory_space<vmem>>, vector<1x128x128xf32>
    %47 = vector.shape_cast %46 : vector<1x128x128xf32> to vector<128x128xf32>
    %cst_24 = arith.constant dense<0.000000e+00> : vector<32x128xf32>
    %48 = tpu.matmul %45, %47, %cst_24 {dimension_numbers = #tpu.dot_dimension_numbers<[1], [0], [0], [1], [0, 0, 1, 1], [], []>} : vector<32x128xf32>, vector<128x128xf32>, vector<32x128xf32> -> vector<32x128xf32>
    %49 = arith.addf %42, %48 : vector<32x128xf32>
    %c1 = arith.constant 1 : index
    %c0_25 = arith.constant 0 : index
    %c0_26 = arith.constant 0 : index
    %50 = vector.load %arg3[%c1, %c0_25, %c0_26] : memref<9x32x32xf32, #tpu.memory_space<vmem>>, vector<1x32x32xf32>
    %51 = vector.shape_cast %50 : vector<1x32x32xf32> to vector<32x32xf32>
    %cst_27 = arith.constant dense<0.000000e+00> : vector<32x128xf32>
    %52 = tpu.matmul %51, %41, %cst_27 {dimension_numbers = #tpu.dot_dimension_numbers<[1], [0], [0], [1], [0, 0, 1, 1], [], []>} : vector<32x32xf32>, vector<32x128xf32>, vector<32x128xf32> -> vector<32x128xf32>
    %c1_28 = arith.constant 1 : index
    %c0_29 = arith.constant 0 : index
    %c0_30 = arith.constant 0 : index
    %53 = vector.load %arg4[%c1_28, %c0_29, %c0_30] : memref<9x128x128xf32, #tpu.memory_space<vmem>>, vector<1x128x128xf32>
    %54 = vector.shape_cast %53 : vector<1x128x128xf32> to vector<128x128xf32>
    %cst_31 = arith.constant dense<0.000000e+00> : vector<32x128xf32>
    %55 = tpu.matmul %52, %54, %cst_31 {dimension_numbers = #tpu.dot_dimension_numbers<[1], [0], [0], [1], [0, 0, 1, 1], [], []>} : vector<32x128xf32>, vector<128x128xf32>, vector<32x128xf32> -> vector<32x128xf32>
    %56 = arith.addf %49, %55 : vector<32x128xf32>
    %c2 = arith.constant 2 : index
    %c0_32 = arith.constant 0 : index
    %c0_33 = arith.constant 0 : index
    %57 = vector.load %arg3[%c2, %c0_32, %c0_33] : memref<9x32x32xf32, #tpu.memory_space<vmem>>, vector<1x32x32xf32>
    %58 = vector.shape_cast %57 : vector<1x32x32xf32> to vector<32x32xf32>
    %cst_34 = arith.constant dense<0.000000e+00> : vector<32x128xf32>
    %59 = tpu.matmul %58, %41, %cst_34 {dimension_numbers = #tpu.dot_dimension_numbers<[1], [0], [0], [1], [0, 0, 1, 1], [], []>} : vector<32x32xf32>, vector<32x128xf32>, vector<32x128xf32> -> vector<32x128xf32>
    %c2_35 = arith.constant 2 : index
    %c0_36 = arith.constant 0 : index
    %c0_37 = arith.constant 0 : index
    %60 = vector.load %arg4[%c2_35, %c0_36, %c0_37] : memref<9x128x128xf32, #tpu.memory_space<vmem>>, vector<1x128x128xf32>
    %61 = vector.shape_cast %60 : vector<1x128x128xf32> to vector<128x128xf32>
    %cst_38 = arith.constant dense<0.000000e+00> : vector<32x128xf32>
    %62 = tpu.matmul %59, %61, %cst_38 {dimension_numbers = #tpu.dot_dimension_numbers<[1], [0], [0], [1], [0, 0, 1, 1], [], []>} : vector<32x128xf32>, vector<128x128xf32>, vector<32x128xf32> -> vector<32x128xf32>
    %63 = arith.addf %56, %62 : vector<32x128xf32>
    %c3 = arith.constant 3 : index
    %c0_39 = arith.constant 0 : index
    %c0_40 = arith.constant 0 : index
    %64 = vector.load %arg3[%c3, %c0_39, %c0_40] : memref<9x32x32xf32, #tpu.memory_space<vmem>>, vector<1x32x32xf32>
    %65 = vector.shape_cast %64 : vector<1x32x32xf32> to vector<32x32xf32>
    %cst_41 = arith.constant dense<0.000000e+00> : vector<32x128xf32>
    %66 = tpu.matmul %65, %41, %cst_41 {dimension_numbers = #tpu.dot_dimension_numbers<[1], [0], [0], [1], [0, 0, 1, 1], [], []>} : vector<32x32xf32>, vector<32x128xf32>, vector<32x128xf32> -> vector<32x128xf32>
    %c3_42 = arith.constant 3 : index
    %c0_43 = arith.constant 0 : index
    %c0_44 = arith.constant 0 : index
    %67 = vector.load %arg4[%c3_42, %c0_43, %c0_44] : memref<9x128x128xf32, #tpu.memory_space<vmem>>, vector<1x128x128xf32>
    %68 = vector.shape_cast %67 : vector<1x128x128xf32> to vector<128x128xf32>
    %cst_45 = arith.constant dense<0.000000e+00> : vector<32x128xf32>
    %69 = tpu.matmul %66, %68, %cst_45 {dimension_numbers = #tpu.dot_dimension_numbers<[1], [0], [0], [1], [0, 0, 1, 1], [], []>} : vector<32x128xf32>, vector<128x128xf32>, vector<32x128xf32> -> vector<32x128xf32>
    %70 = arith.addf %63, %69 : vector<32x128xf32>
    %c4 = arith.constant 4 : index
    %c0_46 = arith.constant 0 : index
    %c0_47 = arith.constant 0 : index
    %71 = vector.load %arg3[%c4, %c0_46, %c0_47] : memref<9x32x32xf32, #tpu.memory_space<vmem>>, vector<1x32x32xf32>
    %72 = vector.shape_cast %71 : vector<1x32x32xf32> to vector<32x32xf32>
    %cst_48 = arith.constant dense<0.000000e+00> : vector<32x128xf32>
    %73 = tpu.matmul %72, %41, %cst_48 {dimension_numbers = #tpu.dot_dimension_numbers<[1], [0], [0], [1], [0, 0, 1, 1], [], []>} : vector<32x32xf32>, vector<32x128xf32>, vector<32x128xf32> -> vector<32x128xf32>
    %c4_49 = arith.constant 4 : index
    %c0_50 = arith.constant 0 : index
    %c0_51 = arith.constant 0 : index
    %74 = vector.load %arg4[%c4_49, %c0_50, %c0_51] : memref<9x128x128xf32, #tpu.memory_space<vmem>>, vector<1x128x128xf32>
    %75 = vector.shape_cast %74 : vector<1x128x128xf32> to vector<128x128xf32>
    %cst_52 = arith.constant dense<0.000000e+00> : vector<32x128xf32>
    %76 = tpu.matmul %73, %75, %cst_52 {dimension_numbers = #tpu.dot_dimension_numbers<[1], [0], [0], [1], [0, 0, 1, 1], [], []>} : vector<32x128xf32>, vector<128x128xf32>, vector<32x128xf32> -> vector<32x128xf32>
    %77 = arith.addf %70, %76 : vector<32x128xf32>
    %c5 = arith.constant 5 : index
    %c0_53 = arith.constant 0 : index
    %c0_54 = arith.constant 0 : index
    %78 = vector.load %arg3[%c5, %c0_53, %c0_54] : memref<9x32x32xf32, #tpu.memory_space<vmem>>, vector<1x32x32xf32>
    %79 = vector.shape_cast %78 : vector<1x32x32xf32> to vector<32x32xf32>
    %cst_55 = arith.constant dense<0.000000e+00> : vector<32x128xf32>
    %80 = tpu.matmul %79, %41, %cst_55 {dimension_numbers = #tpu.dot_dimension_numbers<[1], [0], [0], [1], [0, 0, 1, 1], [], []>} : vector<32x32xf32>, vector<32x128xf32>, vector<32x128xf32> -> vector<32x128xf32>
    %c5_56 = arith.constant 5 : index
    %c0_57 = arith.constant 0 : index
    %c0_58 = arith.constant 0 : index
    %81 = vector.load %arg4[%c5_56, %c0_57, %c0_58] : memref<9x128x128xf32, #tpu.memory_space<vmem>>, vector<1x128x128xf32>
    %82 = vector.shape_cast %81 : vector<1x128x128xf32> to vector<128x128xf32>
    %cst_59 = arith.constant dense<0.000000e+00> : vector<32x128xf32>
    %83 = tpu.matmul %80, %82, %cst_59 {dimension_numbers = #tpu.dot_dimension_numbers<[1], [0], [0], [1], [0, 0, 1, 1], [], []>} : vector<32x128xf32>, vector<128x128xf32>, vector<32x128xf32> -> vector<32x128xf32>
    %84 = arith.addf %77, %83 : vector<32x128xf32>
    %c6 = arith.constant 6 : index
    %c0_60 = arith.constant 0 : index
    %c0_61 = arith.constant 0 : index
    %85 = vector.load %arg3[%c6, %c0_60, %c0_61] : memref<9x32x32xf32, #tpu.memory_space<vmem>>, vector<1x32x32xf32>
    %86 = vector.shape_cast %85 : vector<1x32x32xf32> to vector<32x32xf32>
    %cst_62 = arith.constant dense<0.000000e+00> : vector<32x128xf32>
    %87 = tpu.matmul %86, %41, %cst_62 {dimension_numbers = #tpu.dot_dimension_numbers<[1], [0], [0], [1], [0, 0, 1, 1], [], []>} : vector<32x32xf32>, vector<32x128xf32>, vector<32x128xf32> -> vector<32x128xf32>
    %c6_63 = arith.constant 6 : index
    %c0_64 = arith.constant 0 : index
    %c0_65 = arith.constant 0 : index
    %88 = vector.load %arg4[%c6_63, %c0_64, %c0_65] : memref<9x128x128xf32, #tpu.memory_space<vmem>>, vector<1x128x128xf32>
    %89 = vector.shape_cast %88 : vector<1x128x128xf32> to vector<128x128xf32>
    %cst_66 = arith.constant dense<0.000000e+00> : vector<32x128xf32>
    %90 = tpu.matmul %87, %89, %cst_66 {dimension_numbers = #tpu.dot_dimension_numbers<[1], [0], [0], [1], [0, 0, 1, 1], [], []>} : vector<32x128xf32>, vector<128x128xf32>, vector<32x128xf32> -> vector<32x128xf32>
    %91 = arith.addf %84, %90 : vector<32x128xf32>
    %c7 = arith.constant 7 : index
    %c0_67 = arith.constant 0 : index
    %c0_68 = arith.constant 0 : index
    %92 = vector.load %arg3[%c7, %c0_67, %c0_68] : memref<9x32x32xf32, #tpu.memory_space<vmem>>, vector<1x32x32xf32>
    %93 = vector.shape_cast %92 : vector<1x32x32xf32> to vector<32x32xf32>
    %cst_69 = arith.constant dense<0.000000e+00> : vector<32x128xf32>
    %94 = tpu.matmul %93, %41, %cst_69 {dimension_numbers = #tpu.dot_dimension_numbers<[1], [0], [0], [1], [0, 0, 1, 1], [], []>} : vector<32x32xf32>, vector<32x128xf32>, vector<32x128xf32> -> vector<32x128xf32>
    %c7_70 = arith.constant 7 : index
    %c0_71 = arith.constant 0 : index
    %c0_72 = arith.constant 0 : index
    %95 = vector.load %arg4[%c7_70, %c0_71, %c0_72] : memref<9x128x128xf32, #tpu.memory_space<vmem>>, vector<1x128x128xf32>
    %96 = vector.shape_cast %95 : vector<1x128x128xf32> to vector<128x128xf32>
    %cst_73 = arith.constant dense<0.000000e+00> : vector<32x128xf32>
    %97 = tpu.matmul %94, %96, %cst_73 {dimension_numbers = #tpu.dot_dimension_numbers<[1], [0], [0], [1], [0, 0, 1, 1], [], []>} : vector<32x128xf32>, vector<128x128xf32>, vector<32x128xf32> -> vector<32x128xf32>
    %98 = arith.addf %91, %97 : vector<32x128xf32>
    %c8 = arith.constant 8 : index
    %c0_74 = arith.constant 0 : index
    %c0_75 = arith.constant 0 : index
    %99 = vector.load %arg3[%c8, %c0_74, %c0_75] : memref<9x32x32xf32, #tpu.memory_space<vmem>>, vector<1x32x32xf32>
    %100 = vector.shape_cast %99 : vector<1x32x32xf32> to vector<32x32xf32>
    %cst_76 = arith.constant dense<0.000000e+00> : vector<32x128xf32>
    %101 = tpu.matmul %100, %41, %cst_76 {dimension_numbers = #tpu.dot_dimension_numbers<[1], [0], [0], [1], [0, 0, 1, 1], [], []>} : vector<32x32xf32>, vector<32x128xf32>, vector<32x128xf32> -> vector<32x128xf32>
    %c8_77 = arith.constant 8 : index
    %c0_78 = arith.constant 0 : index
    %c0_79 = arith.constant 0 : index
    %102 = vector.load %arg4[%c8_77, %c0_78, %c0_79] : memref<9x128x128xf32, #tpu.memory_space<vmem>>, vector<1x128x128xf32>
    %103 = vector.shape_cast %102 : vector<1x128x128xf32> to vector<128x128xf32>
    %cst_80 = arith.constant dense<0.000000e+00> : vector<32x128xf32>
    %104 = tpu.matmul %101, %103, %cst_80 {dimension_numbers = #tpu.dot_dimension_numbers<[1], [0], [0], [1], [0, 0, 1, 1], [], []>} : vector<32x128xf32>, vector<128x128xf32>, vector<32x128xf32> -> vector<32x128xf32>
    %105 = arith.addf %98, %104 : vector<32x128xf32>
    %c0_81 = arith.constant 0 : index
    %c0_82 = arith.constant 0 : index
    %106 = vector.load %arg5[%c0_81, %c0_82] : memref<1x128xf32, #tpu.memory_space<vmem>>, vector<1x128xf32>
    %107 = vector.broadcast %106 : vector<1x128xf32> to vector<32x128xf32>
    %108 = arith.addf %105, %107 : vector<32x128xf32>
    %cst_83 = arith.constant 0.000000e+00 : f32
    %109 = vector.broadcast %cst_83 : f32 to vector<32x128xf32>
    %110 = arith.cmpf ogt, %108, %109 : vector<32x128xf32>
    %cst_84 = arith.constant 2.000000e-01 : f32
    %111 = vector.broadcast %cst_84 : f32 to vector<32x128xf32>
    %112 = arith.mulf %111, %108 : vector<32x128xf32>
    %113 = arith.select %110, %108, %112 : vector<32x128xi1>, vector<32x128xf32>
    %114 = tpu.iota {dimensions = array<i32: 1>} : vector<2x16x128xi32>
    %115 = vector.shape_cast %114 : vector<2x16x128xi32> to vector<32x128xi32>
    %cst_85 = arith.constant 0.000000e+00 : f32
    %116 = vector.broadcast %cst_85 : f32 to vector<32x128xf32>
    %c0_i32 = arith.constant 0 : i32
    %117 = vector.broadcast %c0_i32 : i32 to vector<32x128xi32>
    %118 = arith.cmpi eq, %115, %117 : vector<32x128xi32>
    %cst_86 = arith.constant 0.000000e+00 : f32
    %119 = vector.broadcast %cst_86 : f32 to vector<32x128xf32>
    %120 = arith.select %118, %113, %119 : vector<32x128xi1>, vector<32x128xf32>
    %c0_87 = arith.constant 0 : index
    %c0_88 = arith.constant 0 : index
    %c0_89 = arith.constant 0 : index
    %121 = vector.load %arg6[%c0_87, %c0_88, %c0_89] : memref<16x128x128xf32, #tpu.memory_space<vmem>>, vector<1x128x128xf32>
    %122 = vector.shape_cast %121 : vector<1x128x128xf32> to vector<128x128xf32>
    %cst_90 = arith.constant dense<0.000000e+00> : vector<32x128xf32>
    %123 = tpu.matmul %120, %122, %cst_90 {dimension_numbers = #tpu.dot_dimension_numbers<[1], [0], [0], [1], [0, 0, 1, 1], [], []>} : vector<32x128xf32>, vector<128x128xf32>, vector<32x128xf32> -> vector<32x128xf32>
    %124 = arith.addf %116, %123 : vector<32x128xf32>
    %c1_i32 = arith.constant 1 : i32
    %125 = vector.broadcast %c1_i32 : i32 to vector<32x128xi32>
    %126 = arith.cmpi eq, %115, %125 : vector<32x128xi32>
    %cst_91 = arith.constant 0.000000e+00 : f32
    %127 = vector.broadcast %cst_91 : f32 to vector<32x128xf32>
    %128 = arith.select %126, %113, %127 : vector<32x128xi1>, vector<32x128xf32>
    %c1_92 = arith.constant 1 : index
    %c0_93 = arith.constant 0 : index
    %c0_94 = arith.constant 0 : index
    %129 = vector.load %arg6[%c1_92, %c0_93, %c0_94] : memref<16x128x128xf32, #tpu.memory_space<vmem>>, vector<1x128x128xf32>
    %130 = vector.shape_cast %129 : vector<1x128x128xf32> to vector<128x128xf32>
    %cst_95 = arith.constant dense<0.000000e+00> : vector<32x128xf32>
    %131 = tpu.matmul %128, %130, %cst_95 {dimension_numbers = #tpu.dot_dimension_numbers<[1], [0], [0], [1], [0, 0, 1, 1], [], []>} : vector<32x128xf32>, vector<128x128xf32>, vector<32x128xf32> -> vector<32x128xf32>
    %132 = arith.addf %124, %131 : vector<32x128xf32>
    %c2_i32 = arith.constant 2 : i32
    %133 = vector.broadcast %c2_i32 : i32 to vector<32x128xi32>
    %134 = arith.cmpi eq, %115, %133 : vector<32x128xi32>
    %cst_96 = arith.constant 0.000000e+00 : f32
    %135 = vector.broadcast %cst_96 : f32 to vector<32x128xf32>
    %136 = arith.select %134, %113, %135 : vector<32x128xi1>, vector<32x128xf32>
    %c2_97 = arith.constant 2 : index
    %c0_98 = arith.constant 0 : index
    %c0_99 = arith.constant 0 : index
    %137 = vector.load %arg6[%c2_97, %c0_98, %c0_99] : memref<16x128x128xf32, #tpu.memory_space<vmem>>, vector<1x128x128xf32>
    %138 = vector.shape_cast %137 : vector<1x128x128xf32> to vector<128x128xf32>
    %cst_100 = arith.constant dense<0.000000e+00> : vector<32x128xf32>
    %139 = tpu.matmul %136, %138, %cst_100 {dimension_numbers = #tpu.dot_dimension_numbers<[1], [0], [0], [1], [0, 0, 1, 1], [], []>} : vector<32x128xf32>, vector<128x128xf32>, vector<32x128xf32> -> vector<32x128xf32>
    %140 = arith.addf %132, %139 : vector<32x128xf32>
    %c3_i32 = arith.constant 3 : i32
    %141 = vector.broadcast %c3_i32 : i32 to vector<32x128xi32>
    %142 = arith.cmpi eq, %115, %141 : vector<32x128xi32>
    %cst_101 = arith.constant 0.000000e+00 : f32
    %143 = vector.broadcast %cst_101 : f32 to vector<32x128xf32>
    %144 = arith.select %142, %113, %143 : vector<32x128xi1>, vector<32x128xf32>
    %c3_102 = arith.constant 3 : index
    %c0_103 = arith.constant 0 : index
    %c0_104 = arith.constant 0 : index
    %145 = vector.load %arg6[%c3_102, %c0_103, %c0_104] : memref<16x128x128xf32, #tpu.memory_space<vmem>>, vector<1x128x128xf32>
    %146 = vector.shape_cast %145 : vector<1x128x128xf32> to vector<128x128xf32>
    %cst_105 = arith.constant dense<0.000000e+00> : vector<32x128xf32>
    %147 = tpu.matmul %144, %146, %cst_105 {dimension_numbers = #tpu.dot_dimension_numbers<[1], [0], [0], [1], [0, 0, 1, 1], [], []>} : vector<32x128xf32>, vector<128x128xf32>, vector<32x128xf32> -> vector<32x128xf32>
    %148 = arith.addf %140, %147 : vector<32x128xf32>
    %c4_i32 = arith.constant 4 : i32
    %149 = vector.broadcast %c4_i32 : i32 to vector<32x128xi32>
    %150 = arith.cmpi eq, %115, %149 : vector<32x128xi32>
    %cst_106 = arith.constant 0.000000e+00 : f32
    %151 = vector.broadcast %cst_106 : f32 to vector<32x128xf32>
    %152 = arith.select %150, %113, %151 : vector<32x128xi1>, vector<32x128xf32>
    %c4_107 = arith.constant 4 : index
    %c0_108 = arith.constant 0 : index
    %c0_109 = arith.constant 0 : index
    %153 = vector.load %arg6[%c4_107, %c0_108, %c0_109] : memref<16x128x128xf32, #tpu.memory_space<vmem>>, vector<1x128x128xf32>
    %154 = vector.shape_cast %153 : vector<1x128x128xf32> to vector<128x128xf32>
    %cst_110 = arith.constant dense<0.000000e+00> : vector<32x128xf32>
    %155 = tpu.matmul %152, %154, %cst_110 {dimension_numbers = #tpu.dot_dimension_numbers<[1], [0], [0], [1], [0, 0, 1, 1], [], []>} : vector<32x128xf32>, vector<128x128xf32>, vector<32x128xf32> -> vector<32x128xf32>
    %156 = arith.addf %148, %155 : vector<32x128xf32>
    %c5_i32 = arith.constant 5 : i32
    %157 = vector.broadcast %c5_i32 : i32 to vector<32x128xi32>
    %158 = arith.cmpi eq, %115, %157 : vector<32x128xi32>
    %cst_111 = arith.constant 0.000000e+00 : f32
    %159 = vector.broadcast %cst_111 : f32 to vector<32x128xf32>
    %160 = arith.select %158, %113, %159 : vector<32x128xi1>, vector<32x128xf32>
    %c5_112 = arith.constant 5 : index
    %c0_113 = arith.constant 0 : index
    %c0_114 = arith.constant 0 : index
    %161 = vector.load %arg6[%c5_112, %c0_113, %c0_114] : memref<16x128x128xf32, #tpu.memory_space<vmem>>, vector<1x128x128xf32>
    %162 = vector.shape_cast %161 : vector<1x128x128xf32> to vector<128x128xf32>
    %cst_115 = arith.constant dense<0.000000e+00> : vector<32x128xf32>
    %163 = tpu.matmul %160, %162, %cst_115 {dimension_numbers = #tpu.dot_dimension_numbers<[1], [0], [0], [1], [0, 0, 1, 1], [], []>} : vector<32x128xf32>, vector<128x128xf32>, vector<32x128xf32> -> vector<32x128xf32>
    %164 = arith.addf %156, %163 : vector<32x128xf32>
    %c6_i32 = arith.constant 6 : i32
    %165 = vector.broadcast %c6_i32 : i32 to vector<32x128xi32>
    %166 = arith.cmpi eq, %115, %165 : vector<32x128xi32>
    %cst_116 = arith.constant 0.000000e+00 : f32
    %167 = vector.broadcast %cst_116 : f32 to vector<32x128xf32>
    %168 = arith.select %166, %113, %167 : vector<32x128xi1>, vector<32x128xf32>
    %c6_117 = arith.constant 6 : index
    %c0_118 = arith.constant 0 : index
    %c0_119 = arith.constant 0 : index
    %169 = vector.load %arg6[%c6_117, %c0_118, %c0_119] : memref<16x128x128xf32, #tpu.memory_space<vmem>>, vector<1x128x128xf32>
    %170 = vector.shape_cast %169 : vector<1x128x128xf32> to vector<128x128xf32>
    %cst_120 = arith.constant dense<0.000000e+00> : vector<32x128xf32>
    %171 = tpu.matmul %168, %170, %cst_120 {dimension_numbers = #tpu.dot_dimension_numbers<[1], [0], [0], [1], [0, 0, 1, 1], [], []>} : vector<32x128xf32>, vector<128x128xf32>, vector<32x128xf32> -> vector<32x128xf32>
    %172 = arith.addf %164, %171 : vector<32x128xf32>
    %c7_i32 = arith.constant 7 : i32
    %173 = vector.broadcast %c7_i32 : i32 to vector<32x128xi32>
    %174 = arith.cmpi eq, %115, %173 : vector<32x128xi32>
    %cst_121 = arith.constant 0.000000e+00 : f32
    %175 = vector.broadcast %cst_121 : f32 to vector<32x128xf32>
    %176 = arith.select %174, %113, %175 : vector<32x128xi1>, vector<32x128xf32>
    %c7_122 = arith.constant 7 : index
    %c0_123 = arith.constant 0 : index
    %c0_124 = arith.constant 0 : index
    %177 = vector.load %arg6[%c7_122, %c0_123, %c0_124] : memref<16x128x128xf32, #tpu.memory_space<vmem>>, vector<1x128x128xf32>
    %178 = vector.shape_cast %177 : vector<1x128x128xf32> to vector<128x128xf32>
    %cst_125 = arith.constant dense<0.000000e+00> : vector<32x128xf32>
    %179 = tpu.matmul %176, %178, %cst_125 {dimension_numbers = #tpu.dot_dimension_numbers<[1], [0], [0], [1], [0, 0, 1, 1], [], []>} : vector<32x128xf32>, vector<128x128xf32>, vector<32x128xf32> -> vector<32x128xf32>
    %180 = arith.addf %172, %179 : vector<32x128xf32>
    %c8_i32 = arith.constant 8 : i32
    %181 = vector.broadcast %c8_i32 : i32 to vector<32x128xi32>
    %182 = arith.cmpi eq, %115, %181 : vector<32x128xi32>
    %cst_126 = arith.constant 0.000000e+00 : f32
    %183 = vector.broadcast %cst_126 : f32 to vector<32x128xf32>
    %184 = arith.select %182, %113, %183 : vector<32x128xi1>, vector<32x128xf32>
    %c8_127 = arith.constant 8 : index
    %c0_128 = arith.constant 0 : index
    %c0_129 = arith.constant 0 : index
    %185 = vector.load %arg6[%c8_127, %c0_128, %c0_129] : memref<16x128x128xf32, #tpu.memory_space<vmem>>, vector<1x128x128xf32>
    %186 = vector.shape_cast %185 : vector<1x128x128xf32> to vector<128x128xf32>
    %cst_130 = arith.constant dense<0.000000e+00> : vector<32x128xf32>
    %187 = tpu.matmul %184, %186, %cst_130 {dimension_numbers = #tpu.dot_dimension_numbers<[1], [0], [0], [1], [0, 0, 1, 1], [], []>} : vector<32x128xf32>, vector<128x128xf32>, vector<32x128xf32> -> vector<32x128xf32>
    %188 = arith.addf %180, %187 : vector<32x128xf32>
    %c9_i32 = arith.constant 9 : i32
    %189 = vector.broadcast %c9_i32 : i32 to vector<32x128xi32>
    %190 = arith.cmpi eq, %115, %189 : vector<32x128xi32>
    %cst_131 = arith.constant 0.000000e+00 : f32
    %191 = vector.broadcast %cst_131 : f32 to vector<32x128xf32>
    %192 = arith.select %190, %113, %191 : vector<32x128xi1>, vector<32x128xf32>
    %c9 = arith.constant 9 : index
    %c0_132 = arith.constant 0 : index
    %c0_133 = arith.constant 0 : index
    %193 = vector.load %arg6[%c9, %c0_132, %c0_133] : memref<16x128x128xf32, #tpu.memory_space<vmem>>, vector<1x128x128xf32>
    %194 = vector.shape_cast %193 : vector<1x128x128xf32> to vector<128x128xf32>
    %cst_134 = arith.constant dense<0.000000e+00> : vector<32x128xf32>
    %195 = tpu.matmul %192, %194, %cst_134 {dimension_numbers = #tpu.dot_dimension_numbers<[1], [0], [0], [1], [0, 0, 1, 1], [], []>} : vector<32x128xf32>, vector<128x128xf32>, vector<32x128xf32> -> vector<32x128xf32>
    %196 = arith.addf %188, %195 : vector<32x128xf32>
    %c10_i32 = arith.constant 10 : i32
    %197 = vector.broadcast %c10_i32 : i32 to vector<32x128xi32>
    %198 = arith.cmpi eq, %115, %197 : vector<32x128xi32>
    %cst_135 = arith.constant 0.000000e+00 : f32
    %199 = vector.broadcast %cst_135 : f32 to vector<32x128xf32>
    %200 = arith.select %198, %113, %199 : vector<32x128xi1>, vector<32x128xf32>
    %c10 = arith.constant 10 : index
    %c0_136 = arith.constant 0 : index
    %c0_137 = arith.constant 0 : index
    %201 = vector.load %arg6[%c10, %c0_136, %c0_137] : memref<16x128x128xf32, #tpu.memory_space<vmem>>, vector<1x128x128xf32>
    %202 = vector.shape_cast %201 : vector<1x128x128xf32> to vector<128x128xf32>
    %cst_138 = arith.constant dense<0.000000e+00> : vector<32x128xf32>
    %203 = tpu.matmul %200, %202, %cst_138 {dimension_numbers = #tpu.dot_dimension_numbers<[1], [0], [0], [1], [0, 0, 1, 1], [], []>} : vector<32x128xf32>, vector<128x128xf32>, vector<32x128xf32> -> vector<32x128xf32>
    %204 = arith.addf %196, %203 : vector<32x128xf32>
    %c11_i32 = arith.constant 11 : i32
    %205 = vector.broadcast %c11_i32 : i32 to vector<32x128xi32>
    %206 = arith.cmpi eq, %115, %205 : vector<32x128xi32>
    %cst_139 = arith.constant 0.000000e+00 : f32
    %207 = vector.broadcast %cst_139 : f32 to vector<32x128xf32>
    %208 = arith.select %206, %113, %207 : vector<32x128xi1>, vector<32x128xf32>
    %c11 = arith.constant 11 : index
    %c0_140 = arith.constant 0 : index
    %c0_141 = arith.constant 0 : index
    %209 = vector.load %arg6[%c11, %c0_140, %c0_141] : memref<16x128x128xf32, #tpu.memory_space<vmem>>, vector<1x128x128xf32>
    %210 = vector.shape_cast %209 : vector<1x128x128xf32> to vector<128x128xf32>
    %cst_142 = arith.constant dense<0.000000e+00> : vector<32x128xf32>
    %211 = tpu.matmul %208, %210, %cst_142 {dimension_numbers = #tpu.dot_dimension_numbers<[1], [0], [0], [1], [0, 0, 1, 1], [], []>} : vector<32x128xf32>, vector<128x128xf32>, vector<32x128xf32> -> vector<32x128xf32>
    %212 = arith.addf %204, %211 : vector<32x128xf32>
    %c12_i32 = arith.constant 12 : i32
    %213 = vector.broadcast %c12_i32 : i32 to vector<32x128xi32>
    %214 = arith.cmpi eq, %115, %213 : vector<32x128xi32>
    %cst_143 = arith.constant 0.000000e+00 : f32
    %215 = vector.broadcast %cst_143 : f32 to vector<32x128xf32>
    %216 = arith.select %214, %113, %215 : vector<32x128xi1>, vector<32x128xf32>
    %c12 = arith.constant 12 : index
    %c0_144 = arith.constant 0 : index
    %c0_145 = arith.constant 0 : index
    %217 = vector.load %arg6[%c12, %c0_144, %c0_145] : memref<16x128x128xf32, #tpu.memory_space<vmem>>, vector<1x128x128xf32>
    %218 = vector.shape_cast %217 : vector<1x128x128xf32> to vector<128x128xf32>
    %cst_146 = arith.constant dense<0.000000e+00> : vector<32x128xf32>
    %219 = tpu.matmul %216, %218, %cst_146 {dimension_numbers = #tpu.dot_dimension_numbers<[1], [0], [0], [1], [0, 0, 1, 1], [], []>} : vector<32x128xf32>, vector<128x128xf32>, vector<32x128xf32> -> vector<32x128xf32>
    %220 = arith.addf %212, %219 : vector<32x128xf32>
    %c13_i32 = arith.constant 13 : i32
    %221 = vector.broadcast %c13_i32 : i32 to vector<32x128xi32>
    %222 = arith.cmpi eq, %115, %221 : vector<32x128xi32>
    %cst_147 = arith.constant 0.000000e+00 : f32
    %223 = vector.broadcast %cst_147 : f32 to vector<32x128xf32>
    %224 = arith.select %222, %113, %223 : vector<32x128xi1>, vector<32x128xf32>
    %c13 = arith.constant 13 : index
    %c0_148 = arith.constant 0 : index
    %c0_149 = arith.constant 0 : index
    %225 = vector.load %arg6[%c13, %c0_148, %c0_149] : memref<16x128x128xf32, #tpu.memory_space<vmem>>, vector<1x128x128xf32>
    %226 = vector.shape_cast %225 : vector<1x128x128xf32> to vector<128x128xf32>
    %cst_150 = arith.constant dense<0.000000e+00> : vector<32x128xf32>
    %227 = tpu.matmul %224, %226, %cst_150 {dimension_numbers = #tpu.dot_dimension_numbers<[1], [0], [0], [1], [0, 0, 1, 1], [], []>} : vector<32x128xf32>, vector<128x128xf32>, vector<32x128xf32> -> vector<32x128xf32>
    %228 = arith.addf %220, %227 : vector<32x128xf32>
    %c14_i32 = arith.constant 14 : i32
    %229 = vector.broadcast %c14_i32 : i32 to vector<32x128xi32>
    %230 = arith.cmpi eq, %115, %229 : vector<32x128xi32>
    %cst_151 = arith.constant 0.000000e+00 : f32
    %231 = vector.broadcast %cst_151 : f32 to vector<32x128xf32>
    %232 = arith.select %230, %113, %231 : vector<32x128xi1>, vector<32x128xf32>
    %c14 = arith.constant 14 : index
    %c0_152 = arith.constant 0 : index
    %c0_153 = arith.constant 0 : index
    %233 = vector.load %arg6[%c14, %c0_152, %c0_153] : memref<16x128x128xf32, #tpu.memory_space<vmem>>, vector<1x128x128xf32>
    %234 = vector.shape_cast %233 : vector<1x128x128xf32> to vector<128x128xf32>
    %cst_154 = arith.constant dense<0.000000e+00> : vector<32x128xf32>
    %235 = tpu.matmul %232, %234, %cst_154 {dimension_numbers = #tpu.dot_dimension_numbers<[1], [0], [0], [1], [0, 0, 1, 1], [], []>} : vector<32x128xf32>, vector<128x128xf32>, vector<32x128xf32> -> vector<32x128xf32>
    %236 = arith.addf %228, %235 : vector<32x128xf32>
    %c15_i32 = arith.constant 15 : i32
    %237 = vector.broadcast %c15_i32 : i32 to vector<32x128xi32>
    %238 = arith.cmpi eq, %115, %237 : vector<32x128xi32>
    %cst_155 = arith.constant 0.000000e+00 : f32
    %239 = vector.broadcast %cst_155 : f32 to vector<32x128xf32>
    %240 = arith.select %238, %113, %239 : vector<32x128xi1>, vector<32x128xf32>
    %c15 = arith.constant 15 : index
    %c0_156 = arith.constant 0 : index
    %c0_157 = arith.constant 0 : index
    %241 = vector.load %arg6[%c15, %c0_156, %c0_157] : memref<16x128x128xf32, #tpu.memory_space<vmem>>, vector<1x128x128xf32>
    %242 = vector.shape_cast %241 : vector<1x128x128xf32> to vector<128x128xf32>
    %cst_158 = arith.constant dense<0.000000e+00> : vector<32x128xf32>
    %243 = tpu.matmul %240, %242, %cst_158 {dimension_numbers = #tpu.dot_dimension_numbers<[1], [0], [0], [1], [0, 0, 1, 1], [], []>} : vector<32x128xf32>, vector<128x128xf32>, vector<32x128xf32> -> vector<32x128xf32>
    %244 = arith.addf %236, %243 : vector<32x128xf32>
    %245 = vector.shape_cast %244 : vector<32x128xf32> to vector<2x16x128xf32>
    %cst_159 = arith.constant dense<0.000000e+00> : vector<2x128xf32>
    %246 = vector.multi_reduction <add>, %245, %cst_159 [1] : vector<2x16x128xf32> to vector<2x128xf32>
    %c0_160 = arith.constant 0 : index
    %c0_161 = arith.constant 0 : index
    %247 = vector.load %arg7[%c0_160, %c0_161] : memref<1x128xf32, #tpu.memory_space<vmem>>, vector<1x128xf32>
    %248 = vector.broadcast %247 : vector<1x128xf32> to vector<2x128xf32>
    %249 = arith.addf %246, %248 : vector<2x128xf32>
    %cst_162 = arith.constant 0.000000e+00 : f32
    %250 = vector.broadcast %cst_162 : f32 to vector<2x128xf32>
    %251 = arith.cmpf ogt, %249, %250 : vector<2x128xf32>
    %cst_163 = arith.constant 2.000000e-01 : f32
    %252 = vector.broadcast %cst_163 : f32 to vector<2x128xf32>
    %253 = arith.mulf %252, %249 : vector<2x128xf32>
    %254 = arith.select %251, %249, %253 : vector<2x128xi1>, vector<2x128xf32>
    %c0_164 = arith.constant 0 : index
    %c0_165 = arith.constant 0 : index
    %255 = vector.load %arg8[%c0_164, %c0_165] : memref<128x128xf32, #tpu.memory_space<vmem>>, vector<128x128xf32>
    %cst_166 = arith.constant dense<0.000000e+00> : vector<2x128xf32>
    %256 = tpu.matmul %254, %255, %cst_166 {dimension_numbers = #tpu.dot_dimension_numbers<[1], [0], [0], [1], [0, 0, 1, 1], [], []>} : vector<2x128xf32>, vector<128x128xf32>, vector<2x128xf32> -> vector<2x128xf32>
    %c0_167 = arith.constant 0 : index
    %c0_168 = arith.constant 0 : index
    %257 = vector.load %arg9[%c0_167, %c0_168] : memref<1x128xf32, #tpu.memory_space<vmem>>, vector<1x128xf32>
    %258 = vector.broadcast %257 : vector<1x128xf32> to vector<2x128xf32>
    %259 = arith.addf %256, %258 : vector<2x128xf32>
    %c0_169 = arith.constant 0 : index
    %c0_170 = arith.constant 0 : index
    %260 = vector.load %arg10[%c0_169, %c0_170] : memref<2x128xf32, #tpu.memory_space<vmem>>, vector<2x128xf32>
    tpu.vector_store %arg10[%c0_169, %c0_170], %259 {strides = array<i32>} : memref<2x128xf32, #tpu.memory_space<vmem>>, vector<2x128xf32>,
    return
  }
}

</mosaic_0001>

<llo_original>
// kernel: discriminator_forward.1
$region0: #{discriminator_forward.1}
  #allocation0 [shape = 'u32[]', space=smem, size = 0x4, offset = 0x4, fixed_abs, tag = 'smem constant byte address 0x4 - core index']
  #allocation1 [shape = 'u32[144,128]{1,0:T(1,128)}', space=vmem, size = 0x12000, scoped, tag = 'internal scratch']
  %s0 = inlined_call_operand.vmem [shape: f32[32,128], index: 0, kind: input, shape index: {}]
  %s1 = inlined_call_operand.vmem [shape: f32[128,128], index: 1, kind: input, shape index: {}]
  %s2 = inlined_call_operand.vmem [shape: f32[1,128], index: 2, kind: input, shape index: {}]
  %s3 = inlined_call_operand.vmem [shape: f32[9,32,32], index: 3, kind: input, shape index: {}]
  %s4 = inlined_call_operand.vmem [shape: f32[9,128,128], index: 4, kind: input, shape index: {}]
  %s5 = inlined_call_operand.vmem [shape: f32[1,128], index: 5, kind: input, shape index: {}]
  %s6 = inlined_call_operand.vmem [shape: f32[16,128,128], index: 6, kind: input, shape index: {}]
  %s7 = inlined_call_operand.vmem [shape: f32[1,128], index: 7, kind: input, shape index: {}]
  %s8 = inlined_call_operand.vmem [shape: f32[128,128], index: 8, kind: input, shape index: {}]
  %s9 = inlined_call_operand.vmem [shape: f32[1,128], index: 9, kind: input, shape index: {}]
  %s10 = inlined_call_operand.vmem [shape: f32[2,128], index: 10, kind: output, shape index: {}]
  %s11 = sld [smem:[#allocation0]]
  $region50: #{discriminator_forward.1} parent=0
    _
  %s13 = ssub.s32 1, %s11
  %s14 = scalar_select 0, %s13, %s11
  // Predicated region
  $region2: #{discriminator_forward.1} parent=0 // pred_check
    _
  $region3: #{discriminator_forward.1} parent=0 // pred_check_branch
    %16 = sbr.rel (0) target = $region5
  $region4: #{discriminator_forward.1} parent=0 // pred_region
    _
  $region5: #{discriminator_forward.1} parent=0 // pred_fallthru
    _
  // Predicated region
  $region6: #{discriminator_forward.1} parent=0 // pred_check
    _
  $region7: #{discriminator_forward.1} parent=0 // pred_check_branch
    %18 = sbr.rel (0) target = $region9
  $region8: #{discriminator_forward.1} parent=0 // pred_region
    _
  $region9: #{discriminator_forward.1} parent=0 // pred_fallthru
    _
  // Predicated region
  $region10: #{discriminator_forward.1} parent=0 // pred_check
    _
  $region11: #{discriminator_forward.1} parent=0 // pred_check_branch
    %20 = sbr.rel (0) target = $region13
  $region12: #{discriminator_forward.1} parent=0 // pred_region
    _
  $region13: #{discriminator_forward.1} parent=0 // pred_fallthru
    _
  // Predicated region
  $region14: #{discriminator_forward.1} parent=0 // pred_check
    _
  $region15: #{discriminator_forward.1} parent=0 // pred_check_branch
    %22 = sbr.rel (0) target = $region17
  $region16: #{discriminator_forward.1} parent=0 // pred_region
    _
  $region17: #{discriminator_forward.1} parent=0 // pred_fallthru
    _
  // Predicated region
  $region18: #{discriminator_forward.1} parent=0 // pred_check
    _
  $region19: #{discriminator_forward.1} parent=0 // pred_check_branch
    %24 = sbr.rel (0) target = $region21
  $region20: #{discriminator_forward.1} parent=0 // pred_region
    _
  $region21: #{discriminator_forward.1} parent=0 // pred_fallthru
    _
  // Predicated region
  $region22: #{discriminator_forward.1} parent=0 // pred_check
    _
  $region23: #{discriminator_forward.1} parent=0 // pred_check_branch
    %26 = sbr.rel (0) target = $region25
  $region24: #{discriminator_forward.1} parent=0 // pred_region
    _
  $region25: #{discriminator_forward.1} parent=0 // pred_fallthru
    _
  // Predicated region
  $region26: #{discriminator_forward.1} parent=0 // pred_check
    _
  $region27: #{discriminator_forward.1} parent=0 // pred_check_branch
    %28 = sbr.rel (0) target = $region29
  $region28: #{discriminator_forward.1} parent=0 // pred_region
    _
  $region29: #{discriminator_forward.1} parent=0 // pred_fallthru
    _
  // Predicated region
  $region30: #{discriminator_forward.1} parent=0 // pred_check
    _
  $region31: #{discriminator_forward.1} parent=0 // pred_check_branch
    %30 = sbr.rel (0) target = $region33
  $region32: #{discriminator_forward.1} parent=0 // pred_region
    _
  $region33: #{discriminator_forward.1} parent=0 // pred_fallthru
    _
  // Predicated region
  $region34: #{discriminator_forward.1} parent=0 // pred_check
    _
  $region35: #{discriminator_forward.1} parent=0 // pred_check_branch
    %32 = sbr.rel (0) target = $region37
  $region36: #{discriminator_forward.1} parent=0 // pred_region
    _
  $region37: #{discriminator_forward.1} parent=0 // pred_fallthru
    _
  // Predicated region
  $region38: #{discriminator_forward.1} parent=0 // pred_check
    _
  $region39: #{discriminator_forward.1} parent=0 // pred_check_branch
    %34 = sbr.rel (0) target = $region41
  $region40: #{discriminator_forward.1} parent=0 // pred_region
    _
  $region41: #{discriminator_forward.1} parent=0 // pred_fallthru
    _
  %v35 = vld [vmem:[%s0] sm:$0xff]
  %v36 = vld [vmem:[%s0 + $0x8] sm:$0xff]
  %v37 = vld [vmem:[%s0 + $0x10] sm:$0xff]
  %v38 = vld [vmem:[%s0 + $0x18] sm:$0xff]
  %v39 = vld [vmem:[%s1] sm:$0xff]
  %v40 = vld [vmem:[%s1 + $0x8] sm:$0xff]
  %v41 = vld [vmem:[%s1 + $0x10] sm:$0xff]
  %v42 = vld [vmem:[%s1 + $0x18] sm:$0xff]
  %v43 = vld [vmem:[%s1 + $0x20] sm:$0xff]
  %v44 = vld [vmem:[%s1 + $0x28] sm:$0xff]
  %v45 = vld [vmem:[%s1 + $0x30] sm:$0xff]
  %v46 = vld [vmem:[%s1 + $0x38] sm:$0xff]
  %v47 = vld [vmem:[%s1 + $0x40] sm:$0xff]
  %v48 = vld [vmem:[%s1 + $0x48] sm:$0xff]
  %v49 = vld [vmem:[%s1 + $0x50] sm:$0xff]
  %v50 = vld [vmem:[%s1 + $0x58] sm:$0xff]
  %v51 = vld [vmem:[%s1 + $0x60] sm:$0xff]
  %v52 = vld [vmem:[%s1 + $0x68] sm:$0xff]
  %v53 = vld [vmem:[%s1 + $0x70] sm:$0xff]
  %v54 = vld [vmem:[%s1 + $0x78] sm:$0xff]
  %v55 = vld [vmem:[%s2] sm:$0x1]
  %v57 = vlaneseq
  %v58 = vshrl.u32 %v57, 7
  %v59 = vsub.s32 0, %v58
  %v60 = vrot.slane %v55, %v59
  %62 = vmatprep.subr.mxu0 0.0
  %63 = vmatpush1.msra.mxu0 %v39
  %64 = vmatprep.subr.mxu0 0.0
  %65 = vmatpush1.msra.mxu0 %v40
  %66 = vmatprep.subr.mxu0 0.0
  %67 = vmatpush1.msra.mxu0 %v41
  %68 = vmatprep.subr.mxu0 0.0
  %69 = vmatpush1.msra.mxu0 %v42
  %70 = vmatprep.subr.mxu0 0.0
  %71 = vmatpush1.msra.mxu0 %v43
  %72 = vmatprep.subr.mxu0 0.0
  %73 = vmatpush1.msra.mxu0 %v44
  %74 = vmatprep.subr.mxu0 0.0
  %75 = vmatpush1.msra.mxu0 %v45
  %76 = vmatprep.subr.mxu0 0.0
  %77 = vmatpush1.msra.mxu0 %v46
  %78 = vmatprep.subr.mxu0 0.0
  %79 = vmatpush1.msra.mxu0 %v47
  %80 = vmatprep.subr.mxu0 0.0
  %81 = vmatpush1.msra.mxu0 %v48
  %82 = vmatprep.subr.mxu0 0.0
  %83 = vmatpush1.msra.mxu0 %v49
  %84 = vmatprep.subr.mxu0 0.0
  %85 = vmatpush1.msra.mxu0 %v50
  %86 = vmatprep.subr.mxu0 0.0
  %87 = vmatpush1.msra.mxu0 %v51
  %88 = vmatprep.subr.mxu0 0.0
  %89 = vmatpush1.msra.mxu0 %v52
  %90 = vmatprep.subr.mxu0 0.0
  %91 = vmatpush1.msra.mxu0 %v53
  %92 = vmatprep.subr.mxu0 0.0
  %93 = vmatpush1.msra.mxu0 %v54
  %94 = vmatprep.subr.mxu0 0.0
  %95 = vmatpush1.msra.mxu0 0.0
  %96 = vmatprep.subr.mxu0 0.0
  %97 = vmatpush1.msra.mxu0 0.0
  %98 = vmatprep.subr.mxu0 0.0
  %99 = vmatpush1.msra.mxu0 0.0
  %100 = vmatprep.subr.mxu0 0.0
  %101 = vmatpush1.msra.mxu0 0.0
  %102 = vmatprep.subr.mxu0 0.0
  %103 = vmatpush1.msra.mxu0 0.0
  %104 = vmatprep.subr.mxu0 0.0
  %105 = vmatpush1.msra.mxu0 0.0
  %106 = vmatprep.subr.mxu0 0.0
  %107 = vmatpush1.msra.mxu0 0.0
  %108 = vmatprep.subr.mxu0 0.0
  %109 = vmatpush1.msra.mxu0 0.0
  %110 = vmatprep.subr.mxu0 0.0
  %111 = vmatpush1.msra.mxu0 0.0
  %112 = vmatprep.subr.mxu0 0.0
  %113 = vmatpush1.msra.mxu0 0.0
  %114 = vmatprep.subr.mxu0 0.0
  %115 = vmatpush1.msra.mxu0 0.0
  %116 = vmatprep.subr.mxu0 0.0
  %117 = vmatpush1.msra.mxu0 0.0
  %118 = vmatprep.subr.mxu0 0.0
  %119 = vmatpush1.msra.mxu0 0.0
  %120 = vmatprep.subr.mxu0 0.0
  %121 = vmatpush1.msra.mxu0 0.0
  %122 = vmatprep.subr.mxu0 0.0
  %123 = vmatpush1.msra.mxu0 0.0
  %124 = vmatprep.subr.mxu0 0.0
  %125 = vmatpush1.msra.mxu0 0.0
  %126 = vmatprep.mubr.f32.mxu0 0.0
  %127 = vmatmul.mubr.f32.gmra.mrb[0].mxu0 %v35
  %v128 = vpop.f32.mrb[0].mxu0
  %v129 = vadd.f32 %v60, %v128
  %v130 = vpop.f32.mrb[0].mxu0
  %131 = vmatprep.mubr.f32.mxu0 0.0
  %132 = vmatmul.mubr.f32.gmra.mrb[0].mxu0 %v36
  %v133 = vpop.f32.mrb[0].mxu0
  %v134 = vadd.f32 %v60, %v133
  %v135 = vpop.f32.mrb[0].mxu0
  %136 = vmatprep.mubr.f32.mxu0 0.0
  %137 = vmatmul.mubr.f32.gmra.mrb[0].mxu0 %v37
  %v138 = vpop.f32.mrb[0].mxu0
  %v139 = vadd.f32 %v60, %v138
  %v140 = vpop.f32.mrb[0].mxu0
  %141 = vmatprep.mubr.f32.mxu0 0.0
  %142 = vmatmul.mubr.f32.gmra.mrb[0].mxu0 %v38
  %v143 = vpop.f32.mrb[0].mxu0
  %v144 = vadd.f32 %v60, %v143
  %v145 = vpop.f32.mrb[0].mxu0
  %146 = vdwg.mxu0
  %vm147 = vcmp.gt.f32.partialorder %v129, 0.0
  %vm148 = vcmp.gt.f32.partialorder %v134, 0.0
  %vm149 = vcmp.gt.f32.partialorder %v139, 0.0
  %vm150 = vcmp.gt.f32.partialorder %v144, 0.0
  %v151 = vmul.f32 %v129, 0.2
  %v152 = vmul.f32 %v134, 0.2
  %v153 = vmul.f32 %v139, 0.2
  %v154 = vmul.f32 %v144, 0.2
  %v155 = vsel %vm147, %v129, %v151
  %v156 = vsel %vm148, %v134, %v152
  %v157 = vsel %vm149, %v139, %v153
  %v158 = vsel %vm150, %v144, %v154
  %v159 = vadd.f32 %v155, %v157
  %v160 = vadd.f32 %v156, %v158
  %v161 = vrcp.pop 2.0
  %v162 = vmul.f32 %v159, %v161
  %v163 = vmul.f32 %v160, %v161
  %v164 = vsub.f32 %v155, %v162
  %v165 = vsub.f32 %v156, %v163
  %v166 = vsub.f32 %v157, %v162
  %v167 = vsub.f32 %v158, %v163
  %v168 = vmul.f32 %v164, %v164
  %v169 = vmul.f32 %v165, %v165
  %v170 = vmul.f32 %v166, %v166
  %v171 = vmul.f32 %v167, %v167
  %v172 = vadd.f32 %v168, %v170
  %v173 = vadd.f32 %v169, %v171
  %v174 = vmul.f32 %v172, %v161
  %v175 = vmul.f32 %v173, %v161
  %v176 = vadd.f32 %v174, 1e-08
  %v177 = vadd.f32 %v175, 1e-08
  %v178 = vrsqrt.pop %v176
  %v179 = vmul.f32 %v176, %v178
  %vm180 = vcmp.eq.f32.partialorder %v176, inf
  %v181 = vsel %vm180, %v176, %v179
  %vm182 = vcmp.eq.f32.partialorder %v176, 0.0
  %v183 = vand.u32 %v176, 2147483648
  %v184 = vsel %vm182, %v183, %v181
  %v185 = vrsqrt.pop %v177
  %v186 = vmul.f32 %v177, %v185
  %vm187 = vcmp.eq.f32.partialorder %v177, inf
  %v188 = vsel %vm187, %v177, %v186
  %vm189 = vcmp.eq.f32.partialorder %v177, 0.0
  %v190 = vand.u32 %v177, 2147483648
  %v191 = vsel %vm189, %v190, %v188
  %v192 = vlaneseq
  %v193 = vand.u32 %v192, 127
  %vm194 = vcmp.lt.s32.totalorder %v193, 32
  %v195 = vsel %vm194, %v184, 0.0
  %v196 = vsel %vm194, %v191, 0.0
  %197 = vadd.xlane.f32.xlu0 %v195
  %v198 = vpop.xlane.xlu0 %197
  %199 = vadd.xlane.f32.xlu0 %v196
  %v200 = vpop.xlane.xlu0 %199
  %v201 = vmul.f32 %v198, 0.03125
  %v202 = vmul.f32 %v200, 0.03125
  %vm203 = vcmp.eq.s32.totalorder %v193, 32
  %v204 = vsel %vm203, %v201, %v155
  %v205 = vsel %vm203, %v202, %v156
  %v206 = vsel %vm203, %v201, %v157
  %v207 = vsel %vm203, %v202, %v158
  %v208 = vld [vmem:[%s3] sm:$0xff]
  %v209 = vld [vmem:[%s3 + $0x8] sm:$0xff]
  %v210 = vld [vmem:[%s3 + $0x10] sm:$0xff]
  %v211 = vld [vmem:[%s3 + $0x18] sm:$0xff]
  %vm212 = vcmask 261120
  %v214 = vsel %vm212, %v208, 0
  %v217 = vsel %vm212, %v209, 0
  %v220 = vsel %vm212, %v210, 0
  %v223 = vsel %vm212, %v211, 0
  %225 = vmatprep.subr.mxu0 0.0
  %226 = vmatpush1.msra.mxu0 %v204
  %227 = vmatprep.subr.mxu0 0.0
  %228 = vmatpush1.msra.mxu0 %v205
  %229 = vmatprep.subr.mxu0 0.0
  %230 = vmatpush1.msra.mxu0 %v206
  %231 = vmatprep.subr.mxu0 0.0
  %232 = vmatpush1.msra.mxu0 %v207
  %233 = vmatprep.subr.mxu0 0.0
  %234 = vmatpush1.msra.mxu0 0.0
  %235 = vmatprep.subr.mxu0 0.0
  %236 = vmatpush1.msra.mxu0 0.0
  %237 = vmatprep.subr.mxu0 0.0
  %238 = vmatpush1.msra.mxu0 0.0
  %239 = vmatprep.subr.mxu0 0.0
  %240 = vmatpush1.msra.mxu0 0.0
  %241 = vmatprep.subr.mxu0 0.0
  %242 = vmatpush1.msra.mxu0 0.0
  %243 = vmatprep.subr.mxu0 0.0
  %244 = vmatpush1.msra.mxu0 0.0
  %245 = vmatprep.subr.mxu0 0.0
  %246 = vmatpush1.msra.mxu0 0.0
  %247 = vmatprep.subr.mxu0 0.0
  %248 = vmatpush1.msra.mxu0 0.0
  %249 = vmatprep.subr.mxu0 0.0
  %250 = vmatpush1.msra.mxu0 0.0
  %251 = vmatprep.subr.mxu0 0.0
  %252 = vmatpush1.msra.mxu0 0.0
  %253 = vmatprep.subr.mxu0 0.0
  %254 = vmatpush1.msra.mxu0 0.0
  %255 = vmatprep.subr.mxu0 0.0
  %256 = vmatpush1.msra.mxu0 0.0
  %257 = vmatprep.subr.mxu0 0.0
  %258 = vmatpush1.msra.mxu0 0.0
  %259 = vmatprep.subr.mxu0 0.0
  %260 = vmatpush1.msra.mxu0 0.0
  %261 = vmatprep.subr.mxu0 0.0
  %262 = vmatpush1.msra.mxu0 0.0
  %263 = vmatprep.subr.mxu0 0.0
  %264 = vmatpush1.msra.mxu0 0.0
  %265 = vmatprep.subr.mxu0 0.0
  %266 = vmatpush1.msra.mxu0 0.0
  %267 = vmatprep.subr.mxu0 0.0
  %268 = vmatpush1.msra.mxu0 0.0
  %269 = vmatprep.subr.mxu0 0.0
  %270 = vmatpush1.msra.mxu0 0.0
  %271 = vmatprep.subr.mxu0 0.0
  %272 = vmatpush1.msra.mxu0 0.0
  %273 = vmatprep.subr.mxu0 0.0
  %274 = vmatpush1.msra.mxu0 0.0
  %275 = vmatprep.subr.mxu0 0.0
  %276 = vmatpush1.msra.mxu0 0.0
  %277 = vmatprep.subr.mxu0 0.0
  %278 = vmatpush1.msra.mxu0 0.0
  %279 = vmatprep.subr.mxu0 0.0
  %280 = vmatpush1.msra.mxu0 0.0
  %281 = vmatprep.subr.mxu0 0.0
  %282 = vmatpush1.msra.mxu0 0.0
  %283 = vmatprep.subr.mxu0 0.0
  %284 = vmatpush1.msra.mxu0 0.0
  %285 = vmatprep.subr.mxu0 0.0
  %286 = vmatpush1.msra.mxu0 0.0
  %287 = vmatprep.subr.mxu0 0.0
  %288 = vmatpush1.msra.mxu0 0.0
  %289 = vmatprep.mubr.f32.mxu0 0.0
  %290 = vmatmul.mubr.f32.gmra.mrb[0].mxu0 %v214
  %v291 = vpop.f32.mrb[0].mxu0
  %v292 = vadd.f32 0.0, %v291
  %v293 = vpop.f32.mrb[0].mxu0
  %294 = vmatprep.mubr.f32.mxu0 0.0
  %295 = vmatmul.mubr.f32.gmra.mrb[0].mxu0 %v217
  %v296 = vpop.f32.mrb[0].mxu0
  %v297 = vadd.f32 0.0, %v296
  %v298 = vpop.f32.mrb[0].mxu0
  %299 = vmatprep.mubr.f32.mxu0 0.0
  %300 = vmatmul.mubr.f32.gmra.mrb[0].mxu0 %v220
  %v301 = vpop.f32.mrb[0].mxu0
  %v302 = vadd.f32 0.0, %v301
  %v303 = vpop.f32.mrb[0].mxu0
  %304 = vmatprep.mubr.f32.mxu0 0.0
  %305 = vmatmul.mubr.f32.gmra.mrb[0].mxu0 %v223
  %v306 = vpop.f32.mrb[0].mxu0
  %v307 = vadd.f32 0.0, %v306
  %v308 = vpop.f32.mrb[0].mxu0
  %309 = vdwg.mxu0
  %v310 = vld [vmem:[%s4] sm:$0xff]
  %v311 = vld [vmem:[%s4 + $0x8] sm:$0xff]
  %v312 = vld [vmem:[%s4 + $0x10] sm:$0xff]
  %v313 = vld [vmem:[%s4 + $0x18] sm:$0xff]
  %v314 = vld [vmem:[%s4 + $0x20] sm:$0xff]
  %v315 = vld [vmem:[%s4 + $0x28] sm:$0xff]
  %v316 = vld [vmem:[%s4 + $0x30] sm:$0xff]
  %v317 = vld [vmem:[%s4 + $0x38] sm:$0xff]
  %v318 = vld [vmem:[%s4 + $0x40] sm:$0xff]
  %v319 = vld [vmem:[%s4 + $0x48] sm:$0xff]
  %v320 = vld [vmem:[%s4 + $0x50] sm:$0xff]
  %v321 = vld [vmem:[%s4 + $0x58] sm:$0xff]
  %v322 = vld [vmem:[%s4 + $0x60] sm:$0xff]
  %v323 = vld [vmem:[%s4 + $0x68] sm:$0xff]
  %v324 = vld [vmem:[%s4 + $0x70] sm:$0xff]
  %v325 = vld [vmem:[%s4 + $0x78] sm:$0xff]
  %s326 = scalar_lea.vmem %s3, 32
  %v327 = vld [vmem:[%s326] sm:$0xff]
  %v328 = vld [vmem:[%s326 + $0x8] sm:$0xff]
  %v329 = vld [vmem:[%s326 + $0x10] sm:$0xff]
  %v330 = vld [vmem:[%s326 + $0x18] sm:$0xff]
  %v332 = vsel %vm212, %v327, 0
  %v335 = vsel %vm212, %v328, 0
  %v338 = vsel %vm212, %v329, 0
  %v341 = vsel %vm212, %v330, 0
  %343 = vmatprep.subr.mxu0 0.0
  %344 = vmatpush1.msra.mxu0 %v204
  %345 = vmatprep.subr.mxu0 0.0
  %346 = vmatpush1.msra.mxu0 %v205
  %347 = vmatprep.subr.mxu0 0.0
  %348 = vmatpush1.msra.mxu0 %v206
  %349 = vmatprep.subr.mxu0 0.0
  %350 = vmatpush1.msra.mxu0 %v207
  %351 = vmatprep.subr.mxu0 0.0
  %352 = vmatpush1.msra.mxu0 0.0
  %353 = vmatprep.subr.mxu0 0.0
  %354 = vmatpush1.msra.mxu0 0.0
  %355 = vmatprep.subr.mxu0 0.0
  %356 = vmatpush1.msra.mxu0 0.0
  %357 = vmatprep.subr.mxu0 0.0
  %358 = vmatpush1.msra.mxu0 0.0
  %359 = vmatprep.subr.mxu0 0.0
  %360 = vmatpush1.msra.mxu0 0.0
  %361 = vmatprep.subr.mxu0 0.0
  %362 = vmatpush1.msra.mxu0 0.0
  %363 = vmatprep.subr.mxu0 0.0
  %364 = vmatpush1.msra.mxu0 0.0
  %365 = vmatprep.subr.mxu0 0.0
  %366 = vmatpush1.msra.mxu0 0.0
  %367 = vmatprep.subr.mxu0 0.0
  %368 = vmatpush1.msra.mxu0 0.0
  %369 = vmatprep.subr.mxu0 0.0
  %370 = vmatpush1.msra.mxu0 0.0
  %371 = vmatprep.subr.mxu0 0.0
  %372 = vmatpush1.msra.mxu0 0.0
  %373 = vmatprep.subr.mxu0 0.0
  %374 = vmatpush1.msra.mxu0 0.0
  %375 = vmatprep.subr.mxu0 0.0
  %376 = vmatpush1.msra.mxu0 0.0
  %377 = vmatprep.subr.mxu0 0.0
  %378 = vmatpush1.msra.mxu0 0.0
  %379 = vmatprep.subr.mxu0 0.0
  %380 = vmatpush1.msra.mxu0 0.0
  %381 = vmatprep.subr.mxu0 0.0
  %382 = vmatpush1.msra.mxu0 0.0
  %383 = vmatprep.subr.mxu0 0.0
  %384 = vmatpush1.msra.mxu0 0.0
  %385 = vmatprep.subr.mxu0 0.0
  %386 = vmatpush1.msra.mxu0 0.0
  %387 = vmatprep.subr.mxu0 0.0
  %388 = vmatpush1.msra.mxu0 0.0
  %389 = vmatprep.subr.mxu0 0.0
  %390 = vmatpush1.msra.mxu0 0.0
  %391 = vmatprep.subr.mxu0 0.0
  %392 = vmatpush1.msra.mxu0 0.0
  %393 = vmatprep.subr.mxu0 0.0
  %394 = vmatpush1.msra.mxu0 0.0
  %395 = vmatprep.subr.mxu0 0.0
  %396 = vmatpush1.msra.mxu0 0.0
  %397 = vmatprep.subr.mxu0 0.0
  %398 = vmatpush1.msra.mxu0 0.0
  %399 = vmatprep.subr.mxu0 0.0
  %400 = vmatpush1.msra.mxu0 0.0
  %401 = vmatprep.subr.mxu0 0.0
  %402 = vmatpush1.msra.mxu0 0.0
  %403 = vmatprep.subr.mxu0 0.0
  %404 = vmatpush1.msra.mxu0 0.0
  %405 = vmatprep.subr.mxu0 0.0
  %406 = vmatpush1.msra.mxu0 0.0
  %407 = vmatprep.mubr.f32.mxu0 0.0
  %408 = vmatmul.mubr.f32.gmra.mrb[0].mxu0 %v332
  %v409 = vpop.f32.mrb[0].mxu0
  %v410 = vadd.f32 0.0, %v409
  %v411 = vpop.f32.mrb[0].mxu0
  %412 = vmatprep.mubr.f32.mxu0 0.0
  %413 = vmatmul.mubr.f32.gmra.mrb[0].mxu0 %v335
  %v414 = vpop.f32.mrb[0].mxu0
  %v415 = vadd.f32 0.0, %v414
  %v416 = vpop.f32.mrb[0].mxu0
  %417 = vmatprep.mubr.f32.mxu0 0.0
  %418 = vmatmul.mubr.f32.gmra.mrb[0].mxu0 %v338
  %v419 = vpop.f32.mrb[0].mxu0
  %v420 = vadd.f32 0.0, %v419
  %v421 = vpop.f32.mrb[0].mxu0
  %422 = vmatprep.mubr.f32.mxu0 0.0
  %423 = vmatmul.mubr.f32.gmra.mrb[0].mxu0 %v341
  %v424 = vpop.f32.mrb[0].mxu0
  %v425 = vadd.f32 0.0, %v424
  %v426 = vpop.f32.mrb[0].mxu0
  %427 = vdwg.mxu0
  %s428 = scalar_lea.vmem %s4, 128
  %v429 = vld [vmem:[%s428] sm:$0xff]
  %v430 = vld [vmem:[%s428 + $0x8] sm:$0xff]
  %v431 = vld [vmem:[%s428 + $0x10] sm:$0xff]
  %v432 = vld [vmem:[%s428 + $0x18] sm:$0xff]
  %v433 = vld [vmem:[%s428 + $0x20] sm:$0xff]
  %v434 = vld [vmem:[%s428 + $0x28] sm:$0xff]
  %v435 = vld [vmem:[%s428 + $0x30] sm:$0xff]
  %v436 = vld [vmem:[%s428 + $0x38] sm:$0xff]
  %v437 = vld [vmem:[%s428 + $0x40] sm:$0xff]
  %v438 = vld [vmem:[%s428 + $0x48] sm:$0xff]
  %v439 = vld [vmem:[%s428 + $0x50] sm:$0xff]
  %v440 = vld [vmem:[%s428 + $0x58] sm:$0xff]
  %v441 = vld [vmem:[%s428 + $0x60] sm:$0xff]
  %v442 = vld [vmem:[%s428 + $0x68] sm:$0xff]
  %v443 = vld [vmem:[%s428 + $0x70] sm:$0xff]
  %v444 = vld [vmem:[%s428 + $0x78] sm:$0xff]
  %445 = vmatprep.subr.mxu0 0.0
  %446 = vmatpush1.msra.mxu0 %v429
  %447 = vmatprep.subr.mxu0 0.0
  %448 = vmatpush1.msra.mxu0 %v430
  %449 = vmatprep.subr.mxu0 0.0
  %450 = vmatpush1.msra.mxu0 %v431
  %451 = vmatprep.subr.mxu0 0.0
  %452 = vmatpush1.msra.mxu0 %v432
  %453 = vmatprep.subr.mxu0 0.0
  %454 = vmatpush1.msra.mxu0 %v433
  %455 = vmatprep.subr.mxu0 0.0
  %456 = vmatpush1.msra.mxu0 %v434
  %457 = vmatprep.subr.mxu0 0.0
  %458 = vmatpush1.msra.mxu0 %v435
  %459 = vmatprep.subr.mxu0 0.0
  %460 = vmatpush1.msra.mxu0 %v436
  %461 = vmatprep.subr.mxu0 0.0
  %462 = vmatpush1.msra.mxu0 %v437
  %463 = vmatprep.subr.mxu0 0.0
  %464 = vmatpush1.msra.mxu0 %v438
  %465 = vmatprep.subr.mxu0 0.0
  %466 = vmatpush1.msra.mxu0 %v439
  %467 = vmatprep.subr.mxu0 0.0
  %468 = vmatpush1.msra.mxu0 %v440
  %469 = vmatprep.subr.mxu0 0.0
  %470 = vmatpush1.msra.mxu0 %v441
  %471 = vmatprep.subr.mxu0 0.0
  %472 = vmatpush1.msra.mxu0 %v442
  %473 = vmatprep.subr.mxu0 0.0
  %474 = vmatpush1.msra.mxu0 %v443
  %475 = vmatprep.subr.mxu0 0.0
  %476 = vmatpush1.msra.mxu0 %v444
  %477 = vmatprep.subr.mxu0 0.0
  %478 = vmatpush1.msra.mxu0 0.0
  %479 = vmatprep.subr.mxu0 0.0
  %480 = vmatpush1.msra.mxu0 0.0
  %481 = vmatprep.subr.mxu0 0.0
  %482 = vmatpush1.msra.mxu0 0.0
  %483 = vmatprep.subr.mxu0 0.0
  %484 = vmatpush1.msra.mxu0 0.0
  %485 = vmatprep.subr.mxu0 0.0
  %486 = vmatpush1.msra.mxu0 0.0
  %487 = vmatprep.subr.mxu0 0.0
  %488 = vmatpush1.msra.mxu0 0.0
  %489 = vmatprep.subr.mxu0 0.0
  %490 = vmatpush1.msra.mxu0 0.0
  %491 = vmatprep.subr.mxu0 0.0
  %492 = vmatpush1.msra.mxu0 0.0
  %493 = vmatprep.subr.mxu0 0.0
  %494 = vmatpush1.msra.mxu0 0.0
  %495 = vmatprep.subr.mxu0 0.0
  %496 = vmatpush1.msra.mxu0 0.0
  %497 = vmatprep.subr.mxu0 0.0
  %498 = vmatpush1.msra.mxu0 0.0
  %499 = vmatprep.subr.mxu0 0.0
  %500 = vmatpush1.msra.mxu0 0.0
  %501 = vmatprep.subr.mxu0 0.0
  %502 = vmatpush1.msra.mxu0 0.0
  %503 = vmatprep.subr.mxu0 0.0
  %504 = vmatpush1.msra.mxu0 0.0
  %505 = vmatprep.subr.mxu0 0.0
  %506 = vmatpush1.msra.mxu0 0.0
  %507 = vmatprep.subr.mxu0 0.0
  %508 = vmatpush1.msra.mxu0 0.0
  %509 = vmatprep.mubr.f32.mxu0 0.0
  %510 = vmatmul.mubr.f32.gmra.mrb[0].mxu0 %v410
  %v511 = vpop.f32.mrb[0].mxu0
  %v512 = vadd.f32 0.0, %v511
  %v513 = vpop.f32.mrb[0].mxu0
  %514 = vmatprep.mubr.f32.mxu0 0.0
  %515 = vmatmul.mubr.f32.gmra.mrb[0].mxu0 %v415
  %v516 = vpop.f32.mrb[0].mxu0
  %v517 = vadd.f32 0.0, %v516
  %v518 = vpop.f32.mrb[0].mxu0
  %519 = vmatprep.mubr.f32.mxu0 0.0
  %520 = vmatmul.mubr.f32.gmra.mrb[0].mxu0 %v420
  %v521 = vpop.f32.mrb[0].mxu0
  %v522 = vadd.f32 0.0, %v521
  %v523 = vpop.f32.mrb[0].mxu0
  %524 = vmatprep.mubr.f32.mxu0 0.0
  %525 = vmatmul.mubr.f32.gmra.mrb[0].mxu0 %v425
  %v526 = vpop.f32.mrb[0].mxu0
  %v527 = vadd.f32 0.0, %v526
  %v528 = vpop.f32.mrb[0].mxu0
  %529 = vdwg.mxu0
  %530 = vmatprep.subr.mxu0 0.0
  %531 = vmatpush1.msra.mxu0 %v310
  %532 = vmatprep.subr.mxu0 0.0
  %533 = vmatpush1.msra.mxu0 %v311
  %534 = vmatprep.subr.mxu0 0.0
  %535 = vmatpush1.msra.mxu0 %v312
  %536 = vmatprep.subr.mxu0 0.0
  %537 = vmatpush1.msra.mxu0 %v313
  %538 = vmatprep.subr.mxu0 0.0
  %539 = vmatpush1.msra.mxu0 %v314
  %540 = vmatprep.subr.mxu0 0.0
  %541 = vmatpush1.msra.mxu0 %v315
  %542 = vmatprep.subr.mxu0 0.0
  %543 = vmatpush1.msra.mxu0 %v316
  %544 = vmatprep.subr.mxu0 0.0
  %545 = vmatpush1.msra.mxu0 %v317
  %546 = vmatprep.subr.mxu0 0.0
  %547 = vmatpush1.msra.mxu0 %v318
  %548 = vmatprep.subr.mxu0 0.0
  %549 = vmatpush1.msra.mxu0 %v319
  %550 = vmatprep.subr.mxu0 0.0
  %551 = vmatpush1.msra.mxu0 %v320
  %552 = vmatprep.subr.mxu0 0.0
  %553 = vmatpush1.msra.mxu0 %v321
  %554 = vmatprep.subr.mxu0 0.0
  %555 = vmatpush1.msra.mxu0 %v322
  %556 = vmatprep.subr.mxu0 0.0
  %557 = vmatpush1.msra.mxu0 %v323
  %558 = vmatprep.subr.mxu0 0.0
  %559 = vmatpush1.msra.mxu0 %v324
  %560 = vmatprep.subr.mxu0 0.0
  %561 = vmatpush1.msra.mxu0 %v325
  %562 = vmatprep.subr.mxu0 0.0
  %563 = vmatpush1.msra.mxu0 0.0
  %564 = vmatprep.subr.mxu0 0.0
  %565 = vmatpush1.msra.mxu0 0.0
  %566 = vmatprep.subr.mxu0 0.0
  %567 = vmatpush1.msra.mxu0 0.0
  %568 = vmatprep.subr.mxu0 0.0
  %569 = vmatpush1.msra.mxu0 0.0
  %570 = vmatprep.subr.mxu0 0.0
  %571 = vmatpush1.msra.mxu0 0.0
  %572 = vmatprep.subr.mxu0 0.0
  %573 = vmatpush1.msra.mxu0 0.0
  %574 = vmatprep.subr.mxu0 0.0
  %575 = vmatpush1.msra.mxu0 0.0
  %576 = vmatprep.subr.mxu0 0.0
  %577 = vmatpush1.msra.mxu0 0.0
  %578 = vmatprep.subr.mxu0 0.0
  %579 = vmatpush1.msra.mxu0 0.0
  %580 = vmatprep.subr.mxu0 0.0
  %581 = vmatpush1.msra.mxu0 0.0
  %582 = vmatprep.subr.mxu0 0.0
  %583 = vmatpush1.msra.mxu0 0.0
  %584 = vmatprep.subr.mxu0 0.0
  %585 = vmatpush1.msra.mxu0 0.0
  %586 = vmatprep.subr.mxu0 0.0
  %587 = vmatpush1.msra.mxu0 0.0
  %588 = vmatprep.subr.mxu0 0.0
  %589 = vmatpush1.msra.mxu0 0.0
  %590 = vmatprep.subr.mxu0 0.0
  %591 = vmatpush1.msra.mxu0 0.0
  %592 = vmatprep.subr.mxu0 0.0
  %593 = vmatpush1.msra.mxu0 0.0
  %594 = vmatprep.mubr.f32.mxu0 0.0
  %595 = vmatmul.mubr.f32.gmra.mrb[0].mxu0 %v292
  %v596 = vpop.f32.mrb[0].mxu0
  %v597 = vadd.f32 %v512, %v596
  %v598 = vpop.f32.mrb[0].mxu0
  %599 = vmatprep.mubr.f32.mxu0 0.0
  %600 = vmatmul.mubr.f32.gmra.mrb[0].mxu0 %v297
  %v601 = vpop.f32.mrb[0].mxu0
  %v602 = vadd.f32 %v517, %v601
  %v603 = vpop.f32.mrb[0].mxu0
  %604 = vmatprep.mubr.f32.mxu0 0.0
  %605 = vmatmul.mubr.f32.gmra.mrb[0].mxu0 %v302
  %v606 = vpop.f32.mrb[0].mxu0
  %v607 = vadd.f32 %v522, %v606
  %v608 = vpop.f32.mrb[0].mxu0
  %609 = vmatprep.mubr.f32.mxu0 0.0
  %610 = vmatmul.mubr.f32.gmra.mrb[0].mxu0 %v307
  %v611 = vpop.f32.mrb[0].mxu0
  %v612 = vadd.f32 %v527, %v611
  %v613 = vpop.f32.mrb[0].mxu0
  %614 = vdwg.mxu0
  %s615 = scalar_lea.vmem %s3, 64
  %v616 = vld [vmem:[%s615] sm:$0xff]
  %v617 = vld [vmem:[%s615 + $0x8] sm:$0xff]
  %v618 = vld [vmem:[%s615 + $0x10] sm:$0xff]
  %v619 = vld [vmem:[%s615 + $0x18] sm:$0xff]
  %v621 = vsel %vm212, %v616, 0
  %v624 = vsel %vm212, %v617, 0
  %v627 = vsel %vm212, %v618, 0
  %v630 = vsel %vm212, %v619, 0
  %632 = vmatprep.subr.mxu0 0.0
  %633 = vmatpush1.msra.mxu0 %v204
  %634 = vmatprep.subr.mxu0 0.0
  %635 = vmatpush1.msra.mxu0 %v205
  %636 = vmatprep.subr.mxu0 0.0
  %637 = vmatpush1.msra.mxu0 %v206
  %638 = vmatprep.subr.mxu0 0.0
  %639 = vmatpush1.msra.mxu0 %v207
  %640 = vmatprep.subr.mxu0 0.0
  %641 = vmatpush1.msra.mxu0 0.0
  %642 = vmatprep.subr.mxu0 0.0
  %643 = vmatpush1.msra.mxu0 0.0
  %644 = vmatprep.subr.mxu0 0.0
  %645 = vmatpush1.msra.mxu0 0.0
  %646 = vmatprep.subr.mxu0 0.0
  %647 = vmatpush1.msra.mxu0 0.0
  %648 = vmatprep.subr.mxu0 0.0
  %649 = vmatpush1.msra.mxu0 0.0
  %650 = vmatprep.subr.mxu0 0.0
  %651 = vmatpush1.msra.mxu0 0.0
  %652 = vmatprep.subr.mxu0 0.0
  %653 = vmatpush1.msra.mxu0 0.0
  %654 = vmatprep.subr.mxu0 0.0
  %655 = vmatpush1.msra.mxu0 0.0
  %656 = vmatprep.subr.mxu0 0.0
  %657 = vmatpush1.msra.mxu0 0.0
  %658 = vmatprep.subr.mxu0 0.0
  %659 = vmatpush1.msra.mxu0 0.0
  %660 = vmatprep.subr.mxu0 0.0
  %661 = vmatpush1.msra.mxu0 0.0
  %662 = vmatprep.subr.mxu0 0.0
  %663 = vmatpush1.msra.mxu0 0.0
  %664 = vmatprep.subr.mxu0 0.0
  %665 = vmatpush1.msra.mxu0 0.0
  %666 = vmatprep.subr.mxu0 0.0
  %667 = vmatpush1.msra.mxu0 0.0
  %668 = vmatprep.subr.mxu0 0.0
  %669 = vmatpush1.msra.mxu0 0.0
  %670 = vmatprep.subr.mxu0 0.0
  %671 = vmatpush1.msra.mxu0 0.0
  %672 = vmatprep.subr.mxu0 0.0
  %673 = vmatpush1.msra.mxu0 0.0
  %674 = vmatprep.subr.mxu0 0.0
  %675 = vmatpush1.msra.mxu0 0.0
  %676 = vmatprep.subr.mxu0 0.0
  %677 = vmatpush1.msra.mxu0 0.0
  %678 = vmatprep.subr.mxu0 0.0
  %679 = vmatpush1.msra.mxu0 0.0
  %680 = vmatprep.subr.mxu0 0.0
  %681 = vmatpush1.msra.mxu0 0.0
  %682 = vmatprep.subr.mxu0 0.0
  %683 = vmatpush1.msra.mxu0 0.0
  %684 = vmatprep.subr.mxu0 0.0
  %685 = vmatpush1.msra.mxu0 0.0
  %686 = vmatprep.subr.mxu0 0.0
  %687 = vmatpush1.msra.mxu0 0.0
  %688 = vmatprep.subr.mxu0 0.0
  %689 = vmatpush1.msra.mxu0 0.0
  %690 = vmatprep.subr.mxu0 0.0
  %691 = vmatpush1.msra.mxu0 0.0
  %692 = vmatprep.subr.mxu0 0.0
  %693 = vmatpush1.msra.mxu0 0.0
  %694 = vmatprep.subr.mxu0 0.0
  %695 = vmatpush1.msra.mxu0 0.0
  %696 = vmatprep.mubr.f32.mxu0 0.0
  %697 = vmatmul.mubr.f32.gmra.mrb[0].mxu0 %v621
  %v698 = vpop.f32.mrb[0].mxu0
  %v699 = vadd.f32 0.0, %v698
  %v700 = vpop.f32.mrb[0].mxu0
  %701 = vmatprep.mubr.f32.mxu0 0.0
  %702 = vmatmul.mubr.f32.gmra.mrb[0].mxu0 %v624
  %v703 = vpop.f32.mrb[0].mxu0
  %v704 = vadd.f32 0.0, %v703
  %v705 = vpop.f32.mrb[0].mxu0
  %706 = vmatprep.mubr.f32.mxu0 0.0
  %707 = vmatmul.mubr.f32.gmra.mrb[0].mxu0 %v627
  %v708 = vpop.f32.mrb[0].mxu0
  %v709 = vadd.f32 0.0, %v708
  %v710 = vpop.f32.mrb[0].mxu0
  %711 = vmatprep.mubr.f32.mxu0 0.0
  %712 = vmatmul.mubr.f32.gmra.mrb[0].mxu0 %v630
  %v713 = vpop.f32.mrb[0].mxu0
  %v714 = vadd.f32 0.0, %v713
  %v715 = vpop.f32.mrb[0].mxu0
  %716 = vdwg.mxu0
  %s717 = scalar_lea.vmem %s4, 256
  %v718 = vld [vmem:[%s717] sm:$0xff]
  %v719 = vld [vmem:[%s717 + $0x8] sm:$0xff]
  %v720 = vld [vmem:[%s717 + $0x10] sm:$0xff]
  %v721 = vld [vmem:[%s717 + $0x18] sm:$0xff]
  %v722 = vld [vmem:[%s717 + $0x20] sm:$0xff]
  %v723 = vld [vmem:[%s717 + $0x28] sm:$0xff]
  %v724 = vld [vmem:[%s717 + $0x30] sm:$0xff]
  %v725 = vld [vmem:[%s717 + $0x38] sm:$0xff]
  %v726 = vld [vmem:[%s717 + $0x40] sm:$0xff]
  %v727 = vld [vmem:[%s717 + $0x48] sm:$0xff]
  %v728 = vld [vmem:[%s717 + $0x50] sm:$0xff]
  %v729 = vld [vmem:[%s717 + $0x58] sm:$0xff]
  %v730 = vld [vmem:[%s717 + $0x60] sm:$0xff]
  %v731 = vld [vmem:[%s717 + $0x68] sm:$0xff]
  %v732 = vld [vmem:[%s717 + $0x70] sm:$0xff]
  %v733 = vld [vmem:[%s717 + $0x78] sm:$0xff]
  %734 = vmatprep.subr.mxu0 0.0
  %735 = vmatpush1.msra.mxu0 %v718
  %736 = vmatprep.subr.mxu0 0.0
  %737 = vmatpush1.msra.mxu0 %v719
  %738 = vmatprep.subr.mxu0 0.0
  %739 = vmatpush1.msra.mxu0 %v720
  %740 = vmatprep.subr.mxu0 0.0
  %741 = vmatpush1.msra.mxu0 %v721
  %742 = vmatprep.subr.mxu0 0.0
  %743 = vmatpush1.msra.mxu0 %v722
  %744 = vmatprep.subr.mxu0 0.0
  %745 = vmatpush1.msra.mxu0 %v723
  %746 = vmatprep.subr.mxu0 0.0
  %747 = vmatpush1.msra.mxu0 %v724
  %748 = vmatprep.subr.mxu0 0.0
  %749 = vmatpush1.msra.mxu0 %v725
  %750 = vmatprep.subr.mxu0 0.0
  %751 = vmatpush1.msra.mxu0 %v726
  %752 = vmatprep.subr.mxu0 0.0
  %753 = vmatpush1.msra.mxu0 %v727
  %754 = vmatprep.subr.mxu0 0.0
  %755 = vmatpush1.msra.mxu0 %v728
  %756 = vmatprep.subr.mxu0 0.0
  %757 = vmatpush1.msra.mxu0 %v729
  %758 = vmatprep.subr.mxu0 0.0
  %759 = vmatpush1.msra.mxu0 %v730
  %760 = vmatprep.subr.mxu0 0.0
  %761 = vmatpush1.msra.mxu0 %v731
  %762 = vmatprep.subr.mxu0 0.0
  %763 = vmatpush1.msra.mxu0 %v732
  %764 = vmatprep.subr.mxu0 0.0
  %765 = vmatpush1.msra.mxu0 %v733
  %766 = vmatprep.subr.mxu0 0.0
  %767 = vmatpush1.msra.mxu0 0.0
  %768 = vmatprep.subr.mxu0 0.0
  %769 = vmatpush1.msra.mxu0 0.0
  %770 = vmatprep.subr.mxu0 0.0
  %771 = vmatpush1.msra.mxu0 0.0
  %772 = vmatprep.subr.mxu0 0.0
  %773 = vmatpush1.msra.mxu0 0.0
  %774 = vmatprep.subr.mxu0 0.0
  %775 = vmatpush1.msra.mxu0 0.0
  %776 = vmatprep.subr.mxu0 0.0
  %777 = vmatpush1.msra.mxu0 0.0
  %778 = vmatprep.subr.mxu0 0.0
  %779 = vmatpush1.msra.mxu0 0.0
  %780 = vmatprep.subr.mxu0 0.0
  %781 = vmatpush1.msra.mxu0 0.0
  %782 = vmatprep.subr.mxu0 0.0
  %783 = vmatpush1.msra.mxu0 0.0
  %784 = vmatprep.subr.mxu0 0.0
  %785 = vmatpush1.msra.mxu0 0.0
  %786 = vmatprep.subr.mxu0 0.0
  %787 = vmatpush1.msra.mxu0 0.0
  %788 = vmatprep.subr.mxu0 0.0
  %789 = vmatpush1.msra.mxu0 0.0
  %790 = vmatprep.subr.mxu0 0.0
  %791 = vmatpush1.msra.mxu0 0.0
  %792 = vmatprep.subr.mxu0 0.0
  %793 = vmatpush1.msra.mxu0 0.0
  %794 = vmatprep.subr.mxu0 0.0
  %795 = vmatpush1.msra.mxu0 0.0
  %796 = vmatprep.subr.mxu0 0.0
  %797 = vmatpush1.msra.mxu0 0.0
  %798 = vmatprep.mubr.f32.mxu0 0.0
  %799 = vmatmul.mubr.f32.gmra.mrb[0].mxu0 %v699
  %v800 = vpop.f32.mrb[0].mxu0
  %v801 = vadd.f32 0.0, %v800
  %v802 = vpop.f32.mrb[0].mxu0
  %803 = vmatprep.mubr.f32.mxu0 0.0
  %804 = vmatmul.mubr.f32.gmra.mrb[0].mxu0 %v704
  %v805 = vpop.f32.mrb[0].mxu0
  %v806 = vadd.f32 0.0, %v805
  %v807 = vpop.f32.mrb[0].mxu0
  %808 = vmatprep.mubr.f32.mxu0 0.0
  %809 = vmatmul.mubr.f32.gmra.mrb[0].mxu0 %v709
  %v810 = vpop.f32.mrb[0].mxu0
  %v811 = vadd.f32 0.0, %v810
  %v812 = vpop.f32.mrb[0].mxu0
  %813 = vmatprep.mubr.f32.mxu0 0.0
  %814 = vmatmul.mubr.f32.gmra.mrb[0].mxu0 %v714
  %v815 = vpop.f32.mrb[0].mxu0
  %v816 = vadd.f32 0.0, %v815
  %v817 = vpop.f32.mrb[0].mxu0
  %818 = vdwg.mxu0
  %v819 = vadd.f32 %v597, %v801
  %v820 = vadd.f32 %v602, %v806
  %v821 = vadd.f32 %v607, %v811
  %v822 = vadd.f32 %v612, %v816
  %s823 = scalar_lea.vmem %s3, 96
  %v824 = vld [vmem:[%s823] sm:$0xff]
  %v825 = vld [vmem:[%s823 + $0x8] sm:$0xff]
  %v826 = vld [vmem:[%s823 + $0x10] sm:$0xff]
  %v827 = vld [vmem:[%s823 + $0x18] sm:$0xff]
  %v829 = vsel %vm212, %v824, 0
  %v832 = vsel %vm212, %v825, 0
  %v835 = vsel %vm212, %v826, 0
  %v838 = vsel %vm212, %v827, 0
  %840 = vmatprep.subr.mxu0 0.0
  %841 = vmatpush1.msra.mxu0 %v204
  %842 = vmatprep.subr.mxu0 0.0
  %843 = vmatpush1.msra.mxu0 %v205
  %844 = vmatprep.subr.mxu0 0.0
  %845 = vmatpush1.msra.mxu0 %v206
  %846 = vmatprep.subr.mxu0 0.0
  %847 = vmatpush1.msra.mxu0 %v207
  %848 = vmatprep.subr.mxu0 0.0
  %849 = vmatpush1.msra.mxu0 0.0
  %850 = vmatprep.subr.mxu0 0.0
  %851 = vmatpush1.msra.mxu0 0.0
  %852 = vmatprep.subr.mxu0 0.0
  %853 = vmatpush1.msra.mxu0 0.0
  %854 = vmatprep.subr.mxu0 0.0
  %855 = vmatpush1.msra.mxu0 0.0
  %856 = vmatprep.subr.mxu0 0.0
  %857 = vmatpush1.msra.mxu0 0.0
  %858 = vmatprep.subr.mxu0 0.0
  %859 = vmatpush1.msra.mxu0 0.0
  %860 = vmatprep.subr.mxu0 0.0
  %861 = vmatpush1.msra.mxu0 0.0
  %862 = vmatprep.subr.mxu0 0.0
  %863 = vmatpush1.msra.mxu0 0.0
  %864 = vmatprep.subr.mxu0 0.0
  %865 = vmatpush1.msra.mxu0 0.0
  %866 = vmatprep.subr.mxu0 0.0
  %867 = vmatpush1.msra.mxu0 0.0
  %868 = vmatprep.subr.mxu0 0.0
  %869 = vmatpush1.msra.mxu0 0.0
  %870 = vmatprep.subr.mxu0 0.0
  %871 = vmatpush1.msra.mxu0 0.0
  %872 = vmatprep.subr.mxu0 0.0
  %873 = vmatpush1.msra.mxu0 0.0
  %874 = vmatprep.subr.mxu0 0.0
  %875 = vmatpush1.msra.mxu0 0.0
  %876 = vmatprep.subr.mxu0 0.0
  %877 = vmatpush1.msra.mxu0 0.0
  %878 = vmatprep.subr.mxu0 0.0
  %879 = vmatpush1.msra.mxu0 0.0
  %880 = vmatprep.subr.mxu0 0.0
  %881 = vmatpush1.msra.mxu0 0.0
  %882 = vmatprep.subr.mxu0 0.0
  %883 = vmatpush1.msra.mxu0 0.0
  %884 = vmatprep.subr.mxu0 0.0
  %885 = vmatpush1.msra.mxu0 0.0
  %886 = vmatprep.subr.mxu0 0.0
  %887 = vmatpush1.msra.mxu0 0.0
  %888 = vmatprep.subr.mxu0 0.0
  %889 = vmatpush1.msra.mxu0 0.0
  %890 = vmatprep.subr.mxu0 0.0
  %891 = vmatpush1.msra.mxu0 0.0
  %892 = vmatprep.subr.mxu0 0.0
  %893 = vmatpush1.msra.mxu0 0.0
  %894 = vmatprep.subr.mxu0 0.0
  %895 = vmatpush1.msra.mxu0 0.0
  %896 = vmatprep.subr.mxu0 0.0
  %897 = vmatpush1.msra.mxu0 0.0
  %898 = vmatprep.subr.mxu0 0.0
  %899 = vmatpush1.msra.mxu0 0.0
  %900 = vmatprep.subr.mxu0 0.0
  %901 = vmatpush1.msra.mxu0 0.0
  %902 = vmatprep.subr.mxu0 0.0
  %903 = vmatpush1.msra.mxu0 0.0
  %904 = vmatprep.mubr.f32.mxu0 0.0
  %905 = vmatmul.mubr.f32.gmra.mrb[0].mxu0 %v829
  %v906 = vpop.f32.mrb[0].mxu0
  %v907 = vadd.f32 0.0, %v906
  %v908 = vpop.f32.mrb[0].mxu0
  %909 = vmatprep.mubr.f32.mxu0 0.0
  %910 = vmatmul.mubr.f32.gmra.mrb[0].mxu0 %v832
  %v911 = vpop.f32.mrb[0].mxu0
  %v912 = vadd.f32 0.0, %v911
  %v913 = vpop.f32.mrb[0].mxu0
  %914 = vmatprep.mubr.f32.mxu0 0.0
  %915 = vmatmul.mubr.f32.gmra.mrb[0].mxu0 %v835
  %v916 = vpop.f32.mrb[0].mxu0
  %v917 = vadd.f32 0.0, %v916
  %v918 = vpop.f32.mrb[0].mxu0
  %919 = vmatprep.mubr.f32.mxu0 0.0
  %920 = vmatmul.mubr.f32.gmra.mrb[0].mxu0 %v838
  %v921 = vpop.f32.mrb[0].mxu0
  %v922 = vadd.f32 0.0, %v921
  %v923 = vpop.f32.mrb[0].mxu0
  %924 = vdwg.mxu0
  %s925 = scalar_lea.vmem %s4, 384
  %v926 = vld [vmem:[%s925] sm:$0xff]
  %v927 = vld [vmem:[%s925 + $0x8] sm:$0xff]
  %v928 = vld [vmem:[%s925 + $0x10] sm:$0xff]
  %v929 = vld [vmem:[%s925 + $0x18] sm:$0xff]
  %v930 = vld [vmem:[%s925 + $0x20] sm:$0xff]
  %v931 = vld [vmem:[%s925 + $0x28] sm:$0xff]
  %v932 = vld [vmem:[%s925 + $0x30] sm:$0xff]
  %v933 = vld [vmem:[%s925 + $0x38] sm:$0xff]
  %v934 = vld [vmem:[%s925 + $0x40] sm:$0xff]
  %v935 = vld [vmem:[%s925 + $0x48] sm:$0xff]
  %v936 = vld [vmem:[%s925 + $0x50] sm:$0xff]
  %v937 = vld [vmem:[%s925 + $0x58] sm:$0xff]
  %v938 = vld [vmem:[%s925 + $0x60] sm:$0xff]
  %v939 = vld [vmem:[%s925 + $0x68] sm:$0xff]
  %v940 = vld [vmem:[%s925 + $0x70] sm:$0xff]
  %v941 = vld [vmem:[%s925 + $0x78] sm:$0xff]
  %942 = vmatprep.subr.mxu0 0.0
  %943 = vmatpush1.msra.mxu0 %v926
  %944 = vmatprep.subr.mxu0 0.0
  %945 = vmatpush1.msra.mxu0 %v927
  %946 = vmatprep.subr.mxu0 0.0
  %947 = vmatpush1.msra.mxu0 %v928
  %948 = vmatprep.subr.mxu0 0.0
  %949 = vmatpush1.msra.mxu0 %v929
  %950 = vmatprep.subr.mxu0 0.0
  %951 = vmatpush1.msra.mxu0 %v930
  %952 = vmatprep.subr.mxu0 0.0
  %953 = vmatpush1.msra.mxu0 %v931
  %954 = vmatprep.subr.mxu0 0.0
  %955 = vmatpush1.msra.mxu0 %v932
  %956 = vmatprep.subr.mxu0 0.0
  %957 = vmatpush1.msra.mxu0 %v933
  %958 = vmatprep.subr.mxu0 0.0
  %959 = vmatpush1.msra.mxu0 %v934
  %960 = vmatprep.subr.mxu0 0.0
  %961 = vmatpush1.msra.mxu0 %v935
  %962 = vmatprep.subr.mxu0 0.0
  %963 = vmatpush1.msra.mxu0 %v936
  %964 = vmatprep.subr.mxu0 0.0
  %965 = vmatpush1.msra.mxu0 %v937
  %966 = vmatprep.subr.mxu0 0.0
  %967 = vmatpush1.msra.mxu0 %v938
  %968 = vmatprep.subr.mxu0 0.0
  %969 = vmatpush1.msra.mxu0 %v939
  %970 = vmatprep.subr.mxu0 0.0
  %971 = vmatpush1.msra.mxu0 %v940
  %972 = vmatprep.subr.mxu0 0.0
  %973 = vmatpush1.msra.mxu0 %v941
  %974 = vmatprep.subr.mxu0 0.0
  %975 = vmatpush1.msra.mxu0 0.0
  %976 = vmatprep.subr.mxu0 0.0
  %977 = vmatpush1.msra.mxu0 0.0
  %978 = vmatprep.subr.mxu0 0.0
  %979 = vmatpush1.msra.mxu0 0.0
  %980 = vmatprep.subr.mxu0 0.0
  %981 = vmatpush1.msra.mxu0 0.0
  %982 = vmatprep.subr.mxu0 0.0
  %983 = vmatpush1.msra.mxu0 0.0
  %984 = vmatprep.subr.mxu0 0.0
  %985 = vmatpush1.msra.mxu0 0.0
  %986 = vmatprep.subr.mxu0 0.0
  %987 = vmatpush1.msra.mxu0 0.0
  %988 = vmatprep.subr.mxu0 0.0
  %989 = vmatpush1.msra.mxu0 0.0
  %990 = vmatprep.subr.mxu0 0.0
  %991 = vmatpush1.msra.mxu0 0.0
  %992 = vmatprep.subr.mxu0 0.0
  %993 = vmatpush1.msra.mxu0 0.0
  %994 = vmatprep.subr.mxu0 0.0
  %995 = vmatpush1.msra.mxu0 0.0
  %996 = vmatprep.subr.mxu0 0.0
  %997 = vmatpush1.msra.mxu0 0.0
  %998 = vmatprep.subr.mxu0 0.0
  %999 = vmatpush1.msra.mxu0 0.0
  %1000 = vmatprep.subr.mxu0 0.0
  %1001 = vmatpush1.msra.mxu0 0.0
  %1002 = vmatprep.subr.mxu0 0.0
  %1003 = vmatpush1.msra.mxu0 0.0
  %1004 = vmatprep.subr.mxu0 0.0
  %1005 = vmatpush1.msra.mxu0 0.0
  %1006 = vmatprep.mubr.f32.mxu0 0.0
  %1007 = vmatmul.mubr.f32.gmra.mrb[0].mxu0 %v907
  %v1008 = vpop.f32.mrb[0].mxu0
  %v1009 = vadd.f32 0.0, %v1008
  %v1010 = vpop.f32.mrb[0].mxu0
  %1011 = vmatprep.mubr.f32.mxu0 0.0
  %1012 = vmatmul.mubr.f32.gmra.mrb[0].mxu0 %v912
  %v1013 = vpop.f32.mrb[0].mxu0
  %v1014 = vadd.f32 0.0, %v1013
  %v1015 = vpop.f32.mrb[0].mxu0
  %1016 = vmatprep.mubr.f32.mxu0 0.0
  %1017 = vmatmul.mubr.f32.gmra.mrb[0].mxu0 %v917
  %v1018 = vpop.f32.mrb[0].mxu0
  %v1019 = vadd.f32 0.0, %v1018
  %v1020 = vpop.f32.mrb[0].mxu0
  %1021 = vmatprep.mubr.f32.mxu0 0.0
  %1022 = vmatmul.mubr.f32.gmra.mrb[0].mxu0 %v922
  %v1023 = vpop.f32.mrb[0].mxu0
  %v1024 = vadd.f32 0.0, %v1023
  %v1025 = vpop.f32.mrb[0].mxu0
  %1026 = vdwg.mxu0
  %v1027 = vadd.f32 %v819, %v1009
  %v1028 = vadd.f32 %v820, %v1014
  %v1029 = vadd.f32 %v821, %v1019
  %v1030 = vadd.f32 %v822, %v1024
  %s1031 = scalar_lea.vmem %s3, 128
  %v1032 = vld [vmem:[%s1031] sm:$0xff]
  %v1033 = vld [vmem:[%s1031 + $0x8] sm:$0xff]
  %v1034 = vld [vmem:[%s1031 + $0x10] sm:$0xff]
  %v1035 = vld [vmem:[%s1031 + $0x18] sm:$0xff]
  %v1037 = vsel %vm212, %v1032, 0
  %v1040 = vsel %vm212, %v1033, 0
  %v1043 = vsel %vm212, %v1034, 0
  %v1046 = vsel %vm212, %v1035, 0
  %1048 = vmatprep.subr.mxu0 0.0
  %1049 = vmatpush1.msra.mxu0 %v204
  %1050 = vmatprep.subr.mxu0 0.0
  %1051 = vmatpush1.msra.mxu0 %v205
  %1052 = vmatprep.subr.mxu0 0.0
  %1053 = vmatpush1.msra.mxu0 %v206
  %1054 = vmatprep.subr.mxu0 0.0
  %1055 = vmatpush1.msra.mxu0 %v207
  %1056 = vmatprep.subr.mxu0 0.0
  %1057 = vmatpush1.msra.mxu0 0.0
  %1058 = vmatprep.subr.mxu0 0.0
  %1059 = vmatpush1.msra.mxu0 0.0
  %1060 = vmatprep.subr.mxu0 0.0
  %1061 = vmatpush1.msra.mxu0 0.0
  %1062 = vmatprep.subr.mxu0 0.0
  %1063 = vmatpush1.msra.mxu0 0.0
  %1064 = vmatprep.subr.mxu0 0.0
  %1065 = vmatpush1.msra.mxu0 0.0
  %1066 = vmatprep.subr.mxu0 0.0
  %1067 = vmatpush1.msra.mxu0 0.0
  %1068 = vmatprep.subr.mxu0 0.0
  %1069 = vmatpush1.msra.mxu0 0.0
  %1070 = vmatprep.subr.mxu0 0.0
  %1071 = vmatpush1.msra.mxu0 0.0
  %1072 = vmatprep.subr.mxu0 0.0
  %1073 = vmatpush1.msra.mxu0 0.0
  %1074 = vmatprep.subr.mxu0 0.0
  %1075 = vmatpush1.msra.mxu0 0.0
  %1076 = vmatprep.subr.mxu0 0.0
  %1077 = vmatpush1.msra.mxu0 0.0
  %1078 = vmatprep.subr.mxu0 0.0
  %1079 = vmatpush1.msra.mxu0 0.0
  %1080 = vmatprep.subr.mxu0 0.0
  %1081 = vmatpush1.msra.mxu0 0.0
  %1082 = vmatprep.subr.mxu0 0.0
  %1083 = vmatpush1.msra.mxu0 0.0
  %1084 = vmatprep.subr.mxu0 0.0
  %1085 = vmatpush1.msra.mxu0 0.0
  %1086 = vmatprep.subr.mxu0 0.0
  %1087 = vmatpush1.msra.mxu0 0.0
  %1088 = vmatprep.subr.mxu0 0.0
  %1089 = vmatpush1.msra.mxu0 0.0
  %1090 = vmatprep.subr.mxu0 0.0
  %1091 = vmatpush1.msra.mxu0 0.0
  %1092 = vmatprep.subr.mxu0 0.0
  %1093 = vmatpush1.msra.mxu0 0.0
  %1094 = vmatprep.subr.mxu0 0.0
  %1095 = vmatpush1.msra.mxu0 0.0
  %1096 = vmatprep.subr.mxu0 0.0
  %1097 = vmatpush1.msra.mxu0 0.0
  %1098 = vmatprep.subr.mxu0 0.0
  %1099 = vmatpush1.msra.mxu0 0.0
  %1100 = vmatprep.subr.mxu0 0.0
  %1101 = vmatpush1.msra.mxu0 0.0
  %1102 = vmatprep.subr.mxu0 0.0
  %1103 = vmatpush1.msra.mxu0 0.0
  %1104 = vmatprep.subr.mxu0 0.0
  %1105 = vmatpush1.msra.mxu0 0.0
  %1106 = vmatprep.subr.mxu0 0.0
  %1107 = vmatpush1.msra.mxu0 0.0
  %1108 = vmatprep.subr.mxu0 0.0
  %1109 = vmatpush1.msra.mxu0 0.0
  %1110 = vmatprep.subr.mxu0 0.0
  %1111 = vmatpush1.msra.mxu0 0.0
  %1112 = vmatprep.mubr.f32.mxu0 0.0
  %1113 = vmatmul.mubr.f32.gmra.mrb[0].mxu0 %v1037
  %v1114 = vpop.f32.mrb[0].mxu0
  %v1115 = vadd.f32 0.0, %v1114
  %v1116 = vpop.f32.mrb[0].mxu0
  %1117 = vmatprep.mubr.f32.mxu0 0.0
  %1118 = vmatmul.mubr.f32.gmra.mrb[0].mxu0 %v1040
  %v1119 = vpop.f32.mrb[0].mxu0
  %v1120 = vadd.f32 0.0, %v1119
  %v1121 = vpop.f32.mrb[0].mxu0
  %1122 = vmatprep.mubr.f32.mxu0 0.0
  %1123 = vmatmul.mubr.f32.gmra.mrb[0].mxu0 %v1043
  %v1124 = vpop.f32.mrb[0].mxu0
  %v1125 = vadd.f32 0.0, %v1124
  %v1126 = vpop.f32.mrb[0].mxu0
  %1127 = vmatprep.mubr.f32.mxu0 0.0
  %1128 = vmatmul.mubr.f32.gmra.mrb[0].mxu0 %v1046
  %v1129 = vpop.f32.mrb[0].mxu0
  %v1130 = vadd.f32 0.0, %v1129
  %v1131 = vpop.f32.mrb[0].mxu0
  %1132 = vdwg.mxu0
  %s1133 = scalar_lea.vmem %s4, 512
  %v1134 = vld [vmem:[%s1133] sm:$0xff]
  %v1135 = vld [vmem:[%s1133 + $0x8] sm:$0xff]
  %v1136 = vld [vmem:[%s1133 + $0x10] sm:$0xff]
  %v1137 = vld [vmem:[%s1133 + $0x18] sm:$0xff]
  %v1138 = vld [vmem:[%s1133 + $0x20] sm:$0xff]
  %v1139 = vld [vmem:[%s1133 + $0x28] sm:$0xff]
  %v1140 = vld [vmem:[%s1133 + $0x30] sm:$0xff]
  %v1141 = vld [vmem:[%s1133 + $0x38] sm:$0xff]
  %v1142 = vld [vmem:[%s1133 + $0x40] sm:$0xff]
  %v1143 = vld [vmem:[%s1133 + $0x48] sm:$0xff]
  %v1144 = vld [vmem:[%s1133 + $0x50] sm:$0xff]
  %v1145 = vld [vmem:[%s1133 + $0x58] sm:$0xff]
  %v1146 = vld [vmem:[%s1133 + $0x60] sm:$0xff]
  %v1147 = vld [vmem:[%s1133 + $0x68] sm:$0xff]
  %v1148 = vld [vmem:[%s1133 + $0x70] sm:$0xff]
  %v1149 = vld [vmem:[%s1133 + $0x78] sm:$0xff]
  %1150 = vmatprep.subr.mxu0 0.0
  %1151 = vmatpush1.msra.mxu0 %v1134
  %1152 = vmatprep.subr.mxu0 0.0
  %1153 = vmatpush1.msra.mxu0 %v1135
  %1154 = vmatprep.subr.mxu0 0.0
  %1155 = vmatpush1.msra.mxu0 %v1136
  %1156 = vmatprep.subr.mxu0 0.0
  %1157 = vmatpush1.msra.mxu0 %v1137
  %1158 = vmatprep.subr.mxu0 0.0
  %1159 = vmatpush1.msra.mxu0 %v1138
  %1160 = vmatprep.subr.mxu0 0.0
  %1161 = vmatpush1.msra.mxu0 %v1139
  %1162 = vmatprep.subr.mxu0 0.0
  %1163 = vmatpush1.msra.mxu0 %v1140
  %1164 = vmatprep.subr.mxu0 0.0
  %1165 = vmatpush1.msra.mxu0 %v1141
  %1166 = vmatprep.subr.mxu0 0.0
  %1167 = vmatpush1.msra.mxu0 %v1142
  %1168 = vmatprep.subr.mxu0 0.0
  %1169 = vmatpush1.msra.mxu0 %v1143
  %1170 = vmatprep.subr.mxu0 0.0
  %1171 = vmatpush1.msra.mxu0 %v1144
  %1172 = vmatprep.subr.mxu0 0.0
  %1173 = vmatpush1.msra.mxu0 %v1145
  %1174 = vmatprep.subr.mxu0 0.0
  %1175 = vmatpush1.msra.mxu0 %v1146
  %1176 = vmatprep.subr.mxu0 0.0
  %1177 = vmatpush1.msra.mxu0 %v1147
  %1178 = vmatprep.subr.mxu0 0.0
  %1179 = vmatpush1.msra.mxu0 %v1148
  %1180 = vmatprep.subr.mxu0 0.0
  %1181 = vmatpush1.msra.mxu0 %v1149
  %1182 = vmatprep.subr.mxu0 0.0
  %1183 = vmatpush1.msra.mxu0 0.0
  %1184 = vmatprep.subr.mxu0 0.0
  %1185 = vmatpush1.msra.mxu0 0.0
  %1186 = vmatprep.subr.mxu0 0.0
  %1187 = vmatpush1.msra.mxu0 0.0
  %1188 = vmatprep.subr.mxu0 0.0
  %1189 = vmatpush1.msra.mxu0 0.0
  %1190 = vmatprep.subr.mxu0 0.0
  %1191 = vmatpush1.msra.mxu0 0.0
  %1192 = vmatprep.subr.mxu0 0.0
  %1193 = vmatpush1.msra.mxu0 0.0
  %1194 = vmatprep.subr.mxu0 0.0
  %1195 = vmatpush1.msra.mxu0 0.0
  %1196 = vmatprep.subr.mxu0 0.0
  %1197 = vmatpush1.msra.mxu0 0.0
  %1198 = vmatprep.subr.mxu0 0.0
  %1199 = vmatpush1.msra.mxu0 0.0
  %1200 = vmatprep.subr.mxu0 0.0
  %1201 = vmatpush1.msra.mxu0 0.0
  %1202 = vmatprep.subr.mxu0 0.0
  %1203 = vmatpush1.msra.mxu0 0.0
  %1204 = vmatprep.subr.mxu0 0.0
  %1205 = vmatpush1.msra.mxu0 0.0
  %1206 = vmatprep.subr.mxu0 0.0
  %1207 = vmatpush1.msra.mxu0 0.0
  %1208 = vmatprep.subr.mxu0 0.0
  %1209 = vmatpush1.msra.mxu0 0.0
  %1210 = vmatprep.subr.mxu0 0.0
  %1211 = vmatpush1.msra.mxu0 0.0
  %1212 = vmatprep.subr.mxu0 0.0
  %1213 = vmatpush1.msra.mxu0 0.0
  %1214 = vmatprep.mubr.f32.mxu0 0.0
  %1215 = vmatmul.mubr.f32.gmra.mrb[0].mxu0 %v1115
  %v1216 = vpop.f32.mrb[0].mxu0
  %v1217 = vadd.f32 0.0, %v1216
  %v1218 = vpop.f32.mrb[0].mxu0
  %1219 = vmatprep.mubr.f32.mxu0 0.0
  %1220 = vmatmul.mubr.f32.gmra.mrb[0].mxu0 %v1120
  %v1221 = vpop.f32.mrb[0].mxu0
  %v1222 = vadd.f32 0.0, %v1221
  %v1223 = vpop.f32.mrb[0].mxu0
  %1224 = vmatprep.mubr.f32.mxu0 0.0
  %1225 = vmatmul.mubr.f32.gmra.mrb[0].mxu0 %v1125
  %v1226 = vpop.f32.mrb[0].mxu0
  %v1227 = vadd.f32 0.0, %v1226
  %v1228 = vpop.f32.mrb[0].mxu0
  %1229 = vmatprep.mubr.f32.mxu0 0.0
  %1230 = vmatmul.mubr.f32.gmra.mrb[0].mxu0 %v1130
  %v1231 = vpop.f32.mrb[0].mxu0
  %v1232 = vadd.f32 0.0, %v1231
  %v1233 = vpop.f32.mrb[0].mxu0
  %1234 = vdwg.mxu0
  %v1235 = vadd.f32 %v1027, %v1217
  %v1236 = vadd.f32 %v1028, %v1222
  %v1237 = vadd.f32 %v1029, %v1227
  %v1238 = vadd.f32 %v1030, %v1232
  %s1239 = scalar_lea.vmem %s3, 160
  %v1240 = vld [vmem:[%s1239] sm:$0xff]
  %v1241 = vld [vmem:[%s1239 + $0x8] sm:$0xff]
  %v1242 = vld [vmem:[%s1239 + $0x10] sm:$0xff]
  %v1243 = vld [vmem:[%s1239 + $0x18] sm:$0xff]
  %v1245 = vsel %vm212, %v1240, 0
  %v1248 = vsel %vm212, %v1241, 0
  %v1251 = vsel %vm212, %v1242, 0
  %v1254 = vsel %vm212, %v1243, 0
  %1256 = vmatprep.subr.mxu0 0.0
  %1257 = vmatpush1.msra.mxu0 %v204
  %1258 = vmatprep.subr.mxu0 0.0
  %1259 = vmatpush1.msra.mxu0 %v205
  %1260 = vmatprep.subr.mxu0 0.0
  %1261 = vmatpush1.msra.mxu0 %v206
  %1262 = vmatprep.subr.mxu0 0.0
  %1263 = vmatpush1.msra.mxu0 %v207
  %1264 = vmatprep.subr.mxu0 0.0
  %1265 = vmatpush1.msra.mxu0 0.0
  %1266 = vmatprep.subr.mxu0 0.0
  %1267 = vmatpush1.msra.mxu0 0.0
  %1268 = vmatprep.subr.mxu0 0.0
  %1269 = vmatpush1.msra.mxu0 0.0
  %1270 = vmatprep.subr.mxu0 0.0
  %1271 = vmatpush1.msra.mxu0 0.0
  %1272 = vmatprep.subr.mxu0 0.0
  %1273 = vmatpush1.msra.mxu0 0.0
  %1274 = vmatprep.subr.mxu0 0.0
  %1275 = vmatpush1.msra.mxu0 0.0
  %1276 = vmatprep.subr.mxu0 0.0
  %1277 = vmatpush1.msra.mxu0 0.0
  %1278 = vmatprep.subr.mxu0 0.0
  %1279 = vmatpush1.msra.mxu0 0.0
  %1280 = vmatprep.subr.mxu0 0.0
  %1281 = vmatpush1.msra.mxu0 0.0
  %1282 = vmatprep.subr.mxu0 0.0
  %1283 = vmatpush1.msra.mxu0 0.0
  %1284 = vmatprep.subr.mxu0 0.0
  %1285 = vmatpush1.msra.mxu0 0.0
  %1286 = vmatprep.subr.mxu0 0.0
  %1287 = vmatpush1.msra.mxu0 0.0
  %1288 = vmatprep.subr.mxu0 0.0
  %1289 = vmatpush1.msra.mxu0 0.0
  %1290 = vmatprep.subr.mxu0 0.0
  %1291 = vmatpush1.msra.mxu0 0.0
  %1292 = vmatprep.subr.mxu0 0.0
  %1293 = vmatpush1.msra.mxu0 0.0
  %1294 = vmatprep.subr.mxu0 0.0
  %1295 = vmatpush1.msra.mxu0 0.0
  %1296 = vmatprep.subr.mxu0 0.0
  %1297 = vmatpush1.msra.mxu0 0.0
  %1298 = vmatprep.subr.mxu0 0.0
  %1299 = vmatpush1.msra.mxu0 0.0
  %1300 = vmatprep.subr.mxu0 0.0
  %1301 = vmatpush1.msra.mxu0 0.0
  %1302 = vmatprep.subr.mxu0 0.0
  %1303 = vmatpush1.msra.mxu0 0.0
  %1304 = vmatprep.subr.mxu0 0.0
  %1305 = vmatpush1.msra.mxu0 0.0
  %1306 = vmatprep.subr.mxu0 0.0
  %1307 = vmatpush1.msra.mxu0 0.0
  %1308 = vmatprep.subr.mxu0 0.0
  %1309 = vmatpush1.msra.mxu0 0.0
  %1310 = vmatprep.subr.mxu0 0.0
  %1311 = vmatpush1.msra.mxu0 0.0
  %1312 = vmatprep.subr.mxu0 0.0
  %1313 = vmatpush1.msra.mxu0 0.0
  %1314 = vmatprep.subr.mxu0 0.0
  %1315 = vmatpush1.msra.mxu0 0.0
  %1316 = vmatprep.subr.mxu0 0.0
  %1317 = vmatpush1.msra.mxu0 0.0
  %1318 = vmatprep.subr.mxu0 0.0
  %1319 = vmatpush1.msra.mxu0 0.0
  %1320 = vmatprep.mubr.f32.mxu0 0.0
  %1321 = vmatmul.mubr.f32.gmra.mrb[0].mxu0 %v1245
  %v1322 = vpop.f32.mrb[0].mxu0
  %v1323 = vadd.f32 0.0, %v1322
  %v1324 = vpop.f32.mrb[0].mxu0
  %1325 = vmatprep.mubr.f32.mxu0 0.0
  %1326 = vmatmul.mubr.f32.gmra.mrb[0].mxu0 %v1248
  %v1327 = vpop.f32.mrb[0].mxu0
  %v1328 = vadd.f32 0.0, %v1327
  %v1329 = vpop.f32.mrb[0].mxu0
  %1330 = vmatprep.mubr.f32.mxu0 0.0
  %1331 = vmatmul.mubr.f32.gmra.mrb[0].mxu0 %v1251
  %v1332 = vpop.f32.mrb[0].mxu0
  %v1333 = vadd.f32 0.0, %v1332
  %v1334 = vpop.f32.mrb[0].mxu0
  %1335 = vmatprep.mubr.f32.mxu0 0.0
  %1336 = vmatmul.mubr.f32.gmra.mrb[0].mxu0 %v1254
  %v1337 = vpop.f32.mrb[0].mxu0
  %v1338 = vadd.f32 0.0, %v1337
  %v1339 = vpop.f32.mrb[0].mxu0
  %1340 = vdwg.mxu0
  %s1341 = scalar_lea.vmem %s4, 640
  %v1342 = vld [vmem:[%s1341] sm:$0xff]
  %v1343 = vld [vmem:[%s1341 + $0x8] sm:$0xff]
  %v1344 = vld [vmem:[%s1341 + $0x10] sm:$0xff]
  %v1345 = vld [vmem:[%s1341 + $0x18] sm:$0xff]
  %v1346 = vld [vmem:[%s1341 + $0x20] sm:$0xff]
  %v1347 = vld [vmem:[%s1341 + $0x28] sm:$0xff]
  %v1348 = vld [vmem:[%s1341 + $0x30] sm:$0xff]
  %v1349 = vld [vmem:[%s1341 + $0x38] sm:$0xff]
  %v1350 = vld [vmem:[%s1341 + $0x40] sm:$0xff]
  %v1351 = vld [vmem:[%s1341 + $0x48] sm:$0xff]
  %v1352 = vld [vmem:[%s1341 + $0x50] sm:$0xff]
  %v1353 = vld [vmem:[%s1341 + $0x58] sm:$0xff]
  %v1354 = vld [vmem:[%s1341 + $0x60] sm:$0xff]
  %v1355 = vld [vmem:[%s1341 + $0x68] sm:$0xff]
  %v1356 = vld [vmem:[%s1341 + $0x70] sm:$0xff]
  %v1357 = vld [vmem:[%s1341 + $0x78] sm:$0xff]
  %1358 = vmatprep.subr.mxu0 0.0
  %1359 = vmatpush1.msra.mxu0 %v1342
  %1360 = vmatprep.subr.mxu0 0.0
  %1361 = vmatpush1.msra.mxu0 %v1343
  %1362 = vmatprep.subr.mxu0 0.0
  %1363 = vmatpush1.msra.mxu0 %v1344
  %1364 = vmatprep.subr.mxu0 0.0
  %1365 = vmatpush1.msra.mxu0 %v1345
  %1366 = vmatprep.subr.mxu0 0.0
  %1367 = vmatpush1.msra.mxu0 %v1346
  %1368 = vmatprep.subr.mxu0 0.0
  %1369 = vmatpush1.msra.mxu0 %v1347
  %1370 = vmatprep.subr.mxu0 0.0
  %1371 = vmatpush1.msra.mxu0 %v1348
  %1372 = vmatprep.subr.mxu0 0.0
  %1373 = vmatpush1.msra.mxu0 %v1349
  %1374 = vmatprep.subr.mxu0 0.0
  %1375 = vmatpush1.msra.mxu0 %v1350
  %1376 = vmatprep.subr.mxu0 0.0
  %1377 = vmatpush1.msra.mxu0 %v1351
  %1378 = vmatprep.subr.mxu0 0.0
  %1379 = vmatpush1.msra.mxu0 %v1352
  %1380 = vmatprep.subr.mxu0 0.0
  %1381 = vmatpush1.msra.mxu0 %v1353
  %1382 = vmatprep.subr.mxu0 0.0
  %1383 = vmatpush1.msra.mxu0 %v1354
  %1384 = vmatprep.subr.mxu0 0.0
  %1385 = vmatpush1.msra.mxu0 %v1355
  %1386 = vmatprep.subr.mxu0 0.0
  %1387 = vmatpush1.msra.mxu0 %v1356
  %1388 = vmatprep.subr.mxu0 0.0
  %1389 = vmatpush1.msra.mxu0 %v1357
  %1390 = vmatprep.subr.mxu0 0.0
  %1391 = vmatpush1.msra.mxu0 0.0
  %1392 = vmatprep.subr.mxu0 0.0
  %1393 = vmatpush1.msra.mxu0 0.0
  %1394 = vmatprep.subr.mxu0 0.0
  %1395 = vmatpush1.msra.mxu0 0.0
  %1396 = vmatprep.subr.mxu0 0.0
  %1397 = vmatpush1.msra.mxu0 0.0
  %1398 = vmatprep.subr.mxu0 0.0
  %1399 = vmatpush1.msra.mxu0 0.0
  %1400 = vmatprep.subr.mxu0 0.0
  %1401 = vmatpush1.msra.mxu0 0.0
  %1402 = vmatprep.subr.mxu0 0.0
  %1403 = vmatpush1.msra.mxu0 0.0
  %1404 = vmatprep.subr.mxu0 0.0
  %1405 = vmatpush1.msra.mxu0 0.0
  %1406 = vmatprep.subr.mxu0 0.0
  %1407 = vmatpush1.msra.mxu0 0.0
  %1408 = vmatprep.subr.mxu0 0.0
  %1409 = vmatpush1.msra.mxu0 0.0
  %1410 = vmatprep.subr.mxu0 0.0
  %1411 = vmatpush1.msra.mxu0 0.0
  %1412 = vmatprep.subr.mxu0 0.0
  %1413 = vmatpush1.msra.mxu0 0.0
  %1414 = vmatprep.subr.mxu0 0.0
  %1415 = vmatpush1.msra.mxu0 0.0
  %1416 = vmatprep.subr.mxu0 0.0
  %1417 = vmatpush1.msra.mxu0 0.0
  %1418 = vmatprep.subr.mxu0 0.0
  %1419 = vmatpush1.msra.mxu0 0.0
  %1420 = vmatprep.subr.mxu0 0.0
  %1421 = vmatpush1.msra.mxu0 0.0
  %1422 = vmatprep.mubr.f32.mxu0 0.0
  %1423 = vmatmul.mubr.f32.gmra.mrb[0].mxu0 %v1323
  %v1424 = vpop.f32.mrb[0].mxu0
  %v1425 = vadd.f32 0.0, %v1424
  %v1426 = vpop.f32.mrb[0].mxu0
  %1427 = vmatprep.mubr.f32.mxu0 0.0
  %1428 = vmatmul.mubr.f32.gmra.mrb[0].mxu0 %v1328
  %v1429 = vpop.f32.mrb[0].mxu0
  %v1430 = vadd.f32 0.0, %v1429
  %v1431 = vpop.f32.mrb[0].mxu0
  %1432 = vmatprep.mubr.f32.mxu0 0.0
  %1433 = vmatmul.mubr.f32.gmra.mrb[0].mxu0 %v1333
  %v1434 = vpop.f32.mrb[0].mxu0
  %v1435 = vadd.f32 0.0, %v1434
  %v1436 = vpop.f32.mrb[0].mxu0
  %1437 = vmatprep.mubr.f32.mxu0 0.0
  %1438 = vmatmul.mubr.f32.gmra.mrb[0].mxu0 %v1338
  %v1439 = vpop.f32.mrb[0].mxu0
  %v1440 = vadd.f32 0.0, %v1439
  %v1441 = vpop.f32.mrb[0].mxu0
  %1442 = vdwg.mxu0
  %v1443 = vadd.f32 %v1235, %v1425
  %v1444 = vadd.f32 %v1236, %v1430
  %v1445 = vadd.f32 %v1237, %v1435
  %v1446 = vadd.f32 %v1238, %v1440
  %s1447 = scalar_lea.vmem %s3, 192
  %v1448 = vld [vmem:[%s1447] sm:$0xff]
  %v1449 = vld [vmem:[%s1447 + $0x8] sm:$0xff]
  %v1450 = vld [vmem:[%s1447 + $0x10] sm:$0xff]
  %v1451 = vld [vmem:[%s1447 + $0x18] sm:$0xff]
  %v1453 = vsel %vm212, %v1448, 0
  %v1456 = vsel %vm212, %v1449, 0
  %v1459 = vsel %vm212, %v1450, 0
  %v1462 = vsel %vm212, %v1451, 0
  %1464 = vmatprep.subr.mxu0 0.0
  %1465 = vmatpush1.msra.mxu0 %v204
  %1466 = vmatprep.subr.mxu0 0.0
  %1467 = vmatpush1.msra.mxu0 %v205
  %1468 = vmatprep.subr.mxu0 0.0
  %1469 = vmatpush1.msra.mxu0 %v206
  %1470 = vmatprep.subr.mxu0 0.0
  %1471 = vmatpush1.msra.mxu0 %v207
  %1472 = vmatprep.subr.mxu0 0.0
  %1473 = vmatpush1.msra.mxu0 0.0
  %1474 = vmatprep.subr.mxu0 0.0
  %1475 = vmatpush1.msra.mxu0 0.0
  %1476 = vmatprep.subr.mxu0 0.0
  %1477 = vmatpush1.msra.mxu0 0.0
  %1478 = vmatprep.subr.mxu0 0.0
  %1479 = vmatpush1.msra.mxu0 0.0
  %1480 = vmatprep.subr.mxu0 0.0
  %1481 = vmatpush1.msra.mxu0 0.0
  %1482 = vmatprep.subr.mxu0 0.0
  %1483 = vmatpush1.msra.mxu0 0.0
  %1484 = vmatprep.subr.mxu0 0.0
  %1485 = vmatpush1.msra.mxu0 0.0
  %1486 = vmatprep.subr.mxu0 0.0
  %1487 = vmatpush1.msra.mxu0 0.0
  %1488 = vmatprep.subr.mxu0 0.0
  %1489 = vmatpush1.msra.mxu0 0.0
  %1490 = vmatprep.subr.mxu0 0.0
  %1491 = vmatpush1.msra.mxu0 0.0
  %1492 = vmatprep.subr.mxu0 0.0
  %1493 = vmatpush1.msra.mxu0 0.0
  %1494 = vmatprep.subr.mxu0 0.0
  %1495 = vmatpush1.msra.mxu0 0.0
  %1496 = vmatprep.subr.mxu0 0.0
  %1497 = vmatpush1.msra.mxu0 0.0
  %1498 = vmatprep.subr.mxu0 0.0
  %1499 = vmatpush1.msra.mxu0 0.0
  %1500 = vmatprep.subr.mxu0 0.0
  %1501 = vmatpush1.msra.mxu0 0.0
  %1502 = vmatprep.subr.mxu0 0.0
  %1503 = vmatpush1.msra.mxu0 0.0
  %1504 = vmatprep.subr.mxu0 0.0
  %1505 = vmatpush1.msra.mxu0 0.0
  %1506 = vmatprep.subr.mxu0 0.0
  %1507 = vmatpush1.msra.mxu0 0.0
  %1508 = vmatprep.subr.mxu0 0.0
  %1509 = vmatpush1.msra.mxu0 0.0
  %1510 = vmatprep.subr.mxu0 0.0
  %1511 = vmatpush1.msra.mxu0 0.0
  %1512 = vmatprep.subr.mxu0 0.0
  %1513 = vmatpush1.msra.mxu0 0.0
  %1514 = vmatprep.subr.mxu0 0.0
  %1515 = vmatpush1.msra.mxu0 0.0
  %1516 = vmatprep.subr.mxu0 0.0
  %1517 = vmatpush1.msra.mxu0 0.0
  %1518 = vmatprep.subr.mxu0 0.0
  %1519 = vmatpush1.msra.mxu0 0.0
  %1520 = vmatprep.subr.mxu0 0.0
  %1521 = vmatpush1.msra.mxu0 0.0
  %1522 = vmatprep.subr.mxu0 0.0
  %1523 = vmatpush1.msra.mxu0 0.0
  %1524 = vmatprep.subr.mxu0 0.0
  %1525 = vmatpush1.msra.mxu0 0.0
  %1526 = vmatprep.subr.mxu0 0.0
  %1527 = vmatpush1.msra.mxu0 0.0
  %1528 = vmatprep.mubr.f32.mxu0 0.0
  %1529 = vmatmul.mubr.f32.gmra.mrb[0].mxu0 %v1453
  %v1530 = vpop.f32.mrb[0].mxu0
  %v1531 = vadd.f32 0.0, %v1530
  %v1532 = vpop.f32.mrb[0].mxu0
  %1533 = vmatprep.mubr.f32.mxu0 0.0
  %1534 = vmatmul.mubr.f32.gmra.mrb[0].mxu0 %v1456
  %v1535 = vpop.f32.mrb[0].mxu0
  %v1536 = vadd.f32 0.0, %v1535
  %v1537 = vpop.f32.mrb[0].mxu0
  %1538 = vmatprep.mubr.f32.mxu0 0.0
  %1539 = vmatmul.mubr.f32.gmra.mrb[0].mxu0 %v1459
  %v1540 = vpop.f32.mrb[0].mxu0
  %v1541 = vadd.f32 0.0, %v1540
  %v1542 = vpop.f32.mrb[0].mxu0
  %1543 = vmatprep.mubr.f32.mxu0 0.0
  %1544 = vmatmul.mubr.f32.gmra.mrb[0].mxu0 %v1462
  %v1545 = vpop.f32.mrb[0].mxu0
  %v1546 = vadd.f32 0.0, %v1545
  %v1547 = vpop.f32.mrb[0].mxu0
  %1548 = vdwg.mxu0
  %s1549 = scalar_lea.vmem %s4, 768
  %v1550 = vld [vmem:[%s1549] sm:$0xff]
  %v1551 = vld [vmem:[%s1549 + $0x8] sm:$0xff]
  %v1552 = vld [vmem:[%s1549 + $0x10] sm:$0xff]
  %v1553 = vld [vmem:[%s1549 + $0x18] sm:$0xff]
  %v1554 = vld [vmem:[%s1549 + $0x20] sm:$0xff]
  %v1555 = vld [vmem:[%s1549 + $0x28] sm:$0xff]
  %v1556 = vld [vmem:[%s1549 + $0x30] sm:$0xff]
  %v1557 = vld [vmem:[%s1549 + $0x38] sm:$0xff]
  %v1558 = vld [vmem:[%s1549 + $0x40] sm:$0xff]
  %v1559 = vld [vmem:[%s1549 + $0x48] sm:$0xff]
  %v1560 = vld [vmem:[%s1549 + $0x50] sm:$0xff]
  %v1561 = vld [vmem:[%s1549 + $0x58] sm:$0xff]
  %v1562 = vld [vmem:[%s1549 + $0x60] sm:$0xff]
  %v1563 = vld [vmem:[%s1549 + $0x68] sm:$0xff]
  %v1564 = vld [vmem:[%s1549 + $0x70] sm:$0xff]
  %v1565 = vld [vmem:[%s1549 + $0x78] sm:$0xff]
  %1566 = vmatprep.subr.mxu0 0.0
  %1567 = vmatpush1.msra.mxu0 %v1550
  %1568 = vmatprep.subr.mxu0 0.0
  %1569 = vmatpush1.msra.mxu0 %v1551
  %1570 = vmatprep.subr.mxu0 0.0
  %1571 = vmatpush1.msra.mxu0 %v1552
  %1572 = vmatprep.subr.mxu0 0.0
  %1573 = vmatpush1.msra.mxu0 %v1553
  %1574 = vmatprep.subr.mxu0 0.0
  %1575 = vmatpush1.msra.mxu0 %v1554
  %1576 = vmatprep.subr.mxu0 0.0
  %1577 = vmatpush1.msra.mxu0 %v1555
  %1578 = vmatprep.subr.mxu0 0.0
  %1579 = vmatpush1.msra.mxu0 %v1556
  %1580 = vmatprep.subr.mxu0 0.0
  %1581 = vmatpush1.msra.mxu0 %v1557
  %1582 = vmatprep.subr.mxu0 0.0
  %1583 = vmatpush1.msra.mxu0 %v1558
  %1584 = vmatprep.subr.mxu0 0.0
  %1585 = vmatpush1.msra.mxu0 %v1559
  %1586 = vmatprep.subr.mxu0 0.0
  %1587 = vmatpush1.msra.mxu0 %v1560
  %1588 = vmatprep.subr.mxu0 0.0
  %1589 = vmatpush1.msra.mxu0 %v1561
  %1590 = vmatprep.subr.mxu0 0.0
  %1591 = vmatpush1.msra.mxu0 %v1562
  %1592 = vmatprep.subr.mxu0 0.0
  %1593 = vmatpush1.msra.mxu0 %v1563
  %1594 = vmatprep.subr.mxu0 0.0
  %1595 = vmatpush1.msra.mxu0 %v1564
  %1596 = vmatprep.subr.mxu0 0.0
  %1597 = vmatpush1.msra.mxu0 %v1565
  %1598 = vmatprep.subr.mxu0 0.0
  %1599 = vmatpush1.msra.mxu0 0.0
  %1600 = vmatprep.subr.mxu0 0.0
  %1601 = vmatpush1.msra.mxu0 0.0
  %1602 = vmatprep.subr.mxu0 0.0
  %1603 = vmatpush1.msra.mxu0 0.0
  %1604 = vmatprep.subr.mxu0 0.0
  %1605 = vmatpush1.msra.mxu0 0.0
  %1606 = vmatprep.subr.mxu0 0.0
  %1607 = vmatpush1.msra.mxu0 0.0
  %1608 = vmatprep.subr.mxu0 0.0
  %1609 = vmatpush1.msra.mxu0 0.0
  %1610 = vmatprep.subr.mxu0 0.0
  %1611 = vmatpush1.msra.mxu0 0.0
  %1612 = vmatprep.subr.mxu0 0.0
  %1613 = vmatpush1.msra.mxu0 0.0
  %1614 = vmatprep.subr.mxu0 0.0
  %1615 = vmatpush1.msra.mxu0 0.0
  %1616 = vmatprep.subr.mxu0 0.0
  %1617 = vmatpush1.msra.mxu0 0.0
  %1618 = vmatprep.subr.mxu0 0.0
  %1619 = vmatpush1.msra.mxu0 0.0
  %1620 = vmatprep.subr.mxu0 0.0
  %1621 = vmatpush1.msra.mxu0 0.0
  %1622 = vmatprep.subr.mxu0 0.0
  %1623 = vmatpush1.msra.mxu0 0.0
  %1624 = vmatprep.subr.mxu0 0.0
  %1625 = vmatpush1.msra.mxu0 0.0
  %1626 = vmatprep.subr.mxu0 0.0
  %1627 = vmatpush1.msra.mxu0 0.0
  %1628 = vmatprep.subr.mxu0 0.0
  %1629 = vmatpush1.msra.mxu0 0.0
  %1630 = vmatprep.mubr.f32.mxu0 0.0
  %1631 = vmatmul.mubr.f32.gmra.mrb[0].mxu0 %v1531
  %v1632 = vpop.f32.mrb[0].mxu0
  %v1633 = vadd.f32 0.0, %v1632
  %v1634 = vpop.f32.mrb[0].mxu0
  %1635 = vmatprep.mubr.f32.mxu0 0.0
  %1636 = vmatmul.mubr.f32.gmra.mrb[0].mxu0 %v1536
  %v1637 = vpop.f32.mrb[0].mxu0
  %v1638 = vadd.f32 0.0, %v1637
  %v1639 = vpop.f32.mrb[0].mxu0
  %1640 = vmatprep.mubr.f32.mxu0 0.0
  %1641 = vmatmul.mubr.f32.gmra.mrb[0].mxu0 %v1541
  %v1642 = vpop.f32.mrb[0].mxu0
  %v1643 = vadd.f32 0.0, %v1642
  %v1644 = vpop.f32.mrb[0].mxu0
  %1645 = vmatprep.mubr.f32.mxu0 0.0
  %1646 = vmatmul.mubr.f32.gmra.mrb[0].mxu0 %v1546
  %v1647 = vpop.f32.mrb[0].mxu0
  %v1648 = vadd.f32 0.0, %v1647
  %v1649 = vpop.f32.mrb[0].mxu0
  %1650 = vdwg.mxu0
  %v1651 = vadd.f32 %v1443, %v1633
  %v1652 = vadd.f32 %v1444, %v1638
  %v1653 = vadd.f32 %v1445, %v1643
  %v1654 = vadd.f32 %v1446, %v1648
  %s1655 = scalar_lea.vmem %s3, 224
  %v1656 = vld [vmem:[%s1655] sm:$0xff]
  %v1657 = vld [vmem:[%s1655 + $0x8] sm:$0xff]
  %v1658 = vld [vmem:[%s1655 + $0x10] sm:$0xff]
  %v1659 = vld [vmem:[%s1655 + $0x18] sm:$0xff]
  %v1661 = vsel %vm212, %v1656, 0
  %v1664 = vsel %vm212, %v1657, 0
  %v1667 = vsel %vm212, %v1658, 0
  %v1670 = vsel %vm212, %v1659, 0
  %1672 = vmatprep.subr.mxu0 0.0
  %1673 = vmatpush1.msra.mxu0 %v204
  %1674 = vmatprep.subr.mxu0 0.0
  %1675 = vmatpush1.msra.mxu0 %v205
  %1676 = vmatprep.subr.mxu0 0.0
  %1677 = vmatpush1.msra.mxu0 %v206
  %1678 = vmatprep.subr.mxu0 0.0
  %1679 = vmatpush1.msra.mxu0 %v207
  %1680 = vmatprep.subr.mxu0 0.0
  %1681 = vmatpush1.msra.mxu0 0.0
  %1682 = vmatprep.subr.mxu0 0.0
  %1683 = vmatpush1.msra.mxu0 0.0
  %1684 = vmatprep.subr.mxu0 0.0
  %1685 = vmatpush1.msra.mxu0 0.0
  %1686 = vmatprep.subr.mxu0 0.0
  %1687 = vmatpush1.msra.mxu0 0.0
  %1688 = vmatprep.subr.mxu0 0.0
  %1689 = vmatpush1.msra.mxu0 0.0
  %1690 = vmatprep.subr.mxu0 0.0
  %1691 = vmatpush1.msra.mxu0 0.0
  %1692 = vmatprep.subr.mxu0 0.0
  %1693 = vmatpush1.msra.mxu0 0.0
  %1694 = vmatprep.subr.mxu0 0.0
  %1695 = vmatpush1.msra.mxu0 0.0
  %1696 = vmatprep.subr.mxu0 0.0
  %1697 = vmatpush1.msra.mxu0 0.0
  %1698 = vmatprep.subr.mxu0 0.0
  %1699 = vmatpush1.msra.mxu0 0.0
  %1700 = vmatprep.subr.mxu0 0.0
  %1701 = vmatpush1.msra.mxu0 0.0
  %1702 = vmatprep.subr.mxu0 0.0
  %1703 = vmatpush1.msra.mxu0 0.0
  %1704 = vmatprep.subr.mxu0 0.0
  %1705 = vmatpush1.msra.mxu0 0.0
  %1706 = vmatprep.subr.mxu0 0.0
  %1707 = vmatpush1.msra.mxu0 0.0
  %1708 = vmatprep.subr.mxu0 0.0
  %1709 = vmatpush1.msra.mxu0 0.0
  %1710 = vmatprep.subr.mxu0 0.0
  %1711 = vmatpush1.msra.mxu0 0.0
  %1712 = vmatprep.subr.mxu0 0.0
  %1713 = vmatpush1.msra.mxu0 0.0
  %1714 = vmatprep.subr.mxu0 0.0
  %1715 = vmatpush1.msra.mxu0 0.0
  %1716 = vmatprep.subr.mxu0 0.0
  %1717 = vmatpush1.msra.mxu0 0.0
  %1718 = vmatprep.subr.mxu0 0.0
  %1719 = vmatpush1.msra.mxu0 0.0
  %1720 = vmatprep.subr.mxu0 0.0
  %1721 = vmatpush1.msra.mxu0 0.0
  %1722 = vmatprep.subr.mxu0 0.0
  %1723 = vmatpush1.msra.mxu0 0.0
  %1724 = vmatprep.subr.mxu0 0.0
  %1725 = vmatpush1.msra.mxu0 0.0
  %1726 = vmatprep.subr.mxu0 0.0
  %1727 = vmatpush1.msra.mxu0 0.0
  %1728 = vmatprep.subr.mxu0 0.0
  %1729 = vmatpush1.msra.mxu0 0.0
  %1730 = vmatprep.subr.mxu0 0.0
  %1731 = vmatpush1.msra.mxu0 0.0
  %1732 = vmatprep.subr.mxu0 0.0
  %1733 = vmatpush1.msra.mxu0 0.0
  %1734 = vmatprep.subr.mxu0 0.0
  %1735 = vmatpush1.msra.mxu0 0.0
  %1736 = vmatprep.mubr.f32.mxu0 0.0
  %1737 = vmatmul.mubr.f32.gmra.mrb[0].mxu0 %v1661
  %v1738 = vpop.f32.mrb[0].mxu0
  %v1739 = vadd.f32 0.0, %v1738
  %v1740 = vpop.f32.mrb[0].mxu0
  %1741 = vmatprep.mubr.f32.mxu0 0.0
  %1742 = vmatmul.mubr.f32.gmra.mrb[0].mxu0 %v1664
  %v1743 = vpop.f32.mrb[0].mxu0
  %v1744 = vadd.f32 0.0, %v1743
  %v1745 = vpop.f32.mrb[0].mxu0
  %1746 = vmatprep.mubr.f32.mxu0 0.0
  %1747 = vmatmul.mubr.f32.gmra.mrb[0].mxu0 %v1667
  %v1748 = vpop.f32.mrb[0].mxu0
  %v1749 = vadd.f32 0.0, %v1748
  %v1750 = vpop.f32.mrb[0].mxu0
  %1751 = vmatprep.mubr.f32.mxu0 0.0
  %1752 = vmatmul.mubr.f32.gmra.mrb[0].mxu0 %v1670
  %v1753 = vpop.f32.mrb[0].mxu0
  %v1754 = vadd.f32 0.0, %v1753
  %v1755 = vpop.f32.mrb[0].mxu0
  %1756 = vdwg.mxu0
  %s1757 = scalar_lea.vmem %s4, 896
  %v1758 = vld [vmem:[%s1757] sm:$0xff]
  %v1759 = vld [vmem:[%s1757 + $0x8] sm:$0xff]
  %v1760 = vld [vmem:[%s1757 + $0x10] sm:$0xff]
  %v1761 = vld [vmem:[%s1757 + $0x18] sm:$0xff]
  %v1762 = vld [vmem:[%s1757 + $0x20] sm:$0xff]
  %v1763 = vld [vmem:[%s1757 + $0x28] sm:$0xff]
  %v1764 = vld [vmem:[%s1757 + $0x30] sm:$0xff]
  %v1765 = vld [vmem:[%s1757 + $0x38] sm:$0xff]
  %v1766 = vld [vmem:[%s1757 + $0x40] sm:$0xff]
  %v1767 = vld [vmem:[%s1757 + $0x48] sm:$0xff]
  %v1768 = vld [vmem:[%s1757 + $0x50] sm:$0xff]
  %v1769 = vld [vmem:[%s1757 + $0x58] sm:$0xff]
  %v1770 = vld [vmem:[%s1757 + $0x60] sm:$0xff]
  %v1771 = vld [vmem:[%s1757 + $0x68] sm:$0xff]
  %v1772 = vld [vmem:[%s1757 + $0x70] sm:$0xff]
  %v1773 = vld [vmem:[%s1757 + $0x78] sm:$0xff]
  %1774 = vmatprep.subr.mxu0 0.0
  %1775 = vmatpush1.msra.mxu0 %v1758
  %1776 = vmatprep.subr.mxu0 0.0
  %1777 = vmatpush1.msra.mxu0 %v1759
  %1778 = vmatprep.subr.mxu0 0.0
  %1779 = vmatpush1.msra.mxu0 %v1760
  %1780 = vmatprep.subr.mxu0 0.0
  %1781 = vmatpush1.msra.mxu0 %v1761
  %1782 = vmatprep.subr.mxu0 0.0
  %1783 = vmatpush1.msra.mxu0 %v1762
  %1784 = vmatprep.subr.mxu0 0.0
  %1785 = vmatpush1.msra.mxu0 %v1763
  %1786 = vmatprep.subr.mxu0 0.0
  %1787 = vmatpush1.msra.mxu0 %v1764
  %1788 = vmatprep.subr.mxu0 0.0
  %1789 = vmatpush1.msra.mxu0 %v1765
  %1790 = vmatprep.subr.mxu0 0.0
  %1791 = vmatpush1.msra.mxu0 %v1766
  %1792 = vmatprep.subr.mxu0 0.0
  %1793 = vmatpush1.msra.mxu0 %v1767
  %1794 = vmatprep.subr.mxu0 0.0
  %1795 = vmatpush1.msra.mxu0 %v1768
  %1796 = vmatprep.subr.mxu0 0.0
  %1797 = vmatpush1.msra.mxu0 %v1769
  %1798 = vmatprep.subr.mxu0 0.0
  %1799 = vmatpush1.msra.mxu0 %v1770
  %1800 = vmatprep.subr.mxu0 0.0
  %1801 = vmatpush1.msra.mxu0 %v1771
  %1802 = vmatprep.subr.mxu0 0.0
  %1803 = vmatpush1.msra.mxu0 %v1772
  %1804 = vmatprep.subr.mxu0 0.0
  %1805 = vmatpush1.msra.mxu0 %v1773
  %1806 = vmatprep.subr.mxu0 0.0
  %1807 = vmatpush1.msra.mxu0 0.0
  %1808 = vmatprep.subr.mxu0 0.0
  %1809 = vmatpush1.msra.mxu0 0.0
  %1810 = vmatprep.subr.mxu0 0.0
  %1811 = vmatpush1.msra.mxu0 0.0
  %1812 = vmatprep.subr.mxu0 0.0
  %1813 = vmatpush1.msra.mxu0 0.0
  %1814 = vmatprep.subr.mxu0 0.0
  %1815 = vmatpush1.msra.mxu0 0.0
  %1816 = vmatprep.subr.mxu0 0.0
  %1817 = vmatpush1.msra.mxu0 0.0
  %1818 = vmatprep.subr.mxu0 0.0
  %1819 = vmatpush1.msra.mxu0 0.0
  %1820 = vmatprep.subr.mxu0 0.0
  %1821 = vmatpush1.msra.mxu0 0.0
  %1822 = vmatprep.subr.mxu0 0.0
  %1823 = vmatpush1.msra.mxu0 0.0
  %1824 = vmatprep.subr.mxu0 0.0
  %1825 = vmatpush1.msra.mxu0 0.0
  %1826 = vmatprep.subr.mxu0 0.0
  %1827 = vmatpush1.msra.mxu0 0.0
  %1828 = vmatprep.subr.mxu0 0.0
  %1829 = vmatpush1.msra.mxu0 0.0
  %1830 = vmatprep.subr.mxu0 0.0
  %1831 = vmatpush1.msra.mxu0 0.0
  %1832 = vmatprep.subr.mxu0 0.0
  %1833 = vmatpush1.msra.mxu0 0.0
  %1834 = vmatprep.subr.mxu0 0.0
  %1835 = vmatpush1.msra.mxu0 0.0
  %1836 = vmatprep.subr.mxu0 0.0
  %1837 = vmatpush1.msra.mxu0 0.0
  %1838 = vmatprep.mubr.f32.mxu0 0.0
  %1839 = vmatmul.mubr.f32.gmra.mrb[0].mxu0 %v1739
  %v1840 = vpop.f32.mrb[0].mxu0
  %v1841 = vadd.f32 0.0, %v1840
  %v1842 = vpop.f32.mrb[0].mxu0
  %1843 = vmatprep.mubr.f32.mxu0 0.0
  %1844 = vmatmul.mubr.f32.gmra.mrb[0].mxu0 %v1744
  %v1845 = vpop.f32.mrb[0].mxu0
  %v1846 = vadd.f32 0.0, %v1845
  %v1847 = vpop.f32.mrb[0].mxu0
  %1848 = vmatprep.mubr.f32.mxu0 0.0
  %1849 = vmatmul.mubr.f32.gmra.mrb[0].mxu0 %v1749
  %v1850 = vpop.f32.mrb[0].mxu0
  %v1851 = vadd.f32 0.0, %v1850
  %v1852 = vpop.f32.mrb[0].mxu0
  %1853 = vmatprep.mubr.f32.mxu0 0.0
  %1854 = vmatmul.mubr.f32.gmra.mrb[0].mxu0 %v1754
  %v1855 = vpop.f32.mrb[0].mxu0
  %v1856 = vadd.f32 0.0, %v1855
  %v1857 = vpop.f32.mrb[0].mxu0
  %1858 = vdwg.mxu0
  %v1859 = vadd.f32 %v1651, %v1841
  %v1860 = vadd.f32 %v1652, %v1846
  %v1861 = vadd.f32 %v1653, %v1851
  %v1862 = vadd.f32 %v1654, %v1856
  %s1863 = scalar_lea.vmem %s3, 256
  %v1864 = vld [vmem:[%s1863] sm:$0xff]
  %v1865 = vld [vmem:[%s1863 + $0x8] sm:$0xff]
  %v1866 = vld [vmem:[%s1863 + $0x10] sm:$0xff]
  %v1867 = vld [vmem:[%s1863 + $0x18] sm:$0xff]
  %v1869 = vsel %vm212, %v1864, 0
  %v1872 = vsel %vm212, %v1865, 0
  %v1875 = vsel %vm212, %v1866, 0
  %v1878 = vsel %vm212, %v1867, 0
  %1880 = vmatprep.subr.mxu0 0.0
  %1881 = vmatpush1.msra.mxu0 %v204
  %1882 = vmatprep.subr.mxu0 0.0
  %1883 = vmatpush1.msra.mxu0 %v205
  %1884 = vmatprep.subr.mxu0 0.0
  %1885 = vmatpush1.msra.mxu0 %v206
  %1886 = vmatprep.subr.mxu0 0.0
  %1887 = vmatpush1.msra.mxu0 %v207
  %1888 = vmatprep.subr.mxu0 0.0
  %1889 = vmatpush1.msra.mxu0 0.0
  %1890 = vmatprep.subr.mxu0 0.0
  %1891 = vmatpush1.msra.mxu0 0.0
  %1892 = vmatprep.subr.mxu0 0.0
  %1893 = vmatpush1.msra.mxu0 0.0
  %1894 = vmatprep.subr.mxu0 0.0
  %1895 = vmatpush1.msra.mxu0 0.0
  %1896 = vmatprep.subr.mxu0 0.0
  %1897 = vmatpush1.msra.mxu0 0.0
  %1898 = vmatprep.subr.mxu0 0.0
  %1899 = vmatpush1.msra.mxu0 0.0
  %1900 = vmatprep.subr.mxu0 0.0
  %1901 = vmatpush1.msra.mxu0 0.0
  %1902 = vmatprep.subr.mxu0 0.0
  %1903 = vmatpush1.msra.mxu0 0.0
  %1904 = vmatprep.subr.mxu0 0.0
  %1905 = vmatpush1.msra.mxu0 0.0
  %1906 = vmatprep.subr.mxu0 0.0
  %1907 = vmatpush1.msra.mxu0 0.0
  %1908 = vmatprep.subr.mxu0 0.0
  %1909 = vmatpush1.msra.mxu0 0.0
  %1910 = vmatprep.subr.mxu0 0.0
  %1911 = vmatpush1.msra.mxu0 0.0
  %1912 = vmatprep.subr.mxu0 0.0
  %1913 = vmatpush1.msra.mxu0 0.0
  %1914 = vmatprep.subr.mxu0 0.0
  %1915 = vmatpush1.msra.mxu0 0.0
  %1916 = vmatprep.subr.mxu0 0.0
  %1917 = vmatpush1.msra.mxu0 0.0
  %1918 = vmatprep.subr.mxu0 0.0
  %1919 = vmatpush1.msra.mxu0 0.0
  %1920 = vmatprep.subr.mxu0 0.0
  %1921 = vmatpush1.msra.mxu0 0.0
  %1922 = vmatprep.subr.mxu0 0.0
  %1923 = vmatpush1.msra.mxu0 0.0
  %1924 = vmatprep.subr.mxu0 0.0
  %1925 = vmatpush1.msra.mxu0 0.0
  %1926 = vmatprep.subr.mxu0 0.0
  %1927 = vmatpush1.msra.mxu0 0.0
  %1928 = vmatprep.subr.mxu0 0.0
  %1929 = vmatpush1.msra.mxu0 0.0
  %1930 = vmatprep.subr.mxu0 0.0
  %1931 = vmatpush1.msra.mxu0 0.0
  %1932 = vmatprep.subr.mxu0 0.0
  %1933 = vmatpush1.msra.mxu0 0.0
  %1934 = vmatprep.subr.mxu0 0.0
  %1935 = vmatpush1.msra.mxu0 0.0
  %1936 = vmatprep.subr.mxu0 0.0
  %1937 = vmatpush1.msra.mxu0 0.0
  %1938 = vmatprep.subr.mxu0 0.0
  %1939 = vmatpush1.msra.mxu0 0.0
  %1940 = vmatprep.subr.mxu0 0.0
  %1941 = vmatpush1.msra.mxu0 0.0
  %1942 = vmatprep.subr.mxu0 0.0
  %1943 = vmatpush1.msra.mxu0 0.0
  %1944 = vmatprep.mubr.f32.mxu0 0.0
  %1945 = vmatmul.mubr.f32.gmra.mrb[0].mxu0 %v1869
  %v1946 = vpop.f32.mrb[0].mxu0
  %v1947 = vadd.f32 0.0, %v1946
  %v1948 = vpop.f32.mrb[0].mxu0
  %1949 = vmatprep.mubr.f32.mxu0 0.0
  %1950 = vmatmul.mubr.f32.gmra.mrb[0].mxu0 %v1872
  %v1951 = vpop.f32.mrb[0].mxu0
  %v1952 = vadd.f32 0.0, %v1951
  %v1953 = vpop.f32.mrb[0].mxu0
  %1954 = vmatprep.mubr.f32.mxu0 0.0
  %1955 = vmatmul.mubr.f32.gmra.mrb[0].mxu0 %v1875
  %v1956 = vpop.f32.mrb[0].mxu0
  %v1957 = vadd.f32 0.0, %v1956
  %v1958 = vpop.f32.mrb[0].mxu0
  %1959 = vmatprep.mubr.f32.mxu0 0.0
  %1960 = vmatmul.mubr.f32.gmra.mrb[0].mxu0 %v1878
  %v1961 = vpop.f32.mrb[0].mxu0
  %v1962 = vadd.f32 0.0, %v1961
  %v1963 = vpop.f32.mrb[0].mxu0
  %1964 = vdwg.mxu0
  %s1965 = scalar_lea.vmem %s4, 1024
  %v1966 = vld [vmem:[%s1965] sm:$0xff]
  %v1967 = vld [vmem:[%s1965 + $0x8] sm:$0xff]
  %v1968 = vld [vmem:[%s1965 + $0x10] sm:$0xff]
  %v1969 = vld [vmem:[%s1965 + $0x18] sm:$0xff]
  %v1970 = vld [vmem:[%s1965 + $0x20] sm:$0xff]
  %v1971 = vld [vmem:[%s1965 + $0x28] sm:$0xff]
  %v1972 = vld [vmem:[%s1965 + $0x30] sm:$0xff]
  %v1973 = vld [vmem:[%s1965 + $0x38] sm:$0xff]
  %v1974 = vld [vmem:[%s1965 + $0x40] sm:$0xff]
  %v1975 = vld [vmem:[%s1965 + $0x48] sm:$0xff]
  %v1976 = vld [vmem:[%s1965 + $0x50] sm:$0xff]
  %v1977 = vld [vmem:[%s1965 + $0x58] sm:$0xff]
  %v1978 = vld [vmem:[%s1965 + $0x60] sm:$0xff]
  %v1979 = vld [vmem:[%s1965 + $0x68] sm:$0xff]
  %v1980 = vld [vmem:[%s1965 + $0x70] sm:$0xff]
  %v1981 = vld [vmem:[%s1965 + $0x78] sm:$0xff]
  %1982 = vmatprep.subr.mxu0 0.0
  %1983 = vmatpush1.msra.mxu0 %v1966
  %1984 = vmatprep.subr.mxu0 0.0
  %1985 = vmatpush1.msra.mxu0 %v1967
  %1986 = vmatprep.subr.mxu0 0.0
  %1987 = vmatpush1.msra.mxu0 %v1968
  %1988 = vmatprep.subr.mxu0 0.0
  %1989 = vmatpush1.msra.mxu0 %v1969
  %1990 = vmatprep.subr.mxu0 0.0
  %1991 = vmatpush1.msra.mxu0 %v1970
  %1992 = vmatprep.subr.mxu0 0.0
  %1993 = vmatpush1.msra.mxu0 %v1971
  %1994 = vmatprep.subr.mxu0 0.0
  %1995 = vmatpush1.msra.mxu0 %v1972
  %1996 = vmatprep.subr.mxu0 0.0
  %1997 = vmatpush1.msra.mxu0 %v1973
  %1998 = vmatprep.subr.mxu0 0.0
  %1999 = vmatpush1.msra.mxu0 %v1974
  %2000 = vmatprep.subr.mxu0 0.0
  %2001 = vmatpush1.msra.mxu0 %v1975
  %2002 = vmatprep.subr.mxu0 0.0
  %2003 = vmatpush1.msra.mxu0 %v1976
  %2004 = vmatprep.subr.mxu0 0.0
  %2005 = vmatpush1.msra.mxu0 %v1977
  %2006 = vmatprep.subr.mxu0 0.0
  %2007 = vmatpush1.msra.mxu0 %v1978
  %2008 = vmatprep.subr.mxu0 0.0
  %2009 = vmatpush1.msra.mxu0 %v1979
  %2010 = vmatprep.subr.mxu0 0.0
  %2011 = vmatpush1.msra.mxu0 %v1980
  %2012 = vmatprep.subr.mxu0 0.0
  %2013 = vmatpush1.msra.mxu0 %v1981
  %2014 = vmatprep.subr.mxu0 0.0
  %2015 = vmatpush1.msra.mxu0 0.0
  %2016 = vmatprep.subr.mxu0 0.0
  %2017 = vmatpush1.msra.mxu0 0.0
  %2018 = vmatprep.subr.mxu0 0.0
  %2019 = vmatpush1.msra.mxu0 0.0
  %2020 = vmatprep.subr.mxu0 0.0
  %2021 = vmatpush1.msra.mxu0 0.0
  %2022 = vmatprep.subr.mxu0 0.0
  %2023 = vmatpush1.msra.mxu0 0.0
  %2024 = vmatprep.subr.mxu0 0.0
  %2025 = vmatpush1.msra.mxu0 0.0
  %2026 = vmatprep.subr.mxu0 0.0
  %2027 = vmatpush1.msra.mxu0 0.0
  %2028 = vmatprep.subr.mxu0 0.0
  %2029 = vmatpush1.msra.mxu0 0.0
  %2030 = vmatprep.subr.mxu0 0.0
  %2031 = vmatpush1.msra.mxu0 0.0
  %2032 = vmatprep.subr.mxu0 0.0
  %2033 = vmatpush1.msra.mxu0 0.0
  %2034 = vmatprep.subr.mxu0 0.0
  %2035 = vmatpush1.msra.mxu0 0.0
  %2036 = vmatprep.subr.mxu0 0.0
  %2037 = vmatpush1.msra.mxu0 0.0
  %2038 = vmatprep.subr.mxu0 0.0
  %2039 = vmatpush1.msra.mxu0 0.0
  %2040 = vmatprep.subr.mxu0 0.0
  %2041 = vmatpush1.msra.mxu0 0.0
  %2042 = vmatprep.subr.mxu0 0.0
  %2043 = vmatpush1.msra.mxu0 0.0
  %2044 = vmatprep.subr.mxu0 0.0
  %2045 = vmatpush1.msra.mxu0 0.0
  %2046 = vmatprep.mubr.f32.mxu0 0.0
  %2047 = vmatmul.mubr.f32.gmra.mrb[0].mxu0 %v1947
  %v2048 = vpop.f32.mrb[0].mxu0
  %v2049 = vadd.f32 0.0, %v2048
  %v2050 = vpop.f32.mrb[0].mxu0
  %2051 = vmatprep.mubr.f32.mxu0 0.0
  %2052 = vmatmul.mubr.f32.gmra.mrb[0].mxu0 %v1952
  %v2053 = vpop.f32.mrb[0].mxu0
  %v2054 = vadd.f32 0.0, %v2053
  %v2055 = vpop.f32.mrb[0].mxu0
  %2056 = vmatprep.mubr.f32.mxu0 0.0
  %2057 = vmatmul.mubr.f32.gmra.mrb[0].mxu0 %v1957
  %v2058 = vpop.f32.mrb[0].mxu0
  %v2059 = vadd.f32 0.0, %v2058
  %v2060 = vpop.f32.mrb[0].mxu0
  %2061 = vmatprep.mubr.f32.mxu0 0.0
  %2062 = vmatmul.mubr.f32.gmra.mrb[0].mxu0 %v1962
  %v2063 = vpop.f32.mrb[0].mxu0
  %v2064 = vadd.f32 0.0, %v2063
  %v2065 = vpop.f32.mrb[0].mxu0
  %2066 = vdwg.mxu0
  %v2067 = vadd.f32 %v1859, %v2049
  %v2068 = vadd.f32 %v1860, %v2054
  %v2069 = vadd.f32 %v1861, %v2059
  %v2070 = vadd.f32 %v1862, %v2064
  %v2071 = vld [vmem:[%s5] sm:$0x1]
  %v2073 = vlaneseq
  %v2074 = vshrl.u32 %v2073, 7
  %v2075 = vsub.s32 0, %v2074
  %v2076 = vrot.slane %v2071, %v2075
  %v2078 = vadd.f32 %v2067, %v2076
  %v2079 = vadd.f32 %v2068, %v2076
  %v2080 = vadd.f32 %v2069, %v2076
  %v2081 = vadd.f32 %v2070, %v2076
  %vm2082 = vcmp.gt.f32.partialorder %v2078, 0.0
  %vm2083 = vcmp.gt.f32.partialorder %v2079, 0.0
  %vm2084 = vcmp.gt.f32.partialorder %v2080, 0.0
  %vm2085 = vcmp.gt.f32.partialorder %v2081, 0.0
  %v2086 = vmul.f32 %v2078, 0.2
  %v2087 = vmul.f32 %v2079, 0.2
  %v2088 = vmul.f32 %v2080, 0.2
  %v2089 = vmul.f32 %v2081, 0.2
  %v2090 = vsel %vm2082, %v2078, %v2086
  %v2091 = vsel %vm2083, %v2079, %v2087
  %v2092 = vsel %vm2084, %v2080, %v2088
  %v2093 = vsel %vm2085, %v2081, %v2089
  %v2094 = vlaneseq
  %v2095 = vshrl.u32 %v2094, 7
  %v2096 = vadd.s32 %v2095, 8
  %vm2097 = vcmp.eq.s32.totalorder %v2095, 0
  %vm2098 = vcmp.eq.s32.totalorder %v2096, 0
  %v2099 = vsel %vm2097, %v2090, 0.0
  %v2100 = vsel %vm2098, %v2091, 0.0
  %v2101 = vsel %vm2097, %v2092, 0.0
  %v2102 = vsel %vm2098, %v2093, 0.0
  %v2103 = vld [vmem:[%s6] sm:$0xff]
  %v2104 = vld [vmem:[%s6 + $0x8] sm:$0xff]
  %v2105 = vld [vmem:[%s6 + $0x10] sm:$0xff]
  %v2106 = vld [vmem:[%s6 + $0x18] sm:$0xff]
  %v2107 = vld [vmem:[%s6 + $0x20] sm:$0xff]
  %v2108 = vld [vmem:[%s6 + $0x28] sm:$0xff]
  %v2109 = vld [vmem:[%s6 + $0x30] sm:$0xff]
  %v2110 = vld [vmem:[%s6 + $0x38] sm:$0xff]
  %v2111 = vld [vmem:[%s6 + $0x40] sm:$0xff]
  %v2112 = vld [vmem:[%s6 + $0x48] sm:$0xff]
  %v2113 = vld [vmem:[%s6 + $0x50] sm:$0xff]
  %v2114 = vld [vmem:[%s6 + $0x58] sm:$0xff]
  %v2115 = vld [vmem:[%s6 + $0x60] sm:$0xff]
  %v2116 = vld [vmem:[%s6 + $0x68] sm:$0xff]
  %v2117 = vld [vmem:[%s6 + $0x70] sm:$0xff]
  %v2118 = vld [vmem:[%s6 + $0x78] sm:$0xff]
  %vm2119 = vcmp.eq.s32.totalorder %v2095, 1
  %vm2120 = vcmp.eq.s32.totalorder %v2096, 1
  %v2121 = vsel %vm2119, %v2090, 0.0
  %v2122 = vsel %vm2120, %v2091, 0.0
  %v2123 = vsel %vm2119, %v2092, 0.0
  %v2124 = vsel %vm2120, %v2093, 0.0
  %s2125 = scalar_lea.vmem %s6, 128
  %v2126 = vld [vmem:[%s2125] sm:$0xff]
  %v2127 = vld [vmem:[%s2125 + $0x8] sm:$0xff]
  %v2128 = vld [vmem:[%s2125 + $0x10] sm:$0xff]
  %v2129 = vld [vmem:[%s2125 + $0x18] sm:$0xff]
  %v2130 = vld [vmem:[%s2125 + $0x20] sm:$0xff]
  %v2131 = vld [vmem:[%s2125 + $0x28] sm:$0xff]
  %v2132 = vld [vmem:[%s2125 + $0x30] sm:$0xff]
  %v2133 = vld [vmem:[%s2125 + $0x38] sm:$0xff]
  %v2134 = vld [vmem:[%s2125 + $0x40] sm:$0xff]
  %v2135 = vld [vmem:[%s2125 + $0x48] sm:$0xff]
  %v2136 = vld [vmem:[%s2125 + $0x50] sm:$0xff]
  %v2137 = vld [vmem:[%s2125 + $0x58] sm:$0xff]
  %v2138 = vld [vmem:[%s2125 + $0x60] sm:$0xff]
  %v2139 = vld [vmem:[%s2125 + $0x68] sm:$0xff]
  %v2140 = vld [vmem:[%s2125 + $0x70] sm:$0xff]
  %v2141 = vld [vmem:[%s2125 + $0x78] sm:$0xff]
  %2142 = vmatprep.subr.mxu0 0.0
  %2143 = vmatpush1.msra.mxu0 %v2126
  %2144 = vmatprep.subr.mxu0 0.0
  %2145 = vmatpush1.msra.mxu0 %v2127
  %2146 = vmatprep.subr.mxu0 0.0
  %2147 = vmatpush1.msra.mxu0 %v2128
  %2148 = vmatprep.subr.mxu0 0.0
  %2149 = vmatpush1.msra.mxu0 %v2129
  %2150 = vmatprep.subr.mxu0 0.0
  %2151 = vmatpush1.msra.mxu0 %v2130
  %2152 = vmatprep.subr.mxu0 0.0
  %2153 = vmatpush1.msra.mxu0 %v2131
  %2154 = vmatprep.subr.mxu0 0.0
  %2155 = vmatpush1.msra.mxu0 %v2132
  %2156 = vmatprep.subr.mxu0 0.0
  %2157 = vmatpush1.msra.mxu0 %v2133
  %2158 = vmatprep.subr.mxu0 0.0
  %2159 = vmatpush1.msra.mxu0 %v2134
  %2160 = vmatprep.subr.mxu0 0.0
  %2161 = vmatpush1.msra.mxu0 %v2135
  %2162 = vmatprep.subr.mxu0 0.0
  %2163 = vmatpush1.msra.mxu0 %v2136
  %2164 = vmatprep.subr.mxu0 0.0
  %2165 = vmatpush1.msra.mxu0 %v2137
  %2166 = vmatprep.subr.mxu0 0.0
  %2167 = vmatpush1.msra.mxu0 %v2138
  %2168 = vmatprep.subr.mxu0 0.0
  %2169 = vmatpush1.msra.mxu0 %v2139
  %2170 = vmatprep.subr.mxu0 0.0
  %2171 = vmatpush1.msra.mxu0 %v2140
  %2172 = vmatprep.subr.mxu0 0.0
  %2173 = vmatpush1.msra.mxu0 %v2141
  %2174 = vmatprep.subr.mxu0 0.0
  %2175 = vmatpush1.msra.mxu0 0.0
  %2176 = vmatprep.subr.mxu0 0.0
  %2177 = vmatpush1.msra.mxu0 0.0
  %2178 = vmatprep.subr.mxu0 0.0
  %2179 = vmatpush1.msra.mxu0 0.0
  %2180 = vmatprep.subr.mxu0 0.0
  %2181 = vmatpush1.msra.mxu0 0.0
  %2182 = vmatprep.subr.mxu0 0.0
  %2183 = vmatpush1.msra.mxu0 0.0
  %2184 = vmatprep.subr.mxu0 0.0
  %2185 = vmatpush1.msra.mxu0 0.0
  %2186 = vmatprep.subr.mxu0 0.0
  %2187 = vmatpush1.msra.mxu0 0.0
  %2188 = vmatprep.subr.mxu0 0.0
  %2189 = vmatpush1.msra.mxu0 0.0
  %2190 = vmatprep.subr.mxu0 0.0
  %2191 = vmatpush1.msra.mxu0 0.0
  %2192 = vmatprep.subr.mxu0 0.0
  %2193 = vmatpush1.msra.mxu0 0.0
  %2194 = vmatprep.subr.mxu0 0.0
  %2195 = vmatpush1.msra.mxu0 0.0
  %2196 = vmatprep.subr.mxu0 0.0
  %2197 = vmatpush1.msra.mxu0 0.0
  %2198 = vmatprep.subr.mxu0 0.0
  %2199 = vmatpush1.msra.mxu0 0.0
  %2200 = vmatprep.subr.mxu0 0.0
  %2201 = vmatpush1.msra.mxu0 0.0
  %2202 = vmatprep.subr.mxu0 0.0
  %2203 = vmatpush1.msra.mxu0 0.0
  %2204 = vmatprep.subr.mxu0 0.0
  %2205 = vmatpush1.msra.mxu0 0.0
  %2206 = vmatprep.mubr.f32.mxu0 0.0
  %2207 = vmatmul.mubr.f32.gmra.mrb[0].mxu0 %v2121
  %v2208 = vpop.f32.mrb[0].mxu0
  %v2209 = vadd.f32 0.0, %v2208
  %v2210 = vpop.f32.mrb[0].mxu0
  %2211 = vmatprep.mubr.f32.mxu0 0.0
  %2212 = vmatmul.mubr.f32.gmra.mrb[0].mxu0 %v2122
  %v2213 = vpop.f32.mrb[0].mxu0
  %v2214 = vadd.f32 0.0, %v2213
  %v2215 = vpop.f32.mrb[0].mxu0
  %2216 = vmatprep.mubr.f32.mxu0 0.0
  %2217 = vmatmul.mubr.f32.gmra.mrb[0].mxu0 %v2123
  %v2218 = vpop.f32.mrb[0].mxu0
  %v2219 = vadd.f32 0.0, %v2218
  %v2220 = vpop.f32.mrb[0].mxu0
  %2221 = vmatprep.mubr.f32.mxu0 0.0
  %2222 = vmatmul.mubr.f32.gmra.mrb[0].mxu0 %v2124
  %v2223 = vpop.f32.mrb[0].mxu0
  %v2224 = vadd.f32 0.0, %v2223
  %v2225 = vpop.f32.mrb[0].mxu0
  %2226 = vdwg.mxu0
  %2227 = vmatprep.subr.mxu0 0.0
  %2228 = vmatpush1.msra.mxu0 %v2103
  %2229 = vmatprep.subr.mxu0 0.0
  %2230 = vmatpush1.msra.mxu0 %v2104
  %2231 = vmatprep.subr.mxu0 0.0
  %2232 = vmatpush1.msra.mxu0 %v2105
  %2233 = vmatprep.subr.mxu0 0.0
  %2234 = vmatpush1.msra.mxu0 %v2106
  %2235 = vmatprep.subr.mxu0 0.0
  %2236 = vmatpush1.msra.mxu0 %v2107
  %2237 = vmatprep.subr.mxu0 0.0
  %2238 = vmatpush1.msra.mxu0 %v2108
  %2239 = vmatprep.subr.mxu0 0.0
  %2240 = vmatpush1.msra.mxu0 %v2109
  %2241 = vmatprep.subr.mxu0 0.0
  %2242 = vmatpush1.msra.mxu0 %v2110
  %2243 = vmatprep.subr.mxu0 0.0
  %2244 = vmatpush1.msra.mxu0 %v2111
  %2245 = vmatprep.subr.mxu0 0.0
  %2246 = vmatpush1.msra.mxu0 %v2112
  %2247 = vmatprep.subr.mxu0 0.0
  %2248 = vmatpush1.msra.mxu0 %v2113
  %2249 = vmatprep.subr.mxu0 0.0
  %2250 = vmatpush1.msra.mxu0 %v2114
  %2251 = vmatprep.subr.mxu0 0.0
  %2252 = vmatpush1.msra.mxu0 %v2115
  %2253 = vmatprep.subr.mxu0 0.0
  %2254 = vmatpush1.msra.mxu0 %v2116
  %2255 = vmatprep.subr.mxu0 0.0
  %2256 = vmatpush1.msra.mxu0 %v2117
  %2257 = vmatprep.subr.mxu0 0.0
  %2258 = vmatpush1.msra.mxu0 %v2118
  %2259 = vmatprep.subr.mxu0 0.0
  %2260 = vmatpush1.msra.mxu0 0.0
  %2261 = vmatprep.subr.mxu0 0.0
  %2262 = vmatpush1.msra.mxu0 0.0
  %2263 = vmatprep.subr.mxu0 0.0
  %2264 = vmatpush1.msra.mxu0 0.0
  %2265 = vmatprep.subr.mxu0 0.0
  %2266 = vmatpush1.msra.mxu0 0.0
  %2267 = vmatprep.subr.mxu0 0.0
  %2268 = vmatpush1.msra.mxu0 0.0
  %2269 = vmatprep.subr.mxu0 0.0
  %2270 = vmatpush1.msra.mxu0 0.0
  %2271 = vmatprep.subr.mxu0 0.0
  %2272 = vmatpush1.msra.mxu0 0.0
  %2273 = vmatprep.subr.mxu0 0.0
  %2274 = vmatpush1.msra.mxu0 0.0
  %2275 = vmatprep.subr.mxu0 0.0
  %2276 = vmatpush1.msra.mxu0 0.0
  %2277 = vmatprep.subr.mxu0 0.0
  %2278 = vmatpush1.msra.mxu0 0.0
  %2279 = vmatprep.subr.mxu0 0.0
  %2280 = vmatpush1.msra.mxu0 0.0
  %2281 = vmatprep.subr.mxu0 0.0
  %2282 = vmatpush1.msra.mxu0 0.0
  %2283 = vmatprep.subr.mxu0 0.0
  %2284 = vmatpush1.msra.mxu0 0.0
  %2285 = vmatprep.subr.mxu0 0.0
  %2286 = vmatpush1.msra.mxu0 0.0
  %2287 = vmatprep.subr.mxu0 0.0
  %2288 = vmatpush1.msra.mxu0 0.0
  %2289 = vmatprep.subr.mxu0 0.0
  %2290 = vmatpush1.msra.mxu0 0.0
  %2291 = vmatprep.mubr.f32.mxu0 0.0
  %2292 = vmatmul.mubr.f32.gmra.mrb[0].mxu0 %v2099
  %v2293 = vpop.f32.mrb[0].mxu0
  %v2294 = vadd.f32 %v2209, %v2293
  %v2295 = vpop.f32.mrb[0].mxu0
  %2296 = vmatprep.mubr.f32.mxu0 0.0
  %2297 = vmatmul.mubr.f32.gmra.mrb[0].mxu0 %v2100
  %v2298 = vpop.f32.mrb[0].mxu0
  %v2299 = vadd.f32 %v2214, %v2298
  %v2300 = vpop.f32.mrb[0].mxu0
  %2301 = vmatprep.mubr.f32.mxu0 0.0
  %2302 = vmatmul.mubr.f32.gmra.mrb[0].mxu0 %v2101
  %v2303 = vpop.f32.mrb[0].mxu0
  %v2304 = vadd.f32 %v2219, %v2303
  %v2305 = vpop.f32.mrb[0].mxu0
  %2306 = vmatprep.mubr.f32.mxu0 0.0
  %2307 = vmatmul.mubr.f32.gmra.mrb[0].mxu0 %v2102
  %v2308 = vpop.f32.mrb[0].mxu0
  %v2309 = vadd.f32 %v2224, %v2308
  %v2310 = vpop.f32.mrb[0].mxu0
  %2311 = vdwg.mxu0
  %vm2312 = vcmp.eq.s32.totalorder %v2095, 2
  %vm2313 = vcmp.eq.s32.totalorder %v2096, 2
  %v2314 = vsel %vm2312, %v2090, 0.0
  %v2315 = vsel %vm2313, %v2091, 0.0
  %v2316 = vsel %vm2312, %v2092, 0.0
  %v2317 = vsel %vm2313, %v2093, 0.0
  %s2318 = scalar_lea.vmem %s6, 256
  %v2319 = vld [vmem:[%s2318] sm:$0xff]
  %v2320 = vld [vmem:[%s2318 + $0x8] sm:$0xff]
  %v2321 = vld [vmem:[%s2318 + $0x10] sm:$0xff]
  %v2322 = vld [vmem:[%s2318 + $0x18] sm:$0xff]
  %v2323 = vld [vmem:[%s2318 + $0x20] sm:$0xff]
  %v2324 = vld [vmem:[%s2318 + $0x28] sm:$0xff]
  %v2325 = vld [vmem:[%s2318 + $0x30] sm:$0xff]
  %v2326 = vld [vmem:[%s2318 + $0x38] sm:$0xff]
  %v2327 = vld [vmem:[%s2318 + $0x40] sm:$0xff]
  %v2328 = vld [vmem:[%s2318 + $0x48] sm:$0xff]
  %v2329 = vld [vmem:[%s2318 + $0x50] sm:$0xff]
  %v2330 = vld [vmem:[%s2318 + $0x58] sm:$0xff]
  %v2331 = vld [vmem:[%s2318 + $0x60] sm:$0xff]
  %v2332 = vld [vmem:[%s2318 + $0x68] sm:$0xff]
  %v2333 = vld [vmem:[%s2318 + $0x70] sm:$0xff]
  %v2334 = vld [vmem:[%s2318 + $0x78] sm:$0xff]
  %2335 = vmatprep.subr.mxu0 0.0
  %2336 = vmatpush1.msra.mxu0 %v2319
  %2337 = vmatprep.subr.mxu0 0.0
  %2338 = vmatpush1.msra.mxu0 %v2320
  %2339 = vmatprep.subr.mxu0 0.0
  %2340 = vmatpush1.msra.mxu0 %v2321
  %2341 = vmatprep.subr.mxu0 0.0
  %2342 = vmatpush1.msra.mxu0 %v2322
  %2343 = vmatprep.subr.mxu0 0.0
  %2344 = vmatpush1.msra.mxu0 %v2323
  %2345 = vmatprep.subr.mxu0 0.0
  %2346 = vmatpush1.msra.mxu0 %v2324
  %2347 = vmatprep.subr.mxu0 0.0
  %2348 = vmatpush1.msra.mxu0 %v2325
  %2349 = vmatprep.subr.mxu0 0.0
  %2350 = vmatpush1.msra.mxu0 %v2326
  %2351 = vmatprep.subr.mxu0 0.0
  %2352 = vmatpush1.msra.mxu0 %v2327
  %2353 = vmatprep.subr.mxu0 0.0
  %2354 = vmatpush1.msra.mxu0 %v2328
  %2355 = vmatprep.subr.mxu0 0.0
  %2356 = vmatpush1.msra.mxu0 %v2329
  %2357 = vmatprep.subr.mxu0 0.0
  %2358 = vmatpush1.msra.mxu0 %v2330
  %2359 = vmatprep.subr.mxu0 0.0
  %2360 = vmatpush1.msra.mxu0 %v2331
  %2361 = vmatprep.subr.mxu0 0.0
  %2362 = vmatpush1.msra.mxu0 %v2332
  %2363 = vmatprep.subr.mxu0 0.0
  %2364 = vmatpush1.msra.mxu0 %v2333
  %2365 = vmatprep.subr.mxu0 0.0
  %2366 = vmatpush1.msra.mxu0 %v2334
  %2367 = vmatprep.subr.mxu0 0.0
  %2368 = vmatpush1.msra.mxu0 0.0
  %2369 = vmatprep.subr.mxu0 0.0
  %2370 = vmatpush1.msra.mxu0 0.0
  %2371 = vmatprep.subr.mxu0 0.0
  %2372 = vmatpush1.msra.mxu0 0.0
  %2373 = vmatprep.subr.mxu0 0.0
  %2374 = vmatpush1.msra.mxu0 0.0
  %2375 = vmatprep.subr.mxu0 0.0
  %2376 = vmatpush1.msra.mxu0 0.0
  %2377 = vmatprep.subr.mxu0 0.0
  %2378 = vmatpush1.msra.mxu0 0.0
  %2379 = vmatprep.subr.mxu0 0.0
  %2380 = vmatpush1.msra.mxu0 0.0
  %2381 = vmatprep.subr.mxu0 0.0
  %2382 = vmatpush1.msra.mxu0 0.0
  %2383 = vmatprep.subr.mxu0 0.0
  %2384 = vmatpush1.msra.mxu0 0.0
  %2385 = vmatprep.subr.mxu0 0.0
  %2386 = vmatpush1.msra.mxu0 0.0
  %2387 = vmatprep.subr.mxu0 0.0
  %2388 = vmatpush1.msra.mxu0 0.0
  %2389 = vmatprep.subr.mxu0 0.0
  %2390 = vmatpush1.msra.mxu0 0.0
  %2391 = vmatprep.subr.mxu0 0.0
  %2392 = vmatpush1.msra.mxu0 0.0
  %2393 = vmatprep.subr.mxu0 0.0
  %2394 = vmatpush1.msra.mxu0 0.0
  %2395 = vmatprep.subr.mxu0 0.0
  %2396 = vmatpush1.msra.mxu0 0.0
  %2397 = vmatprep.subr.mxu0 0.0
  %2398 = vmatpush1.msra.mxu0 0.0
  %2399 = vmatprep.mubr.f32.mxu0 0.0
  %2400 = vmatmul.mubr.f32.gmra.mrb[0].mxu0 %v2314
  %v2401 = vpop.f32.mrb[0].mxu0
  %v2402 = vadd.f32 0.0, %v2401
  %v2403 = vpop.f32.mrb[0].mxu0
  %2404 = vmatprep.mubr.f32.mxu0 0.0
  %2405 = vmatmul.mubr.f32.gmra.mrb[0].mxu0 %v2315
  %v2406 = vpop.f32.mrb[0].mxu0
  %v2407 = vadd.f32 0.0, %v2406
  %v2408 = vpop.f32.mrb[0].mxu0
  %2409 = vmatprep.mubr.f32.mxu0 0.0
  %2410 = vmatmul.mubr.f32.gmra.mrb[0].mxu0 %v2316
  %v2411 = vpop.f32.mrb[0].mxu0
  %v2412 = vadd.f32 0.0, %v2411
  %v2413 = vpop.f32.mrb[0].mxu0
  %2414 = vmatprep.mubr.f32.mxu0 0.0
  %2415 = vmatmul.mubr.f32.gmra.mrb[0].mxu0 %v2317
  %v2416 = vpop.f32.mrb[0].mxu0
  %v2417 = vadd.f32 0.0, %v2416
  %v2418 = vpop.f32.mrb[0].mxu0
  %2419 = vdwg.mxu0
  %v2420 = vadd.f32 %v2294, %v2402
  %v2421 = vadd.f32 %v2299, %v2407
  %v2422 = vadd.f32 %v2304, %v2412
  %v2423 = vadd.f32 %v2309, %v2417
  %vm2424 = vcmp.eq.s32.totalorder %v2095, 3
  %vm2425 = vcmp.eq.s32.totalorder %v2096, 3
  %v2426 = vsel %vm2424, %v2090, 0.0
  %v2427 = vsel %vm2425, %v2091, 0.0
  %v2428 = vsel %vm2424, %v2092, 0.0
  %v2429 = vsel %vm2425, %v2093, 0.0
  %s2430 = scalar_lea.vmem %s6, 384
  %v2431 = vld [vmem:[%s2430] sm:$0xff]
  %v2432 = vld [vmem:[%s2430 + $0x8] sm:$0xff]
  %v2433 = vld [vmem:[%s2430 + $0x10] sm:$0xff]
  %v2434 = vld [vmem:[%s2430 + $0x18] sm:$0xff]
  %v2435 = vld [vmem:[%s2430 + $0x20] sm:$0xff]
  %v2436 = vld [vmem:[%s2430 + $0x28] sm:$0xff]
  %v2437 = vld [vmem:[%s2430 + $0x30] sm:$0xff]
  %v2438 = vld [vmem:[%s2430 + $0x38] sm:$0xff]
  %v2439 = vld [vmem:[%s2430 + $0x40] sm:$0xff]
  %v2440 = vld [vmem:[%s2430 + $0x48] sm:$0xff]
  %v2441 = vld [vmem:[%s2430 + $0x50] sm:$0xff]
  %v2442 = vld [vmem:[%s2430 + $0x58] sm:$0xff]
  %v2443 = vld [vmem:[%s2430 + $0x60] sm:$0xff]
  %v2444 = vld [vmem:[%s2430 + $0x68] sm:$0xff]
  %v2445 = vld [vmem:[%s2430 + $0x70] sm:$0xff]
  %v2446 = vld [vmem:[%s2430 + $0x78] sm:$0xff]
  %2447 = vmatprep.subr.mxu0 0.0
  %2448 = vmatpush1.msra.mxu0 %v2431
  %2449 = vmatprep.subr.mxu0 0.0
  %2450 = vmatpush1.msra.mxu0 %v2432
  %2451 = vmatprep.subr.mxu0 0.0
  %2452 = vmatpush1.msra.mxu0 %v2433
  %2453 = vmatprep.subr.mxu0 0.0
  %2454 = vmatpush1.msra.mxu0 %v2434
  %2455 = vmatprep.subr.mxu0 0.0
  %2456 = vmatpush1.msra.mxu0 %v2435
  %2457 = vmatprep.subr.mxu0 0.0
  %2458 = vmatpush1.msra.mxu0 %v2436
  %2459 = vmatprep.subr.mxu0 0.0
  %2460 = vmatpush1.msra.mxu0 %v2437
  %2461 = vmatprep.subr.mxu0 0.0
  %2462 = vmatpush1.msra.mxu0 %v2438
  %2463 = vmatprep.subr.mxu0 0.0
  %2464 = vmatpush1.msra.mxu0 %v2439
  %2465 = vmatprep.subr.mxu0 0.0
  %2466 = vmatpush1.msra.mxu0 %v2440
  %2467 = vmatprep.subr.mxu0 0.0
  %2468 = vmatpush1.msra.mxu0 %v2441
  %2469 = vmatprep.subr.mxu0 0.0
  %2470 = vmatpush1.msra.mxu0 %v2442
  %2471 = vmatprep.subr.mxu0 0.0
  %2472 = vmatpush1.msra.mxu0 %v2443
  %2473 = vmatprep.subr.mxu0 0.0
  %2474 = vmatpush1.msra.mxu0 %v2444
  %2475 = vmatprep.subr.mxu0 0.0
  %2476 = vmatpush1.msra.mxu0 %v2445
  %2477 = vmatprep.subr.mxu0 0.0
  %2478 = vmatpush1.msra.mxu0 %v2446
  %2479 = vmatprep.subr.mxu0 0.0
  %2480 = vmatpush1.msra.mxu0 0.0
  %2481 = vmatprep.subr.mxu0 0.0
  %2482 = vmatpush1.msra.mxu0 0.0
  %2483 = vmatprep.subr.mxu0 0.0
  %2484 = vmatpush1.msra.mxu0 0.0
  %2485 = vmatprep.subr.mxu0 0.0
  %2486 = vmatpush1.msra.mxu0 0.0
  %2487 = vmatprep.subr.mxu0 0.0
  %2488 = vmatpush1.msra.mxu0 0.0
  %2489 = vmatprep.subr.mxu0 0.0
  %2490 = vmatpush1.msra.mxu0 0.0
  %2491 = vmatprep.subr.mxu0 0.0
  %2492 = vmatpush1.msra.mxu0 0.0
  %2493 = vmatprep.subr.mxu0 0.0
  %2494 = vmatpush1.msra.mxu0 0.0
  %2495 = vmatprep.subr.mxu0 0.0
  %2496 = vmatpush1.msra.mxu0 0.0
  %2497 = vmatprep.subr.mxu0 0.0
  %2498 = vmatpush1.msra.mxu0 0.0
  %2499 = vmatprep.subr.mxu0 0.0
  %2500 = vmatpush1.msra.mxu0 0.0
  %2501 = vmatprep.subr.mxu0 0.0
  %2502 = vmatpush1.msra.mxu0 0.0
  %2503 = vmatprep.subr.mxu0 0.0
  %2504 = vmatpush1.msra.mxu0 0.0
  %2505 = vmatprep.subr.mxu0 0.0
  %2506 = vmatpush1.msra.mxu0 0.0
  %2507 = vmatprep.subr.mxu0 0.0
  %2508 = vmatpush1.msra.mxu0 0.0
  %2509 = vmatprep.subr.mxu0 0.0
  %2510 = vmatpush1.msra.mxu0 0.0
  %2511 = vmatprep.mubr.f32.mxu0 0.0
  %2512 = vmatmul.mubr.f32.gmra.mrb[0].mxu0 %v2426
  %v2513 = vpop.f32.mrb[0].mxu0
  %v2514 = vadd.f32 0.0, %v2513
  %v2515 = vpop.f32.mrb[0].mxu0
  %2516 = vmatprep.mubr.f32.mxu0 0.0
  %2517 = vmatmul.mubr.f32.gmra.mrb[0].mxu0 %v2427
  %v2518 = vpop.f32.mrb[0].mxu0
  %v2519 = vadd.f32 0.0, %v2518
  %v2520 = vpop.f32.mrb[0].mxu0
  %2521 = vmatprep.mubr.f32.mxu0 0.0
  %2522 = vmatmul.mubr.f32.gmra.mrb[0].mxu0 %v2428
  %v2523 = vpop.f32.mrb[0].mxu0
  %v2524 = vadd.f32 0.0, %v2523
  %v2525 = vpop.f32.mrb[0].mxu0
  %2526 = vmatprep.mubr.f32.mxu0 0.0
  %2527 = vmatmul.mubr.f32.gmra.mrb[0].mxu0 %v2429
  %v2528 = vpop.f32.mrb[0].mxu0
  %v2529 = vadd.f32 0.0, %v2528
  %v2530 = vpop.f32.mrb[0].mxu0
  %2531 = vdwg.mxu0
  %v2532 = vadd.f32 %v2420, %v2514
  %v2533 = vadd.f32 %v2421, %v2519
  %v2534 = vadd.f32 %v2422, %v2524
  %v2535 = vadd.f32 %v2423, %v2529
  %vm2536 = vcmp.eq.s32.totalorder %v2095, 4
  %vm2537 = vcmp.eq.s32.totalorder %v2096, 4
  %v2538 = vsel %vm2536, %v2090, 0.0
  %v2539 = vsel %vm2537, %v2091, 0.0
  %v2540 = vsel %vm2536, %v2092, 0.0
  %v2541 = vsel %vm2537, %v2093, 0.0
  %s2542 = scalar_lea.vmem %s6, 512
  %v2543 = vld [vmem:[%s2542] sm:$0xff]
  %v2544 = vld [vmem:[%s2542 + $0x8] sm:$0xff]
  %v2545 = vld [vmem:[%s2542 + $0x10] sm:$0xff]
  %v2546 = vld [vmem:[%s2542 + $0x18] sm:$0xff]
  %v2547 = vld [vmem:[%s2542 + $0x20] sm:$0xff]
  %v2548 = vld [vmem:[%s2542 + $0x28] sm:$0xff]
  %v2549 = vld [vmem:[%s2542 + $0x30] sm:$0xff]
  %v2550 = vld [vmem:[%s2542 + $0x38] sm:$0xff]
  %v2551 = vld [vmem:[%s2542 + $0x40] sm:$0xff]
  %v2552 = vld [vmem:[%s2542 + $0x48] sm:$0xff]
  %v2553 = vld [vmem:[%s2542 + $0x50] sm:$0xff]
  %v2554 = vld [vmem:[%s2542 + $0x58] sm:$0xff]
  %v2555 = vld [vmem:[%s2542 + $0x60] sm:$0xff]
  %v2556 = vld [vmem:[%s2542 + $0x68] sm:$0xff]
  %v2557 = vld [vmem:[%s2542 + $0x70] sm:$0xff]
  %v2558 = vld [vmem:[%s2542 + $0x78] sm:$0xff]
  %2559 = vmatprep.subr.mxu0 0.0
  %2560 = vmatpush1.msra.mxu0 %v2543
  %2561 = vmatprep.subr.mxu0 0.0
  %2562 = vmatpush1.msra.mxu0 %v2544
  %2563 = vmatprep.subr.mxu0 0.0
  %2564 = vmatpush1.msra.mxu0 %v2545
  %2565 = vmatprep.subr.mxu0 0.0
  %2566 = vmatpush1.msra.mxu0 %v2546
  %2567 = vmatprep.subr.mxu0 0.0
  %2568 = vmatpush1.msra.mxu0 %v2547
  %2569 = vmatprep.subr.mxu0 0.0
  %2570 = vmatpush1.msra.mxu0 %v2548
  %2571 = vmatprep.subr.mxu0 0.0
  %2572 = vmatpush1.msra.mxu0 %v2549
  %2573 = vmatprep.subr.mxu0 0.0
  %2574 = vmatpush1.msra.mxu0 %v2550
  %2575 = vmatprep.subr.mxu0 0.0
  %2576 = vmatpush1.msra.mxu0 %v2551
  %2577 = vmatprep.subr.mxu0 0.0
  %2578 = vmatpush1.msra.mxu0 %v2552
  %2579 = vmatprep.subr.mxu0 0.0
  %2580 = vmatpush1.msra.mxu0 %v2553
  %2581 = vmatprep.subr.mxu0 0.0
  %2582 = vmatpush1.msra.mxu0 %v2554
  %2583 = vmatprep.subr.mxu0 0.0
  %2584 = vmatpush1.msra.mxu0 %v2555
  %2585 = vmatprep.subr.mxu0 0.0
  %2586 = vmatpush1.msra.mxu0 %v2556
  %2587 = vmatprep.subr.mxu0 0.0
  %2588 = vmatpush1.msra.mxu0 %v2557
  %2589 = vmatprep.subr.mxu0 0.0
  %2590 = vmatpush1.msra.mxu0 %v2558
  %2591 = vmatprep.subr.mxu0 0.0
  %2592 = vmatpush1.msra.mxu0 0.0
  %2593 = vmatprep.subr.mxu0 0.0
  %2594 = vmatpush1.msra.mxu0 0.0
  %2595 = vmatprep.subr.mxu0 0.0
  %2596 = vmatpush1.msra.mxu0 0.0
  %2597 = vmatprep.subr.mxu0 0.0
  %2598 = vmatpush1.msra.mxu0 0.0
  %2599 = vmatprep.subr.mxu0 0.0
  %2600 = vmatpush1.msra.mxu0 0.0
  %2601 = vmatprep.subr.mxu0 0.0
  %2602 = vmatpush1.msra.mxu0 0.0
  %2603 = vmatprep.subr.mxu0 0.0
  %2604 = vmatpush1.msra.mxu0 0.0
  %2605 = vmatprep.subr.mxu0 0.0
  %2606 = vmatpush1.msra.mxu0 0.0
  %2607 = vmatprep.subr.mxu0 0.0
  %2608 = vmatpush1.msra.mxu0 0.0
  %2609 = vmatprep.subr.mxu0 0.0
  %2610 = vmatpush1.msra.mxu0 0.0
  %2611 = vmatprep.subr.mxu0 0.0
  %2612 = vmatpush1.msra.mxu0 0.0
  %2613 = vmatprep.subr.mxu0 0.0
  %2614 = vmatpush1.msra.mxu0 0.0
  %2615 = vmatprep.subr.mxu0 0.0
  %2616 = vmatpush1.msra.mxu0 0.0
  %2617 = vmatprep.subr.mxu0 0.0
  %2618 = vmatpush1.msra.mxu0 0.0
  %2619 = vmatprep.subr.mxu0 0.0
  %2620 = vmatpush1.msra.mxu0 0.0
  %2621 = vmatprep.subr.mxu0 0.0
  %2622 = vmatpush1.msra.mxu0 0.0
  %2623 = vmatprep.mubr.f32.mxu0 0.0
  %2624 = vmatmul.mubr.f32.gmra.mrb[0].mxu0 %v2538
  %v2625 = vpop.f32.mrb[0].mxu0
  %v2626 = vadd.f32 0.0, %v2625
  %v2627 = vpop.f32.mrb[0].mxu0
  %2628 = vmatprep.mubr.f32.mxu0 0.0
  %2629 = vmatmul.mubr.f32.gmra.mrb[0].mxu0 %v2539
  %v2630 = vpop.f32.mrb[0].mxu0
  %v2631 = vadd.f32 0.0, %v2630
  %v2632 = vpop.f32.mrb[0].mxu0
  %2633 = vmatprep.mubr.f32.mxu0 0.0
  %2634 = vmatmul.mubr.f32.gmra.mrb[0].mxu0 %v2540
  %v2635 = vpop.f32.mrb[0].mxu0
  %v2636 = vadd.f32 0.0, %v2635
  %v2637 = vpop.f32.mrb[0].mxu0
  %2638 = vmatprep.mubr.f32.mxu0 0.0
  %2639 = vmatmul.mubr.f32.gmra.mrb[0].mxu0 %v2541
  %v2640 = vpop.f32.mrb[0].mxu0
  %v2641 = vadd.f32 0.0, %v2640
  %v2642 = vpop.f32.mrb[0].mxu0
  %2643 = vdwg.mxu0
  %v2644 = vadd.f32 %v2532, %v2626
  %v2645 = vadd.f32 %v2533, %v2631
  %v2646 = vadd.f32 %v2534, %v2636
  %v2647 = vadd.f32 %v2535, %v2641
  %vm2648 = vcmp.eq.s32.totalorder %v2095, 5
  %vm2649 = vcmp.eq.s32.totalorder %v2096, 5
  %v2650 = vsel %vm2648, %v2090, 0.0
  %v2651 = vsel %vm2649, %v2091, 0.0
  %v2652 = vsel %vm2648, %v2092, 0.0
  %v2653 = vsel %vm2649, %v2093, 0.0
  %s2654 = scalar_lea.vmem %s6, 640
  %v2655 = vld [vmem:[%s2654] sm:$0xff]
  %v2656 = vld [vmem:[%s2654 + $0x8] sm:$0xff]
  %v2657 = vld [vmem:[%s2654 + $0x10] sm:$0xff]
  %v2658 = vld [vmem:[%s2654 + $0x18] sm:$0xff]
  %v2659 = vld [vmem:[%s2654 + $0x20] sm:$0xff]
  %v2660 = vld [vmem:[%s2654 + $0x28] sm:$0xff]
  %v2661 = vld [vmem:[%s2654 + $0x30] sm:$0xff]
  %v2662 = vld [vmem:[%s2654 + $0x38] sm:$0xff]
  %v2663 = vld [vmem:[%s2654 + $0x40] sm:$0xff]
  %v2664 = vld [vmem:[%s2654 + $0x48] sm:$0xff]
  %v2665 = vld [vmem:[%s2654 + $0x50] sm:$0xff]
  %v2666 = vld [vmem:[%s2654 + $0x58] sm:$0xff]
  %v2667 = vld [vmem:[%s2654 + $0x60] sm:$0xff]
  %v2668 = vld [vmem:[%s2654 + $0x68] sm:$0xff]
  %v2669 = vld [vmem:[%s2654 + $0x70] sm:$0xff]
  %v2670 = vld [vmem:[%s2654 + $0x78] sm:$0xff]
  %2671 = vmatprep.subr.mxu0 0.0
  %2672 = vmatpush1.msra.mxu0 %v2655
  %2673 = vmatprep.subr.mxu0 0.0
  %2674 = vmatpush1.msra.mxu0 %v2656
  %2675 = vmatprep.subr.mxu0 0.0
  %2676 = vmatpush1.msra.mxu0 %v2657
  %2677 = vmatprep.subr.mxu0 0.0
  %2678 = vmatpush1.msra.mxu0 %v2658
  %2679 = vmatprep.subr.mxu0 0.0
  %2680 = vmatpush1.msra.mxu0 %v2659
  %2681 = vmatprep.subr.mxu0 0.0
  %2682 = vmatpush1.msra.mxu0 %v2660
  %2683 = vmatprep.subr.mxu0 0.0
  %2684 = vmatpush1.msra.mxu0 %v2661
  %2685 = vmatprep.subr.mxu0 0.0
  %2686 = vmatpush1.msra.mxu0 %v2662
  %2687 = vmatprep.subr.mxu0 0.0
  %2688 = vmatpush1.msra.mxu0 %v2663
  %2689 = vmatprep.subr.mxu0 0.0
  %2690 = vmatpush1.msra.mxu0 %v2664
  %2691 = vmatprep.subr.mxu0 0.0
  %2692 = vmatpush1.msra.mxu0 %v2665
  %2693 = vmatprep.subr.mxu0 0.0
  %2694 = vmatpush1.msra.mxu0 %v2666
  %2695 = vmatprep.subr.mxu0 0.0
  %2696 = vmatpush1.msra.mxu0 %v2667
  %2697 = vmatprep.subr.mxu0 0.0
  %2698 = vmatpush1.msra.mxu0 %v2668
  %2699 = vmatprep.subr.mxu0 0.0
  %2700 = vmatpush1.msra.mxu0 %v2669
  %2701 = vmatprep.subr.mxu0 0.0
  %2702 = vmatpush1.msra.mxu0 %v2670
  %2703 = vmatprep.subr.mxu0 0.0
  %2704 = vmatpush1.msra.mxu0 0.0
  %2705 = vmatprep.subr.mxu0 0.0
  %2706 = vmatpush1.msra.mxu0 0.0
  %2707 = vmatprep.subr.mxu0 0.0
  %2708 = vmatpush1.msra.mxu0 0.0
  %2709 = vmatprep.subr.mxu0 0.0
  %2710 = vmatpush1.msra.mxu0 0.0
  %2711 = vmatprep.subr.mxu0 0.0
  %2712 = vmatpush1.msra.mxu0 0.0
  %2713 = vmatprep.subr.mxu0 0.0
  %2714 = vmatpush1.msra.mxu0 0.0
  %2715 = vmatprep.subr.mxu0 0.0
  %2716 = vmatpush1.msra.mxu0 0.0
  %2717 = vmatprep.subr.mxu0 0.0
  %2718 = vmatpush1.msra.mxu0 0.0
  %2719 = vmatprep.subr.mxu0 0.0
  %2720 = vmatpush1.msra.mxu0 0.0
  %2721 = vmatprep.subr.mxu0 0.0
  %2722 = vmatpush1.msra.mxu0 0.0
  %2723 = vmatprep.subr.mxu0 0.0
  %2724 = vmatpush1.msra.mxu0 0.0
  %2725 = vmatprep.subr.mxu0 0.0
  %2726 = vmatpush1.msra.mxu0 0.0
  %2727 = vmatprep.subr.mxu0 0.0
  %2728 = vmatpush1.msra.mxu0 0.0
  %2729 = vmatprep.subr.mxu0 0.0
  %2730 = vmatpush1.msra.mxu0 0.0
  %2731 = vmatprep.subr.mxu0 0.0
  %2732 = vmatpush1.msra.mxu0 0.0
  %2733 = vmatprep.subr.mxu0 0.0
  %2734 = vmatpush1.msra.mxu0 0.0
  %2735 = vmatprep.mubr.f32.mxu0 0.0
  %2736 = vmatmul.mubr.f32.gmra.mrb[0].mxu0 %v2650
  %v2737 = vpop.f32.mrb[0].mxu0
  %v2738 = vadd.f32 0.0, %v2737
  %v2739 = vpop.f32.mrb[0].mxu0
  %2740 = vmatprep.mubr.f32.mxu0 0.0
  %2741 = vmatmul.mubr.f32.gmra.mrb[0].mxu0 %v2651
  %v2742 = vpop.f32.mrb[0].mxu0
  %v2743 = vadd.f32 0.0, %v2742
  %v2744 = vpop.f32.mrb[0].mxu0
  %2745 = vmatprep.mubr.f32.mxu0 0.0
  %2746 = vmatmul.mubr.f32.gmra.mrb[0].mxu0 %v2652
  %v2747 = vpop.f32.mrb[0].mxu0
  %v2748 = vadd.f32 0.0, %v2747
  %v2749 = vpop.f32.mrb[0].mxu0
  %2750 = vmatprep.mubr.f32.mxu0 0.0
  %2751 = vmatmul.mubr.f32.gmra.mrb[0].mxu0 %v2653
  %v2752 = vpop.f32.mrb[0].mxu0
  %v2753 = vadd.f32 0.0, %v2752
  %v2754 = vpop.f32.mrb[0].mxu0
  %2755 = vdwg.mxu0
  %v2756 = vadd.f32 %v2644, %v2738
  %v2757 = vadd.f32 %v2645, %v2743
  %v2758 = vadd.f32 %v2646, %v2748
  %v2759 = vadd.f32 %v2647, %v2753
  %vm2760 = vcmp.eq.s32.totalorder %v2095, 6
  %vm2761 = vcmp.eq.s32.totalorder %v2096, 6
  %v2762 = vsel %vm2760, %v2090, 0.0
  %v2763 = vsel %vm2761, %v2091, 0.0
  %v2764 = vsel %vm2760, %v2092, 0.0
  %v2765 = vsel %vm2761, %v2093, 0.0
  %s2766 = scalar_lea.vmem %s6, 768
  %v2767 = vld [vmem:[%s2766] sm:$0xff]
  %v2768 = vld [vmem:[%s2766 + $0x8] sm:$0xff]
  %v2769 = vld [vmem:[%s2766 + $0x10] sm:$0xff]
  %v2770 = vld [vmem:[%s2766 + $0x18] sm:$0xff]
  %v2771 = vld [vmem:[%s2766 + $0x20] sm:$0xff]
  %v2772 = vld [vmem:[%s2766 + $0x28] sm:$0xff]
  %v2773 = vld [vmem:[%s2766 + $0x30] sm:$0xff]
  %v2774 = vld [vmem:[%s2766 + $0x38] sm:$0xff]
  %v2775 = vld [vmem:[%s2766 + $0x40] sm:$0xff]
  %v2776 = vld [vmem:[%s2766 + $0x48] sm:$0xff]
  %v2777 = vld [vmem:[%s2766 + $0x50] sm:$0xff]
  %v2778 = vld [vmem:[%s2766 + $0x58] sm:$0xff]
  %v2779 = vld [vmem:[%s2766 + $0x60] sm:$0xff]
  %v2780 = vld [vmem:[%s2766 + $0x68] sm:$0xff]
  %v2781 = vld [vmem:[%s2766 + $0x70] sm:$0xff]
  %v2782 = vld [vmem:[%s2766 + $0x78] sm:$0xff]
  %2783 = vmatprep.subr.mxu0 0.0
  %2784 = vmatpush1.msra.mxu0 %v2767
  %2785 = vmatprep.subr.mxu0 0.0
  %2786 = vmatpush1.msra.mxu0 %v2768
  %2787 = vmatprep.subr.mxu0 0.0
  %2788 = vmatpush1.msra.mxu0 %v2769
  %2789 = vmatprep.subr.mxu0 0.0
  %2790 = vmatpush1.msra.mxu0 %v2770
  %2791 = vmatprep.subr.mxu0 0.0
  %2792 = vmatpush1.msra.mxu0 %v2771
  %2793 = vmatprep.subr.mxu0 0.0
  %2794 = vmatpush1.msra.mxu0 %v2772
  %2795 = vmatprep.subr.mxu0 0.0
  %2796 = vmatpush1.msra.mxu0 %v2773
  %2797 = vmatprep.subr.mxu0 0.0
  %2798 = vmatpush1.msra.mxu0 %v2774
  %2799 = vmatprep.subr.mxu0 0.0
  %2800 = vmatpush1.msra.mxu0 %v2775
  %2801 = vmatprep.subr.mxu0 0.0
  %2802 = vmatpush1.msra.mxu0 %v2776
  %2803 = vmatprep.subr.mxu0 0.0
  %2804 = vmatpush1.msra.mxu0 %v2777
  %2805 = vmatprep.subr.mxu0 0.0
  %2806 = vmatpush1.msra.mxu0 %v2778
  %2807 = vmatprep.subr.mxu0 0.0
  %2808 = vmatpush1.msra.mxu0 %v2779
  %2809 = vmatprep.subr.mxu0 0.0
  %2810 = vmatpush1.msra.mxu0 %v2780
  %2811 = vmatprep.subr.mxu0 0.0
  %2812 = vmatpush1.msra.mxu0 %v2781
  %2813 = vmatprep.subr.mxu0 0.0
  %2814 = vmatpush1.msra.mxu0 %v2782
  %2815 = vmatprep.subr.mxu0 0.0
  %2816 = vmatpush1.msra.mxu0 0.0
  %2817 = vmatprep.subr.mxu0 0.0
  %2818 = vmatpush1.msra.mxu0 0.0
  %2819 = vmatprep.subr.mxu0 0.0
  %2820 = vmatpush1.msra.mxu0 0.0
  %2821 = vmatprep.subr.mxu0 0.0
  %2822 = vmatpush1.msra.mxu0 0.0
  %2823 = vmatprep.subr.mxu0 0.0
  %2824 = vmatpush1.msra.mxu0 0.0
  %2825 = vmatprep.subr.mxu0 0.0
  %2826 = vmatpush1.msra.mxu0 0.0
  %2827 = vmatprep.subr.mxu0 0.0
  %2828 = vmatpush1.msra.mxu0 0.0
  %2829 = vmatprep.subr.mxu0 0.0
  %2830 = vmatpush1.msra.mxu0 0.0
  %2831 = vmatprep.subr.mxu0 0.0
  %2832 = vmatpush1.msra.mxu0 0.0
  %2833 = vmatprep.subr.mxu0 0.0
  %2834 = vmatpush1.msra.mxu0 0.0
  %2835 = vmatprep.subr.mxu0 0.0
  %2836 = vmatpush1.msra.mxu0 0.0
  %2837 = vmatprep.subr.mxu0 0.0
  %2838 = vmatpush1.msra.mxu0 0.0
  %2839 = vmatprep.subr.mxu0 0.0
  %2840 = vmatpush1.msra.mxu0 0.0
  %2841 = vmatprep.subr.mxu0 0.0
  %2842 = vmatpush1.msra.mxu0 0.0
  %2843 = vmatprep.subr.mxu0 0.0
  %2844 = vmatpush1.msra.mxu0 0.0
  %2845 = vmatprep.subr.mxu0 0.0
  %2846 = vmatpush1.msra.mxu0 0.0
  %2847 = vmatprep.mubr.f32.mxu0 0.0
  %2848 = vmatmul.mubr.f32.gmra.mrb[0].mxu0 %v2762
  %v2849 = vpop.f32.mrb[0].mxu0
  %v2850 = vadd.f32 0.0, %v2849
  %v2851 = vpop.f32.mrb[0].mxu0
  %2852 = vmatprep.mubr.f32.mxu0 0.0
  %2853 = vmatmul.mubr.f32.gmra.mrb[0].mxu0 %v2763
  %v2854 = vpop.f32.mrb[0].mxu0
  %v2855 = vadd.f32 0.0, %v2854
  %v2856 = vpop.f32.mrb[0].mxu0
  %2857 = vmatprep.mubr.f32.mxu0 0.0
  %2858 = vmatmul.mubr.f32.gmra.mrb[0].mxu0 %v2764
  %v2859 = vpop.f32.mrb[0].mxu0
  %v2860 = vadd.f32 0.0, %v2859
  %v2861 = vpop.f32.mrb[0].mxu0
  %2862 = vmatprep.mubr.f32.mxu0 0.0
  %2863 = vmatmul.mubr.f32.gmra.mrb[0].mxu0 %v2765
  %v2864 = vpop.f32.mrb[0].mxu0
  %v2865 = vadd.f32 0.0, %v2864
  %v2866 = vpop.f32.mrb[0].mxu0
  %2867 = vdwg.mxu0
  %v2868 = vadd.f32 %v2756, %v2850
  %v2869 = vadd.f32 %v2757, %v2855
  %v2870 = vadd.f32 %v2758, %v2860
  %v2871 = vadd.f32 %v2759, %v2865
  %vm2872 = vcmp.eq.s32.totalorder %v2095, 7
  %vm2873 = vcmp.eq.s32.totalorder %v2096, 7
  %v2874 = vsel %vm2872, %v2090, 0.0
  %v2875 = vsel %vm2873, %v2091, 0.0
  %v2876 = vsel %vm2872, %v2092, 0.0
  %v2877 = vsel %vm2873, %v2093, 0.0
  %s2878 = scalar_lea.vmem %s6, 896
  %v2879 = vld [vmem:[%s2878] sm:$0xff]
  %v2880 = vld [vmem:[%s2878 + $0x8] sm:$0xff]
  %v2881 = vld [vmem:[%s2878 + $0x10] sm:$0xff]
  %v2882 = vld [vmem:[%s2878 + $0x18] sm:$0xff]
  %v2883 = vld [vmem:[%s2878 + $0x20] sm:$0xff]
  %v2884 = vld [vmem:[%s2878 + $0x28] sm:$0xff]
  %v2885 = vld [vmem:[%s2878 + $0x30] sm:$0xff]
  %v2886 = vld [vmem:[%s2878 + $0x38] sm:$0xff]
  %v2887 = vld [vmem:[%s2878 + $0x40] sm:$0xff]
  %v2888 = vld [vmem:[%s2878 + $0x48] sm:$0xff]
  %v2889 = vld [vmem:[%s2878 + $0x50] sm:$0xff]
  %v2890 = vld [vmem:[%s2878 + $0x58] sm:$0xff]
  %v2891 = vld [vmem:[%s2878 + $0x60] sm:$0xff]
  %v2892 = vld [vmem:[%s2878 + $0x68] sm:$0xff]
  %v2893 = vld [vmem:[%s2878 + $0x70] sm:$0xff]
  %v2894 = vld [vmem:[%s2878 + $0x78] sm:$0xff]
  %2895 = vmatprep.subr.mxu0 0.0
  %2896 = vmatpush1.msra.mxu0 %v2879
  %2897 = vmatprep.subr.mxu0 0.0
  %2898 = vmatpush1.msra.mxu0 %v2880
  %2899 = vmatprep.subr.mxu0 0.0
  %2900 = vmatpush1.msra.mxu0 %v2881
  %2901 = vmatprep.subr.mxu0 0.0
  %2902 = vmatpush1.msra.mxu0 %v2882
  %2903 = vmatprep.subr.mxu0 0.0
  %2904 = vmatpush1.msra.mxu0 %v2883
  %2905 = vmatprep.subr.mxu0 0.0
  %2906 = vmatpush1.msra.mxu0 %v2884
  %2907 = vmatprep.subr.mxu0 0.0
  %2908 = vmatpush1.msra.mxu0 %v2885
  %2909 = vmatprep.subr.mxu0 0.0
  %2910 = vmatpush1.msra.mxu0 %v2886
  %2911 = vmatprep.subr.mxu0 0.0
  %2912 = vmatpush1.msra.mxu0 %v2887
  %2913 = vmatprep.subr.mxu0 0.0
  %2914 = vmatpush1.msra.mxu0 %v2888
  %2915 = vmatprep.subr.mxu0 0.0
  %2916 = vmatpush1.msra.mxu0 %v2889
  %2917 = vmatprep.subr.mxu0 0.0
  %2918 = vmatpush1.msra.mxu0 %v2890
  %2919 = vmatprep.subr.mxu0 0.0
  %2920 = vmatpush1.msra.mxu0 %v2891
  %2921 = vmatprep.subr.mxu0 0.0
  %2922 = vmatpush1.msra.mxu0 %v2892
  %2923 = vmatprep.subr.mxu0 0.0
  %2924 = vmatpush1.msra.mxu0 %v2893
  %2925 = vmatprep.subr.mxu0 0.0
  %2926 = vmatpush1.msra.mxu0 %v2894
  %2927 = vmatprep.subr.mxu0 0.0
  %2928 = vmatpush1.msra.mxu0 0.0
  %2929 = vmatprep.subr.mxu0 0.0
  %2930 = vmatpush1.msra.mxu0 0.0
  %2931 = vmatprep.subr.mxu0 0.0
  %2932 = vmatpush1.msra.mxu0 0.0
  %2933 = vmatprep.subr.mxu0 0.0
  %2934 = vmatpush1.msra.mxu0 0.0
  %2935 = vmatprep.subr.mxu0 0.0
  %2936 = vmatpush1.msra.mxu0 0.0
  %2937 = vmatprep.subr.mxu0 0.0
  %2938 = vmatpush1.msra.mxu0 0.0
  %2939 = vmatprep.subr.mxu0 0.0
  %2940 = vmatpush1.msra.mxu0 0.0
  %2941 = vmatprep.subr.mxu0 0.0
  %2942 = vmatpush1.msra.mxu0 0.0
  %2943 = vmatprep.subr.mxu0 0.0
  %2944 = vmatpush1.msra.mxu0 0.0
  %2945 = vmatprep.subr.mxu0 0.0
  %2946 = vmatpush1.msra.mxu0 0.0
  %2947 = vmatprep.subr.mxu0 0.0
  %2948 = vmatpush1.msra.mxu0 0.0
  %2949 = vmatprep.subr.mxu0 0.0
  %2950 = vmatpush1.msra.mxu0 0.0
  %2951 = vmatprep.subr.mxu0 0.0
  %2952 = vmatpush1.msra.mxu0 0.0
  %2953 = vmatprep.subr.mxu0 0.0
  %2954 = vmatpush1.msra.mxu0 0.0
  %2955 = vmatprep.subr.mxu0 0.0
  %2956 = vmatpush1.msra.mxu0 0.0
  %2957 = vmatprep.subr.mxu0 0.0
  %2958 = vmatpush1.msra.mxu0 0.0
  %2959 = vmatprep.mubr.f32.mxu0 0.0
  %2960 = vmatmul.mubr.f32.gmra.mrb[0].mxu0 %v2874
  %v2961 = vpop.f32.mrb[0].mxu0
  %v2962 = vadd.f32 0.0, %v2961
  %v2963 = vpop.f32.mrb[0].mxu0
  %2964 = vmatprep.mubr.f32.mxu0 0.0
  %2965 = vmatmul.mubr.f32.gmra.mrb[0].mxu0 %v2875
  %v2966 = vpop.f32.mrb[0].mxu0
  %v2967 = vadd.f32 0.0, %v2966
  %v2968 = vpop.f32.mrb[0].mxu0
  %2969 = vmatprep.mubr.f32.mxu0 0.0
  %2970 = vmatmul.mubr.f32.gmra.mrb[0].mxu0 %v2876
  %v2971 = vpop.f32.mrb[0].mxu0
  %v2972 = vadd.f32 0.0, %v2971
  %v2973 = vpop.f32.mrb[0].mxu0
  %2974 = vmatprep.mubr.f32.mxu0 0.0
  %2975 = vmatmul.mubr.f32.gmra.mrb[0].mxu0 %v2877
  %v2976 = vpop.f32.mrb[0].mxu0
  %v2977 = vadd.f32 0.0, %v2976
  %v2978 = vpop.f32.mrb[0].mxu0
  %2979 = vdwg.mxu0
  %v2980 = vadd.f32 %v2868, %v2962
  %v2981 = vadd.f32 %v2869, %v2967
  %v2982 = vadd.f32 %v2870, %v2972
  %v2983 = vadd.f32 %v2871, %v2977
  %vm2984 = vcmp.eq.s32.totalorder %v2095, 8
  %vm2985 = vcmp.eq.s32.totalorder %v2096, 8
  %v2986 = vsel %vm2984, %v2090, 0.0
  %v2987 = vsel %vm2985, %v2091, 0.0
  %v2988 = vsel %vm2984, %v2092, 0.0
  %v2989 = vsel %vm2985, %v2093, 0.0
  %s2990 = scalar_lea.vmem %s6, 1024
  %v2991 = vld [vmem:[%s2990] sm:$0xff]
  %v2992 = vld [vmem:[%s2990 + $0x8] sm:$0xff]
  %v2993 = vld [vmem:[%s2990 + $0x10] sm:$0xff]
  %v2994 = vld [vmem:[%s2990 + $0x18] sm:$0xff]
  %v2995 = vld [vmem:[%s2990 + $0x20] sm:$0xff]
  %v2996 = vld [vmem:[%s2990 + $0x28] sm:$0xff]
  %v2997 = vld [vmem:[%s2990 + $0x30] sm:$0xff]
  %v2998 = vld [vmem:[%s2990 + $0x38] sm:$0xff]
  %v2999 = vld [vmem:[%s2990 + $0x40] sm:$0xff]
  %v3000 = vld [vmem:[%s2990 + $0x48] sm:$0xff]
  %v3001 = vld [vmem:[%s2990 + $0x50] sm:$0xff]
  %v3002 = vld [vmem:[%s2990 + $0x58] sm:$0xff]
  %v3003 = vld [vmem:[%s2990 + $0x60] sm:$0xff]
  %v3004 = vld [vmem:[%s2990 + $0x68] sm:$0xff]
  %v3005 = vld [vmem:[%s2990 + $0x70] sm:$0xff]
  %v3006 = vld [vmem:[%s2990 + $0x78] sm:$0xff]
  %3007 = vmatprep.subr.mxu0 0.0
  %3008 = vmatpush1.msra.mxu0 %v2991
  %3009 = vmatprep.subr.mxu0 0.0
  %3010 = vmatpush1.msra.mxu0 %v2992
  %3011 = vmatprep.subr.mxu0 0.0
  %3012 = vmatpush1.msra.mxu0 %v2993
  %3013 = vmatprep.subr.mxu0 0.0
  %3014 = vmatpush1.msra.mxu0 %v2994
  %3015 = vmatprep.subr.mxu0 0.0
  %3016 = vmatpush1.msra.mxu0 %v2995
  %3017 = vmatprep.subr.mxu0 0.0
  %3018 = vmatpush1.msra.mxu0 %v2996
  %3019 = vmatprep.subr.mxu0 0.0
  %3020 = vmatpush1.msra.mxu0 %v2997
  %3021 = vmatprep.subr.mxu0 0.0
  %3022 = vmatpush1.msra.mxu0 %v2998
  %3023 = vmatprep.subr.mxu0 0.0
  %3024 = vmatpush1.msra.mxu0 %v2999
  %3025 = vmatprep.subr.mxu0 0.0
  %3026 = vmatpush1.msra.mxu0 %v3000
  %3027 = vmatprep.subr.mxu0 0.0
  %3028 = vmatpush1.msra.mxu0 %v3001
  %3029 = vmatprep.subr.mxu0 0.0
  %3030 = vmatpush1.msra.mxu0 %v3002
  %3031 = vmatprep.subr.mxu0 0.0
  %3032 = vmatpush1.msra.mxu0 %v3003
  %3033 = vmatprep.subr.mxu0 0.0
  %3034 = vmatpush1.msra.mxu0 %v3004
  %3035 = vmatprep.subr.mxu0 0.0
  %3036 = vmatpush1.msra.mxu0 %v3005
  %3037 = vmatprep.subr.mxu0 0.0
  %3038 = vmatpush1.msra.mxu0 %v3006
  %3039 = vmatprep.subr.mxu0 0.0
  %3040 = vmatpush1.msra.mxu0 0.0
  %3041 = vmatprep.subr.mxu0 0.0
  %3042 = vmatpush1.msra.mxu0 0.0
  %3043 = vmatprep.subr.mxu0 0.0
  %3044 = vmatpush1.msra.mxu0 0.0
  %3045 = vmatprep.subr.mxu0 0.0
  %3046 = vmatpush1.msra.mxu0 0.0
  %3047 = vmatprep.subr.mxu0 0.0
  %3048 = vmatpush1.msra.mxu0 0.0
  %3049 = vmatprep.subr.mxu0 0.0
  %3050 = vmatpush1.msra.mxu0 0.0
  %3051 = vmatprep.subr.mxu0 0.0
  %3052 = vmatpush1.msra.mxu0 0.0
  %3053 = vmatprep.subr.mxu0 0.0
  %3054 = vmatpush1.msra.mxu0 0.0
  %3055 = vmatprep.subr.mxu0 0.0
  %3056 = vmatpush1.msra.mxu0 0.0
  %3057 = vmatprep.subr.mxu0 0.0
  %3058 = vmatpush1.msra.mxu0 0.0
  %3059 = vmatprep.subr.mxu0 0.0
  %3060 = vmatpush1.msra.mxu0 0.0
  %3061 = vmatprep.subr.mxu0 0.0
  %3062 = vmatpush1.msra.mxu0 0.0
  %3063 = vmatprep.subr.mxu0 0.0
  %3064 = vmatpush1.msra.mxu0 0.0
  %3065 = vmatprep.subr.mxu0 0.0
  %3066 = vmatpush1.msra.mxu0 0.0
  %3067 = vmatprep.subr.mxu0 0.0
  %3068 = vmatpush1.msra.mxu0 0.0
  %3069 = vmatprep.subr.mxu0 0.0
  %3070 = vmatpush1.msra.mxu0 0.0
  %3071 = vmatprep.mubr.f32.mxu0 0.0
  %3072 = vmatmul.mubr.f32.gmra.mrb[0].mxu0 %v2986
  %v3073 = vpop.f32.mrb[0].mxu0
  %v3074 = vadd.f32 0.0, %v3073
  %v3075 = vpop.f32.mrb[0].mxu0
  %3076 = vmatprep.mubr.f32.mxu0 0.0
  %3077 = vmatmul.mubr.f32.gmra.mrb[0].mxu0 %v2987
  %v3078 = vpop.f32.mrb[0].mxu0
  %v3079 = vadd.f32 0.0, %v3078
  %v3080 = vpop.f32.mrb[0].mxu0
  %3081 = vmatprep.mubr.f32.mxu0 0.0
  %3082 = vmatmul.mubr.f32.gmra.mrb[0].mxu0 %v2988
  %v3083 = vpop.f32.mrb[0].mxu0
  %v3084 = vadd.f32 0.0, %v3083
  %v3085 = vpop.f32.mrb[0].mxu0
  %3086 = vmatprep.mubr.f32.mxu0 0.0
  %3087 = vmatmul.mubr.f32.gmra.mrb[0].mxu0 %v2989
  %v3088 = vpop.f32.mrb[0].mxu0
  %v3089 = vadd.f32 0.0, %v3088
  %v3090 = vpop.f32.mrb[0].mxu0
  %3091 = vdwg.mxu0
  %v3092 = vadd.f32 %v2980, %v3074
  %v3093 = vadd.f32 %v2981, %v3079
  %v3094 = vadd.f32 %v2982, %v3084
  %v3095 = vadd.f32 %v2983, %v3089
  %vm3096 = vcmp.eq.s32.totalorder %v2095, 9
  %vm3097 = vcmp.eq.s32.totalorder %v2096, 9
  %v3098 = vsel %vm3096, %v2090, 0.0
  %v3099 = vsel %vm3097, %v2091, 0.0
  %v3100 = vsel %vm3096, %v2092, 0.0
  %v3101 = vsel %vm3097, %v2093, 0.0
  %s3102 = scalar_lea.vmem %s6, 1152
  %v3103 = vld [vmem:[%s3102] sm:$0xff]
  %v3104 = vld [vmem:[%s3102 + $0x8] sm:$0xff]
  %v3105 = vld [vmem:[%s3102 + $0x10] sm:$0xff]
  %v3106 = vld [vmem:[%s3102 + $0x18] sm:$0xff]
  %v3107 = vld [vmem:[%s3102 + $0x20] sm:$0xff]
  %v3108 = vld [vmem:[%s3102 + $0x28] sm:$0xff]
  %v3109 = vld [vmem:[%s3102 + $0x30] sm:$0xff]
  %v3110 = vld [vmem:[%s3102 + $0x38] sm:$0xff]
  %v3111 = vld [vmem:[%s3102 + $0x40] sm:$0xff]
  %v3112 = vld [vmem:[%s3102 + $0x48] sm:$0xff]
  %v3113 = vld [vmem:[%s3102 + $0x50] sm:$0xff]
  %v3114 = vld [vmem:[%s3102 + $0x58] sm:$0xff]
  %v3115 = vld [vmem:[%s3102 + $0x60] sm:$0xff]
  %v3116 = vld [vmem:[%s3102 + $0x68] sm:$0xff]
  %v3117 = vld [vmem:[%s3102 + $0x70] sm:$0xff]
  %v3118 = vld [vmem:[%s3102 + $0x78] sm:$0xff]
  %3119 = vmatprep.subr.mxu0 0.0
  %3120 = vmatpush1.msra.mxu0 %v3103
  %3121 = vmatprep.subr.mxu0 0.0
  %3122 = vmatpush1.msra.mxu0 %v3104
  %3123 = vmatprep.subr.mxu0 0.0
  %3124 = vmatpush1.msra.mxu0 %v3105
  %3125 = vmatprep.subr.mxu0 0.0
  %3126 = vmatpush1.msra.mxu0 %v3106
  %3127 = vmatprep.subr.mxu0 0.0
  %3128 = vmatpush1.msra.mxu0 %v3107
  %3129 = vmatprep.subr.mxu0 0.0
  %3130 = vmatpush1.msra.mxu0 %v3108
  %3131 = vmatprep.subr.mxu0 0.0
  %3132 = vmatpush1.msra.mxu0 %v3109
  %3133 = vmatprep.subr.mxu0 0.0
  %3134 = vmatpush1.msra.mxu0 %v3110
  %3135 = vmatprep.subr.mxu0 0.0
  %3136 = vmatpush1.msra.mxu0 %v3111
  %3137 = vmatprep.subr.mxu0 0.0
  %3138 = vmatpush1.msra.mxu0 %v3112
  %3139 = vmatprep.subr.mxu0 0.0
  %3140 = vmatpush1.msra.mxu0 %v3113
  %3141 = vmatprep.subr.mxu0 0.0
  %3142 = vmatpush1.msra.mxu0 %v3114
  %3143 = vmatprep.subr.mxu0 0.0
  %3144 = vmatpush1.msra.mxu0 %v3115
  %3145 = vmatprep.subr.mxu0 0.0
  %3146 = vmatpush1.msra.mxu0 %v3116
  %3147 = vmatprep.subr.mxu0 0.0
  %3148 = vmatpush1.msra.mxu0 %v3117
  %3149 = vmatprep.subr.mxu0 0.0
  %3150 = vmatpush1.msra.mxu0 %v3118
  %3151 = vmatprep.subr.mxu0 0.0
  %3152 = vmatpush1.msra.mxu0 0.0
  %3153 = vmatprep.subr.mxu0 0.0
  %3154 = vmatpush1.msra.mxu0 0.0
  %3155 = vmatprep.subr.mxu0 0.0
  %3156 = vmatpush1.msra.mxu0 0.0
  %3157 = vmatprep.subr.mxu0 0.0
  %3158 = vmatpush1.msra.mxu0 0.0
  %3159 = vmatprep.subr.mxu0 0.0
  %3160 = vmatpush1.msra.mxu0 0.0
  %3161 = vmatprep.subr.mxu0 0.0
  %3162 = vmatpush1.msra.mxu0 0.0
  %3163 = vmatprep.subr.mxu0 0.0
  %3164 = vmatpush1.msra.mxu0 0.0
  %3165 = vmatprep.subr.mxu0 0.0
  %3166 = vmatpush1.msra.mxu0 0.0
  %3167 = vmatprep.subr.mxu0 0.0
  %3168 = vmatpush1.msra.mxu0 0.0
  %3169 = vmatprep.subr.mxu0 0.0
  %3170 = vmatpush1.msra.mxu0 0.0
  %3171 = vmatprep.subr.mxu0 0.0
  %3172 = vmatpush1.msra.mxu0 0.0
  %3173 = vmatprep.subr.mxu0 0.0
  %3174 = vmatpush1.msra.mxu0 0.0
  %3175 = vmatprep.subr.mxu0 0.0
  %3176 = vmatpush1.msra.mxu0 0.0
  %3177 = vmatprep.subr.mxu0 0.0
  %3178 = vmatpush1.msra.mxu0 0.0
  %3179 = vmatprep.subr.mxu0 0.0
  %3180 = vmatpush1.msra.mxu0 0.0
  %3181 = vmatprep.subr.mxu0 0.0
  %3182 = vmatpush1.msra.mxu0 0.0
  %3183 = vmatprep.mubr.f32.mxu0 0.0
  %3184 = vmatmul.mubr.f32.gmra.mrb[0].mxu0 %v3098
  %v3185 = vpop.f32.mrb[0].mxu0
  %v3186 = vadd.f32 0.0, %v3185
  %v3187 = vpop.f32.mrb[0].mxu0
  %3188 = vmatprep.mubr.f32.mxu0 0.0
  %3189 = vmatmul.mubr.f32.gmra.mrb[0].mxu0 %v3099
  %v3190 = vpop.f32.mrb[0].mxu0
  %v3191 = vadd.f32 0.0, %v3190
  %v3192 = vpop.f32.mrb[0].mxu0
  %3193 = vmatprep.mubr.f32.mxu0 0.0
  %3194 = vmatmul.mubr.f32.gmra.mrb[0].mxu0 %v3100
  %v3195 = vpop.f32.mrb[0].mxu0
  %v3196 = vadd.f32 0.0, %v3195
  %v3197 = vpop.f32.mrb[0].mxu0
  %3198 = vmatprep.mubr.f32.mxu0 0.0
  %3199 = vmatmul.mubr.f32.gmra.mrb[0].mxu0 %v3101
  %v3200 = vpop.f32.mrb[0].mxu0
  %v3201 = vadd.f32 0.0, %v3200
  %v3202 = vpop.f32.mrb[0].mxu0
  %3203 = vdwg.mxu0
  %v3204 = vadd.f32 %v3092, %v3186
  %v3205 = vadd.f32 %v3093, %v3191
  %v3206 = vadd.f32 %v3094, %v3196
  %v3207 = vadd.f32 %v3095, %v3201
  %vm3208 = vcmp.eq.s32.totalorder %v2095, 10
  %vm3209 = vcmp.eq.s32.totalorder %v2096, 10
  %v3210 = vsel %vm3208, %v2090, 0.0
  %v3211 = vsel %vm3209, %v2091, 0.0
  %v3212 = vsel %vm3208, %v2092, 0.0
  %v3213 = vsel %vm3209, %v2093, 0.0
  %s3214 = scalar_lea.vmem %s6, 1280
  %v3215 = vld [vmem:[%s3214] sm:$0xff]
  %v3216 = vld [vmem:[%s3214 + $0x8] sm:$0xff]
  %v3217 = vld [vmem:[%s3214 + $0x10] sm:$0xff]
  %v3218 = vld [vmem:[%s3214 + $0x18] sm:$0xff]
  %v3219 = vld [vmem:[%s3214 + $0x20] sm:$0xff]
  %v3220 = vld [vmem:[%s3214 + $0x28] sm:$0xff]
  %v3221 = vld [vmem:[%s3214 + $0x30] sm:$0xff]
  %v3222 = vld [vmem:[%s3214 + $0x38] sm:$0xff]
  %v3223 = vld [vmem:[%s3214 + $0x40] sm:$0xff]
  %v3224 = vld [vmem:[%s3214 + $0x48] sm:$0xff]
  %v3225 = vld [vmem:[%s3214 + $0x50] sm:$0xff]
  %v3226 = vld [vmem:[%s3214 + $0x58] sm:$0xff]
  %v3227 = vld [vmem:[%s3214 + $0x60] sm:$0xff]
  %v3228 = vld [vmem:[%s3214 + $0x68] sm:$0xff]
  %v3229 = vld [vmem:[%s3214 + $0x70] sm:$0xff]
  %v3230 = vld [vmem:[%s3214 + $0x78] sm:$0xff]
  %3231 = vmatprep.subr.mxu0 0.0
  %3232 = vmatpush1.msra.mxu0 %v3215
  %3233 = vmatprep.subr.mxu0 0.0
  %3234 = vmatpush1.msra.mxu0 %v3216
  %3235 = vmatprep.subr.mxu0 0.0
  %3236 = vmatpush1.msra.mxu0 %v3217
  %3237 = vmatprep.subr.mxu0 0.0
  %3238 = vmatpush1.msra.mxu0 %v3218
  %3239 = vmatprep.subr.mxu0 0.0
  %3240 = vmatpush1.msra.mxu0 %v3219
  %3241 = vmatprep.subr.mxu0 0.0
  %3242 = vmatpush1.msra.mxu0 %v3220
  %3243 = vmatprep.subr.mxu0 0.0
  %3244 = vmatpush1.msra.mxu0 %v3221
  %3245 = vmatprep.subr.mxu0 0.0
  %3246 = vmatpush1.msra.mxu0 %v3222
  %3247 = vmatprep.subr.mxu0 0.0
  %3248 = vmatpush1.msra.mxu0 %v3223
  %3249 = vmatprep.subr.mxu0 0.0
  %3250 = vmatpush1.msra.mxu0 %v3224
  %3251 = vmatprep.subr.mxu0 0.0
  %3252 = vmatpush1.msra.mxu0 %v3225
  %3253 = vmatprep.subr.mxu0 0.0
  %3254 = vmatpush1.msra.mxu0 %v3226
  %3255 = vmatprep.subr.mxu0 0.0
  %3256 = vmatpush1.msra.mxu0 %v3227
  %3257 = vmatprep.subr.mxu0 0.0
  %3258 = vmatpush1.msra.mxu0 %v3228
  %3259 = vmatprep.subr.mxu0 0.0
  %3260 = vmatpush1.msra.mxu0 %v3229
  %3261 = vmatprep.subr.mxu0 0.0
  %3262 = vmatpush1.msra.mxu0 %v3230
  %3263 = vmatprep.subr.mxu0 0.0
  %3264 = vmatpush1.msra.mxu0 0.0
  %3265 = vmatprep.subr.mxu0 0.0
  %3266 = vmatpush1.msra.mxu0 0.0
  %3267 = vmatprep.subr.mxu0 0.0
  %3268 = vmatpush1.msra.mxu0 0.0
  %3269 = vmatprep.subr.mxu0 0.0
  %3270 = vmatpush1.msra.mxu0 0.0
  %3271 = vmatprep.subr.mxu0 0.0
  %3272 = vmatpush1.msra.mxu0 0.0
  %3273 = vmatprep.subr.mxu0 0.0
  %3274 = vmatpush1.msra.mxu0 0.0
  %3275 = vmatprep.subr.mxu0 0.0
  %3276 = vmatpush1.msra.mxu0 0.0
  %3277 = vmatprep.subr.mxu0 0.0
  %3278 = vmatpush1.msra.mxu0 0.0
  %3279 = vmatprep.subr.mxu0 0.0
  %3280 = vmatpush1.msra.mxu0 0.0
  %3281 = vmatprep.subr.mxu0 0.0
  %3282 = vmatpush1.msra.mxu0 0.0
  %3283 = vmatprep.subr.mxu0 0.0
  %3284 = vmatpush1.msra.mxu0 0.0
  %3285 = vmatprep.subr.mxu0 0.0
  %3286 = vmatpush1.msra.mxu0 0.0
  %3287 = vmatprep.subr.mxu0 0.0
  %3288 = vmatpush1.msra.mxu0 0.0
  %3289 = vmatprep.subr.mxu0 0.0
  %3290 = vmatpush1.msra.mxu0 0.0
  %3291 = vmatprep.subr.mxu0 0.0
  %3292 = vmatpush1.msra.mxu0 0.0
  %3293 = vmatprep.subr.mxu0 0.0
  %3294 = vmatpush1.msra.mxu0 0.0
  %3295 = vmatprep.mubr.f32.mxu0 0.0
  %3296 = vmatmul.mubr.f32.gmra.mrb[0].mxu0 %v3210
  %v3297 = vpop.f32.mrb[0].mxu0
  %v3298 = vadd.f32 0.0, %v3297
  %v3299 = vpop.f32.mrb[0].mxu0
  %3300 = vmatprep.mubr.f32.mxu0 0.0
  %3301 = vmatmul.mubr.f32.gmra.mrb[0].mxu0 %v3211
  %v3302 = vpop.f32.mrb[0].mxu0
  %v3303 = vadd.f32 0.0, %v3302
  %v3304 = vpop.f32.mrb[0].mxu0
  %3305 = vmatprep.mubr.f32.mxu0 0.0
  %3306 = vmatmul.mubr.f32.gmra.mrb[0].mxu0 %v3212
  %v3307 = vpop.f32.mrb[0].mxu0
  %v3308 = vadd.f32 0.0, %v3307
  %v3309 = vpop.f32.mrb[0].mxu0
  %3310 = vmatprep.mubr.f32.mxu0 0.0
  %3311 = vmatmul.mubr.f32.gmra.mrb[0].mxu0 %v3213
  %v3312 = vpop.f32.mrb[0].mxu0
  %v3313 = vadd.f32 0.0, %v3312
  %v3314 = vpop.f32.mrb[0].mxu0
  %3315 = vdwg.mxu0
  %v3316 = vadd.f32 %v3204, %v3298
  %v3317 = vadd.f32 %v3205, %v3303
  %v3318 = vadd.f32 %v3206, %v3308
  %v3319 = vadd.f32 %v3207, %v3313
  %vm3320 = vcmp.eq.s32.totalorder %v2095, 11
  %vm3321 = vcmp.eq.s32.totalorder %v2096, 11
  %v3322 = vsel %vm3320, %v2090, 0.0
  %v3323 = vsel %vm3321, %v2091, 0.0
  %v3324 = vsel %vm3320, %v2092, 0.0
  %v3325 = vsel %vm3321, %v2093, 0.0
  %s3326 = scalar_lea.vmem %s6, 1408
  %v3327 = vld [vmem:[%s3326] sm:$0xff]
  %v3328 = vld [vmem:[%s3326 + $0x8] sm:$0xff]
  %v3329 = vld [vmem:[%s3326 + $0x10] sm:$0xff]
  %v3330 = vld [vmem:[%s3326 + $0x18] sm:$0xff]
  %v3331 = vld [vmem:[%s3326 + $0x20] sm:$0xff]
  %v3332 = vld [vmem:[%s3326 + $0x28] sm:$0xff]
  %v3333 = vld [vmem:[%s3326 + $0x30] sm:$0xff]
  %v3334 = vld [vmem:[%s3326 + $0x38] sm:$0xff]
  %v3335 = vld [vmem:[%s3326 + $0x40] sm:$0xff]
  %v3336 = vld [vmem:[%s3326 + $0x48] sm:$0xff]
  %v3337 = vld [vmem:[%s3326 + $0x50] sm:$0xff]
  %v3338 = vld [vmem:[%s3326 + $0x58] sm:$0xff]
  %v3339 = vld [vmem:[%s3326 + $0x60] sm:$0xff]
  %v3340 = vld [vmem:[%s3326 + $0x68] sm:$0xff]
  %v3341 = vld [vmem:[%s3326 + $0x70] sm:$0xff]
  %v3342 = vld [vmem:[%s3326 + $0x78] sm:$0xff]
  %3343 = vmatprep.subr.mxu0 0.0
  %3344 = vmatpush1.msra.mxu0 %v3327
  %3345 = vmatprep.subr.mxu0 0.0
  %3346 = vmatpush1.msra.mxu0 %v3328
  %3347 = vmatprep.subr.mxu0 0.0
  %3348 = vmatpush1.msra.mxu0 %v3329
  %3349 = vmatprep.subr.mxu0 0.0
  %3350 = vmatpush1.msra.mxu0 %v3330
  %3351 = vmatprep.subr.mxu0 0.0
  %3352 = vmatpush1.msra.mxu0 %v3331
  %3353 = vmatprep.subr.mxu0 0.0
  %3354 = vmatpush1.msra.mxu0 %v3332
  %3355 = vmatprep.subr.mxu0 0.0
  %3356 = vmatpush1.msra.mxu0 %v3333
  %3357 = vmatprep.subr.mxu0 0.0
  %3358 = vmatpush1.msra.mxu0 %v3334
  %3359 = vmatprep.subr.mxu0 0.0
  %3360 = vmatpush1.msra.mxu0 %v3335
  %3361 = vmatprep.subr.mxu0 0.0
  %3362 = vmatpush1.msra.mxu0 %v3336
  %3363 = vmatprep.subr.mxu0 0.0
  %3364 = vmatpush1.msra.mxu0 %v3337
  %3365 = vmatprep.subr.mxu0 0.0
  %3366 = vmatpush1.msra.mxu0 %v3338
  %3367 = vmatprep.subr.mxu0 0.0
  %3368 = vmatpush1.msra.mxu0 %v3339
  %3369 = vmatprep.subr.mxu0 0.0
  %3370 = vmatpush1.msra.mxu0 %v3340
  %3371 = vmatprep.subr.mxu0 0.0
  %3372 = vmatpush1.msra.mxu0 %v3341
  %3373 = vmatprep.subr.mxu0 0.0
  %3374 = vmatpush1.msra.mxu0 %v3342
  %3375 = vmatprep.subr.mxu0 0.0
  %3376 = vmatpush1.msra.mxu0 0.0
  %3377 = vmatprep.subr.mxu0 0.0
  %3378 = vmatpush1.msra.mxu0 0.0
  %3379 = vmatprep.subr.mxu0 0.0
  %3380 = vmatpush1.msra.mxu0 0.0
  %3381 = vmatprep.subr.mxu0 0.0
  %3382 = vmatpush1.msra.mxu0 0.0
  %3383 = vmatprep.subr.mxu0 0.0
  %3384 = vmatpush1.msra.mxu0 0.0
  %3385 = vmatprep.subr.mxu0 0.0
  %3386 = vmatpush1.msra.mxu0 0.0
  %3387 = vmatprep.subr.mxu0 0.0
  %3388 = vmatpush1.msra.mxu0 0.0
  %3389 = vmatprep.subr.mxu0 0.0
  %3390 = vmatpush1.msra.mxu0 0.0
  %3391 = vmatprep.subr.mxu0 0.0
  %3392 = vmatpush1.msra.mxu0 0.0
  %3393 = vmatprep.subr.mxu0 0.0
  %3394 = vmatpush1.msra.mxu0 0.0
  %3395 = vmatprep.subr.mxu0 0.0
  %3396 = vmatpush1.msra.mxu0 0.0
  %3397 = vmatprep.subr.mxu0 0.0
  %3398 = vmatpush1.msra.mxu0 0.0
  %3399 = vmatprep.subr.mxu0 0.0
  %3400 = vmatpush1.msra.mxu0 0.0
  %3401 = vmatprep.subr.mxu0 0.0
  %3402 = vmatpush1.msra.mxu0 0.0
  %3403 = vmatprep.subr.mxu0 0.0
  %3404 = vmatpush1.msra.mxu0 0.0
  %3405 = vmatprep.subr.mxu0 0.0
  %3406 = vmatpush1.msra.mxu0 0.0
  %3407 = vmatprep.mubr.f32.mxu0 0.0
  %3408 = vmatmul.mubr.f32.gmra.mrb[0].mxu0 %v3322
  %v3409 = vpop.f32.mrb[0].mxu0
  %v3410 = vadd.f32 0.0, %v3409
  %v3411 = vpop.f32.mrb[0].mxu0
  %3412 = vmatprep.mubr.f32.mxu0 0.0
  %3413 = vmatmul.mubr.f32.gmra.mrb[0].mxu0 %v3323
  %v3414 = vpop.f32.mrb[0].mxu0
  %v3415 = vadd.f32 0.0, %v3414
  %v3416 = vpop.f32.mrb[0].mxu0
  %3417 = vmatprep.mubr.f32.mxu0 0.0
  %3418 = vmatmul.mubr.f32.gmra.mrb[0].mxu0 %v3324
  %v3419 = vpop.f32.mrb[0].mxu0
  %v3420 = vadd.f32 0.0, %v3419
  %v3421 = vpop.f32.mrb[0].mxu0
  %3422 = vmatprep.mubr.f32.mxu0 0.0
  %3423 = vmatmul.mubr.f32.gmra.mrb[0].mxu0 %v3325
  %v3424 = vpop.f32.mrb[0].mxu0
  %v3425 = vadd.f32 0.0, %v3424
  %v3426 = vpop.f32.mrb[0].mxu0
  %3427 = vdwg.mxu0
  %v3428 = vadd.f32 %v3316, %v3410
  %v3429 = vadd.f32 %v3317, %v3415
  %v3430 = vadd.f32 %v3318, %v3420
  %v3431 = vadd.f32 %v3319, %v3425
  %vm3432 = vcmp.eq.s32.totalorder %v2095, 12
  %vm3433 = vcmp.eq.s32.totalorder %v2096, 12
  %v3434 = vsel %vm3432, %v2090, 0.0
  %v3435 = vsel %vm3433, %v2091, 0.0
  %v3436 = vsel %vm3432, %v2092, 0.0
  %v3437 = vsel %vm3433, %v2093, 0.0
  %s3438 = scalar_lea.vmem %s6, 1536
  %v3439 = vld [vmem:[%s3438] sm:$0xff]
  %v3440 = vld [vmem:[%s3438 + $0x8] sm:$0xff]
  %v3441 = vld [vmem:[%s3438 + $0x10] sm:$0xff]
  %v3442 = vld [vmem:[%s3438 + $0x18] sm:$0xff]
  %v3443 = vld [vmem:[%s3438 + $0x20] sm:$0xff]
  %v3444 = vld [vmem:[%s3438 + $0x28] sm:$0xff]
  %v3445 = vld [vmem:[%s3438 + $0x30] sm:$0xff]
  %v3446 = vld [vmem:[%s3438 + $0x38] sm:$0xff]
  %v3447 = vld [vmem:[%s3438 + $0x40] sm:$0xff]
  %v3448 = vld [vmem:[%s3438 + $0x48] sm:$0xff]
  %v3449 = vld [vmem:[%s3438 + $0x50] sm:$0xff]
  %v3450 = vld [vmem:[%s3438 + $0x58] sm:$0xff]
  %v3451 = vld [vmem:[%s3438 + $0x60] sm:$0xff]
  %v3452 = vld [vmem:[%s3438 + $0x68] sm:$0xff]
  %v3453 = vld [vmem:[%s3438 + $0x70] sm:$0xff]
  %v3454 = vld [vmem:[%s3438 + $0x78] sm:$0xff]
  %3455 = vmatprep.subr.mxu0 0.0
  %3456 = vmatpush1.msra.mxu0 %v3439
  %3457 = vmatprep.subr.mxu0 0.0
  %3458 = vmatpush1.msra.mxu0 %v3440
  %3459 = vmatprep.subr.mxu0 0.0
  %3460 = vmatpush1.msra.mxu0 %v3441
  %3461 = vmatprep.subr.mxu0 0.0
  %3462 = vmatpush1.msra.mxu0 %v3442
  %3463 = vmatprep.subr.mxu0 0.0
  %3464 = vmatpush1.msra.mxu0 %v3443
  %3465 = vmatprep.subr.mxu0 0.0
  %3466 = vmatpush1.msra.mxu0 %v3444
  %3467 = vmatprep.subr.mxu0 0.0
  %3468 = vmatpush1.msra.mxu0 %v3445
  %3469 = vmatprep.subr.mxu0 0.0
  %3470 = vmatpush1.msra.mxu0 %v3446
  %3471 = vmatprep.subr.mxu0 0.0
  %3472 = vmatpush1.msra.mxu0 %v3447
  %3473 = vmatprep.subr.mxu0 0.0
  %3474 = vmatpush1.msra.mxu0 %v3448
  %3475 = vmatprep.subr.mxu0 0.0
  %3476 = vmatpush1.msra.mxu0 %v3449
  %3477 = vmatprep.subr.mxu0 0.0
  %3478 = vmatpush1.msra.mxu0 %v3450
  %3479 = vmatprep.subr.mxu0 0.0
  %3480 = vmatpush1.msra.mxu0 %v3451
  %3481 = vmatprep.subr.mxu0 0.0
  %3482 = vmatpush1.msra.mxu0 %v3452
  %3483 = vmatprep.subr.mxu0 0.0
  %3484 = vmatpush1.msra.mxu0 %v3453
  %3485 = vmatprep.subr.mxu0 0.0
  %3486 = vmatpush1.msra.mxu0 %v3454
  %3487 = vmatprep.subr.mxu0 0.0
  %3488 = vmatpush1.msra.mxu0 0.0
  %3489 = vmatprep.subr.mxu0 0.0
  %3490 = vmatpush1.msra.mxu0 0.0
  %3491 = vmatprep.subr.mxu0 0.0
  %3492 = vmatpush1.msra.mxu0 0.0
  %3493 = vmatprep.subr.mxu0 0.0
  %3494 = vmatpush1.msra.mxu0 0.0
  %3495 = vmatprep.subr.mxu0 0.0
  %3496 = vmatpush1.msra.mxu0 0.0
  %3497 = vmatprep.subr.mxu0 0.0
  %3498 = vmatpush1.msra.mxu0 0.0
  %3499 = vmatprep.subr.mxu0 0.0
  %3500 = vmatpush1.msra.mxu0 0.0
  %3501 = vmatprep.subr.mxu0 0.0
  %3502 = vmatpush1.msra.mxu0 0.0
  %3503 = vmatprep.subr.mxu0 0.0
  %3504 = vmatpush1.msra.mxu0 0.0
  %3505 = vmatprep.subr.mxu0 0.0
  %3506 = vmatpush1.msra.mxu0 0.0
  %3507 = vmatprep.subr.mxu0 0.0
  %3508 = vmatpush1.msra.mxu0 0.0
  %3509 = vmatprep.subr.mxu0 0.0
  %3510 = vmatpush1.msra.mxu0 0.0
  %3511 = vmatprep.subr.mxu0 0.0
  %3512 = vmatpush1.msra.mxu0 0.0
  %3513 = vmatprep.subr.mxu0 0.0
  %3514 = vmatpush1.msra.mxu0 0.0
  %3515 = vmatprep.subr.mxu0 0.0
  %3516 = vmatpush1.msra.mxu0 0.0
  %3517 = vmatprep.subr.mxu0 0.0
  %3518 = vmatpush1.msra.mxu0 0.0
  %3519 = vmatprep.mubr.f32.mxu0 0.0
  %3520 = vmatmul.mubr.f32.gmra.mrb[0].mxu0 %v3434
  %v3521 = vpop.f32.mrb[0].mxu0
  %v3522 = vadd.f32 0.0, %v3521
  %v3523 = vpop.f32.mrb[0].mxu0
  %3524 = vmatprep.mubr.f32.mxu0 0.0
  %3525 = vmatmul.mubr.f32.gmra.mrb[0].mxu0 %v3435
  %v3526 = vpop.f32.mrb[0].mxu0
  %v3527 = vadd.f32 0.0, %v3526
  %v3528 = vpop.f32.mrb[0].mxu0
  %3529 = vmatprep.mubr.f32.mxu0 0.0
  %3530 = vmatmul.mubr.f32.gmra.mrb[0].mxu0 %v3436
  %v3531 = vpop.f32.mrb[0].mxu0
  %v3532 = vadd.f32 0.0, %v3531
  %v3533 = vpop.f32.mrb[0].mxu0
  %3534 = vmatprep.mubr.f32.mxu0 0.0
  %3535 = vmatmul.mubr.f32.gmra.mrb[0].mxu0 %v3437
  %v3536 = vpop.f32.mrb[0].mxu0
  %v3537 = vadd.f32 0.0, %v3536
  %v3538 = vpop.f32.mrb[0].mxu0
  %3539 = vdwg.mxu0
  %v3540 = vadd.f32 %v3428, %v3522
  %v3541 = vadd.f32 %v3429, %v3527
  %v3542 = vadd.f32 %v3430, %v3532
  %v3543 = vadd.f32 %v3431, %v3537
  %vm3544 = vcmp.eq.s32.totalorder %v2095, 13
  %vm3545 = vcmp.eq.s32.totalorder %v2096, 13
  %v3546 = vsel %vm3544, %v2090, 0.0
  %v3547 = vsel %vm3545, %v2091, 0.0
  %v3548 = vsel %vm3544, %v2092, 0.0
  %v3549 = vsel %vm3545, %v2093, 0.0
  %s3550 = scalar_lea.vmem %s6, 1664
  %v3551 = vld [vmem:[%s3550] sm:$0xff]
  %v3552 = vld [vmem:[%s3550 + $0x8] sm:$0xff]
  %v3553 = vld [vmem:[%s3550 + $0x10] sm:$0xff]
  %v3554 = vld [vmem:[%s3550 + $0x18] sm:$0xff]
  %v3555 = vld [vmem:[%s3550 + $0x20] sm:$0xff]
  %v3556 = vld [vmem:[%s3550 + $0x28] sm:$0xff]
  %v3557 = vld [vmem:[%s3550 + $0x30] sm:$0xff]
  %v3558 = vld [vmem:[%s3550 + $0x38] sm:$0xff]
  %v3559 = vld [vmem:[%s3550 + $0x40] sm:$0xff]
  %v3560 = vld [vmem:[%s3550 + $0x48] sm:$0xff]
  %v3561 = vld [vmem:[%s3550 + $0x50] sm:$0xff]
  %v3562 = vld [vmem:[%s3550 + $0x58] sm:$0xff]
  %v3563 = vld [vmem:[%s3550 + $0x60] sm:$0xff]
  %v3564 = vld [vmem:[%s3550 + $0x68] sm:$0xff]
  %v3565 = vld [vmem:[%s3550 + $0x70] sm:$0xff]
  %v3566 = vld [vmem:[%s3550 + $0x78] sm:$0xff]
  %3567 = vmatprep.subr.mxu0 0.0
  %3568 = vmatpush1.msra.mxu0 %v3551
  %3569 = vmatprep.subr.mxu0 0.0
  %3570 = vmatpush1.msra.mxu0 %v3552
  %3571 = vmatprep.subr.mxu0 0.0
  %3572 = vmatpush1.msra.mxu0 %v3553
  %3573 = vmatprep.subr.mxu0 0.0
  %3574 = vmatpush1.msra.mxu0 %v3554
  %3575 = vmatprep.subr.mxu0 0.0
  %3576 = vmatpush1.msra.mxu0 %v3555
  %3577 = vmatprep.subr.mxu0 0.0
  %3578 = vmatpush1.msra.mxu0 %v3556
  %3579 = vmatprep.subr.mxu0 0.0
  %3580 = vmatpush1.msra.mxu0 %v3557
  %3581 = vmatprep.subr.mxu0 0.0
  %3582 = vmatpush1.msra.mxu0 %v3558
  %3583 = vmatprep.subr.mxu0 0.0
  %3584 = vmatpush1.msra.mxu0 %v3559
  %3585 = vmatprep.subr.mxu0 0.0
  %3586 = vmatpush1.msra.mxu0 %v3560
  %3587 = vmatprep.subr.mxu0 0.0
  %3588 = vmatpush1.msra.mxu0 %v3561
  %3589 = vmatprep.subr.mxu0 0.0
  %3590 = vmatpush1.msra.mxu0 %v3562
  %3591 = vmatprep.subr.mxu0 0.0
  %3592 = vmatpush1.msra.mxu0 %v3563
  %3593 = vmatprep.subr.mxu0 0.0
  %3594 = vmatpush1.msra.mxu0 %v3564
  %3595 = vmatprep.subr.mxu0 0.0
  %3596 = vmatpush1.msra.mxu0 %v3565
  %3597 = vmatprep.subr.mxu0 0.0
  %3598 = vmatpush1.msra.mxu0 %v3566
  %3599 = vmatprep.subr.mxu0 0.0
  %3600 = vmatpush1.msra.mxu0 0.0
  %3601 = vmatprep.subr.mxu0 0.0
  %3602 = vmatpush1.msra.mxu0 0.0
  %3603 = vmatprep.subr.mxu0 0.0
  %3604 = vmatpush1.msra.mxu0 0.0
  %3605 = vmatprep.subr.mxu0 0.0
  %3606 = vmatpush1.msra.mxu0 0.0
  %3607 = vmatprep.subr.mxu0 0.0
  %3608 = vmatpush1.msra.mxu0 0.0
  %3609 = vmatprep.subr.mxu0 0.0
  %3610 = vmatpush1.msra.mxu0 0.0
  %3611 = vmatprep.subr.mxu0 0.0
  %3612 = vmatpush1.msra.mxu0 0.0
  %3613 = vmatprep.subr.mxu0 0.0
  %3614 = vmatpush1.msra.mxu0 0.0
  %3615 = vmatprep.subr.mxu0 0.0
  %3616 = vmatpush1.msra.mxu0 0.0
  %3617 = vmatprep.subr.mxu0 0.0
  %3618 = vmatpush1.msra.mxu0 0.0
  %3619 = vmatprep.subr.mxu0 0.0
  %3620 = vmatpush1.msra.mxu0 0.0
  %3621 = vmatprep.subr.mxu0 0.0
  %3622 = vmatpush1.msra.mxu0 0.0
  %3623 = vmatprep.subr.mxu0 0.0
  %3624 = vmatpush1.msra.mxu0 0.0
  %3625 = vmatprep.subr.mxu0 0.0
  %3626 = vmatpush1.msra.mxu0 0.0
  %3627 = vmatprep.subr.mxu0 0.0
  %3628 = vmatpush1.msra.mxu0 0.0
  %3629 = vmatprep.subr.mxu0 0.0
  %3630 = vmatpush1.msra.mxu0 0.0
  %3631 = vmatprep.mubr.f32.mxu0 0.0
  %3632 = vmatmul.mubr.f32.gmra.mrb[0].mxu0 %v3546
  %v3633 = vpop.f32.mrb[0].mxu0
  %v3634 = vadd.f32 0.0, %v3633
  %v3635 = vpop.f32.mrb[0].mxu0
  %3636 = vmatprep.mubr.f32.mxu0 0.0
  %3637 = vmatmul.mubr.f32.gmra.mrb[0].mxu0 %v3547
  %v3638 = vpop.f32.mrb[0].mxu0
  %v3639 = vadd.f32 0.0, %v3638
  %v3640 = vpop.f32.mrb[0].mxu0
  %3641 = vmatprep.mubr.f32.mxu0 0.0
  %3642 = vmatmul.mubr.f32.gmra.mrb[0].mxu0 %v3548
  %v3643 = vpop.f32.mrb[0].mxu0
  %v3644 = vadd.f32 0.0, %v3643
  %v3645 = vpop.f32.mrb[0].mxu0
  %3646 = vmatprep.mubr.f32.mxu0 0.0
  %3647 = vmatmul.mubr.f32.gmra.mrb[0].mxu0 %v3549
  %v3648 = vpop.f32.mrb[0].mxu0
  %v3649 = vadd.f32 0.0, %v3648
  %v3650 = vpop.f32.mrb[0].mxu0
  %3651 = vdwg.mxu0
  %v3652 = vadd.f32 %v3540, %v3634
  %v3653 = vadd.f32 %v3541, %v3639
  %v3654 = vadd.f32 %v3542, %v3644
  %v3655 = vadd.f32 %v3543, %v3649
  %vm3656 = vcmp.eq.s32.totalorder %v2095, 14
  %vm3657 = vcmp.eq.s32.totalorder %v2096, 14
  %v3658 = vsel %vm3656, %v2090, 0.0
  %v3659 = vsel %vm3657, %v2091, 0.0
  %v3660 = vsel %vm3656, %v2092, 0.0
  %v3661 = vsel %vm3657, %v2093, 0.0
  %s3662 = scalar_lea.vmem %s6, 1792
  %v3663 = vld [vmem:[%s3662] sm:$0xff]
  %v3664 = vld [vmem:[%s3662 + $0x8] sm:$0xff]
  %v3665 = vld [vmem:[%s3662 + $0x10] sm:$0xff]
  %v3666 = vld [vmem:[%s3662 + $0x18] sm:$0xff]
  %v3667 = vld [vmem:[%s3662 + $0x20] sm:$0xff]
  %v3668 = vld [vmem:[%s3662 + $0x28] sm:$0xff]
  %v3669 = vld [vmem:[%s3662 + $0x30] sm:$0xff]
  %v3670 = vld [vmem:[%s3662 + $0x38] sm:$0xff]
  %v3671 = vld [vmem:[%s3662 + $0x40] sm:$0xff]
  %v3672 = vld [vmem:[%s3662 + $0x48] sm:$0xff]
  %v3673 = vld [vmem:[%s3662 + $0x50] sm:$0xff]
  %v3674 = vld [vmem:[%s3662 + $0x58] sm:$0xff]
  %v3675 = vld [vmem:[%s3662 + $0x60] sm:$0xff]
  %v3676 = vld [vmem:[%s3662 + $0x68] sm:$0xff]
  %v3677 = vld [vmem:[%s3662 + $0x70] sm:$0xff]
  %v3678 = vld [vmem:[%s3662 + $0x78] sm:$0xff]
  %3679 = vmatprep.subr.mxu0 0.0
  %3680 = vmatpush1.msra.mxu0 %v3663
  %3681 = vmatprep.subr.mxu0 0.0
  %3682 = vmatpush1.msra.mxu0 %v3664
  %3683 = vmatprep.subr.mxu0 0.0
  %3684 = vmatpush1.msra.mxu0 %v3665
  %3685 = vmatprep.subr.mxu0 0.0
  %3686 = vmatpush1.msra.mxu0 %v3666
  %3687 = vmatprep.subr.mxu0 0.0
  %3688 = vmatpush1.msra.mxu0 %v3667
  %3689 = vmatprep.subr.mxu0 0.0
  %3690 = vmatpush1.msra.mxu0 %v3668
  %3691 = vmatprep.subr.mxu0 0.0
  %3692 = vmatpush1.msra.mxu0 %v3669
  %3693 = vmatprep.subr.mxu0 0.0
  %3694 = vmatpush1.msra.mxu0 %v3670
  %3695 = vmatprep.subr.mxu0 0.0
  %3696 = vmatpush1.msra.mxu0 %v3671
  %3697 = vmatprep.subr.mxu0 0.0
  %3698 = vmatpush1.msra.mxu0 %v3672
  %3699 = vmatprep.subr.mxu0 0.0
  %3700 = vmatpush1.msra.mxu0 %v3673
  %3701 = vmatprep.subr.mxu0 0.0
  %3702 = vmatpush1.msra.mxu0 %v3674
  %3703 = vmatprep.subr.mxu0 0.0
  %3704 = vmatpush1.msra.mxu0 %v3675
  %3705 = vmatprep.subr.mxu0 0.0
  %3706 = vmatpush1.msra.mxu0 %v3676
  %3707 = vmatprep.subr.mxu0 0.0
  %3708 = vmatpush1.msra.mxu0 %v3677
  %3709 = vmatprep.subr.mxu0 0.0
  %3710 = vmatpush1.msra.mxu0 %v3678
  %3711 = vmatprep.subr.mxu0 0.0
  %3712 = vmatpush1.msra.mxu0 0.0
  %3713 = vmatprep.subr.mxu0 0.0
  %3714 = vmatpush1.msra.mxu0 0.0
  %3715 = vmatprep.subr.mxu0 0.0
  %3716 = vmatpush1.msra.mxu0 0.0
  %3717 = vmatprep.subr.mxu0 0.0
  %3718 = vmatpush1.msra.mxu0 0.0
  %3719 = vmatprep.subr.mxu0 0.0
  %3720 = vmatpush1.msra.mxu0 0.0
  %3721 = vmatprep.subr.mxu0 0.0
  %3722 = vmatpush1.msra.mxu0 0.0
  %3723 = vmatprep.subr.mxu0 0.0
  %3724 = vmatpush1.msra.mxu0 0.0
  %3725 = vmatprep.subr.mxu0 0.0
  %3726 = vmatpush1.msra.mxu0 0.0
  %3727 = vmatprep.subr.mxu0 0.0
  %3728 = vmatpush1.msra.mxu0 0.0
  %3729 = vmatprep.subr.mxu0 0.0
  %3730 = vmatpush1.msra.mxu0 0.0
  %3731 = vmatprep.subr.mxu0 0.0
  %3732 = vmatpush1.msra.mxu0 0.0
  %3733 = vmatprep.subr.mxu0 0.0
  %3734 = vmatpush1.msra.mxu0 0.0
  %3735 = vmatprep.subr.mxu0 0.0
  %3736 = vmatpush1.msra.mxu0 0.0
  %3737 = vmatprep.subr.mxu0 0.0
  %3738 = vmatpush1.msra.mxu0 0.0
  %3739 = vmatprep.subr.mxu0 0.0
  %3740 = vmatpush1.msra.mxu0 0.0
  %3741 = vmatprep.subr.mxu0 0.0
  %3742 = vmatpush1.msra.mxu0 0.0
  %3743 = vmatprep.mubr.f32.mxu0 0.0
  %3744 = vmatmul.mubr.f32.gmra.mrb[0].mxu0 %v3658
  %v3745 = vpop.f32.mrb[0].mxu0
  %v3746 = vadd.f32 0.0, %v3745
  %v3747 = vpop.f32.mrb[0].mxu0
  %3748 = vmatprep.mubr.f32.mxu0 0.0
  %3749 = vmatmul.mubr.f32.gmra.mrb[0].mxu0 %v3659
  %v3750 = vpop.f32.mrb[0].mxu0
  %v3751 = vadd.f32 0.0, %v3750
  %v3752 = vpop.f32.mrb[0].mxu0
  %3753 = vmatprep.mubr.f32.mxu0 0.0
  %3754 = vmatmul.mubr.f32.gmra.mrb[0].mxu0 %v3660
  %v3755 = vpop.f32.mrb[0].mxu0
  %v3756 = vadd.f32 0.0, %v3755
  %v3757 = vpop.f32.mrb[0].mxu0
  %3758 = vmatprep.mubr.f32.mxu0 0.0
  %3759 = vmatmul.mubr.f32.gmra.mrb[0].mxu0 %v3661
  %v3760 = vpop.f32.mrb[0].mxu0
  %v3761 = vadd.f32 0.0, %v3760
  %v3762 = vpop.f32.mrb[0].mxu0
  %3763 = vdwg.mxu0
  %v3764 = vadd.f32 %v3652, %v3746
  %v3765 = vadd.f32 %v3653, %v3751
  %v3766 = vadd.f32 %v3654, %v3756
  %v3767 = vadd.f32 %v3655, %v3761
  %vm3768 = vcmp.eq.s32.totalorder %v2095, 15
  %vm3769 = vcmp.eq.s32.totalorder %v2096, 15
  %v3770 = vsel %vm3768, %v2090, 0.0
  %v3771 = vsel %vm3769, %v2091, 0.0
  %v3772 = vsel %vm3768, %v2092, 0.0
  %v3773 = vsel %vm3769, %v2093, 0.0
  %s3774 = scalar_lea.vmem %s6, 1920
  %v3775 = vld [vmem:[%s3774] sm:$0xff]
  %v3776 = vld [vmem:[%s3774 + $0x8] sm:$0xff]
  %v3777 = vld [vmem:[%s3774 + $0x10] sm:$0xff]
  %v3778 = vld [vmem:[%s3774 + $0x18] sm:$0xff]
  %v3779 = vld [vmem:[%s3774 + $0x20] sm:$0xff]
  %v3780 = vld [vmem:[%s3774 + $0x28] sm:$0xff]
  %v3781 = vld [vmem:[%s3774 + $0x30] sm:$0xff]
  %v3782 = vld [vmem:[%s3774 + $0x38] sm:$0xff]
  %v3783 = vld [vmem:[%s3774 + $0x40] sm:$0xff]
  %v3784 = vld [vmem:[%s3774 + $0x48] sm:$0xff]
  %v3785 = vld [vmem:[%s3774 + $0x50] sm:$0xff]
  %v3786 = vld [vmem:[%s3774 + $0x58] sm:$0xff]
  %v3787 = vld [vmem:[%s3774 + $0x60] sm:$0xff]
  %v3788 = vld [vmem:[%s3774 + $0x68] sm:$0xff]
  %v3789 = vld [vmem:[%s3774 + $0x70] sm:$0xff]
  %v3790 = vld [vmem:[%s3774 + $0x78] sm:$0xff]
  %3791 = vmatprep.subr.mxu0 0.0
  %3792 = vmatpush1.msra.mxu0 %v3775
  %3793 = vmatprep.subr.mxu0 0.0
  %3794 = vmatpush1.msra.mxu0 %v3776
  %3795 = vmatprep.subr.mxu0 0.0
  %3796 = vmatpush1.msra.mxu0 %v3777
  %3797 = vmatprep.subr.mxu0 0.0
  %3798 = vmatpush1.msra.mxu0 %v3778
  %3799 = vmatprep.subr.mxu0 0.0
  %3800 = vmatpush1.msra.mxu0 %v3779
  %3801 = vmatprep.subr.mxu0 0.0
  %3802 = vmatpush1.msra.mxu0 %v3780
  %3803 = vmatprep.subr.mxu0 0.0
  %3804 = vmatpush1.msra.mxu0 %v3781
  %3805 = vmatprep.subr.mxu0 0.0
  %3806 = vmatpush1.msra.mxu0 %v3782
  %3807 = vmatprep.subr.mxu0 0.0
  %3808 = vmatpush1.msra.mxu0 %v3783
  %3809 = vmatprep.subr.mxu0 0.0
  %3810 = vmatpush1.msra.mxu0 %v3784
  %3811 = vmatprep.subr.mxu0 0.0
  %3812 = vmatpush1.msra.mxu0 %v3785
  %3813 = vmatprep.subr.mxu0 0.0
  %3814 = vmatpush1.msra.mxu0 %v3786
  %3815 = vmatprep.subr.mxu0 0.0
  %3816 = vmatpush1.msra.mxu0 %v3787
  %3817 = vmatprep.subr.mxu0 0.0
  %3818 = vmatpush1.msra.mxu0 %v3788
  %3819 = vmatprep.subr.mxu0 0.0
  %3820 = vmatpush1.msra.mxu0 %v3789
  %3821 = vmatprep.subr.mxu0 0.0
  %3822 = vmatpush1.msra.mxu0 %v3790
  %3823 = vmatprep.subr.mxu0 0.0
  %3824 = vmatpush1.msra.mxu0 0.0
  %3825 = vmatprep.subr.mxu0 0.0
  %3826 = vmatpush1.msra.mxu0 0.0
  %3827 = vmatprep.subr.mxu0 0.0
  %3828 = vmatpush1.msra.mxu0 0.0
  %3829 = vmatprep.subr.mxu0 0.0
  %3830 = vmatpush1.msra.mxu0 0.0
  %3831 = vmatprep.subr.mxu0 0.0
  %3832 = vmatpush1.msra.mxu0 0.0
  %3833 = vmatprep.subr.mxu0 0.0
  %3834 = vmatpush1.msra.mxu0 0.0
  %3835 = vmatprep.subr.mxu0 0.0
  %3836 = vmatpush1.msra.mxu0 0.0
  %3837 = vmatprep.subr.mxu0 0.0
  %3838 = vmatpush1.msra.mxu0 0.0
  %3839 = vmatprep.subr.mxu0 0.0
  %3840 = vmatpush1.msra.mxu0 0.0
  %3841 = vmatprep.subr.mxu0 0.0
  %3842 = vmatpush1.msra.mxu0 0.0
  %3843 = vmatprep.subr.mxu0 0.0
  %3844 = vmatpush1.msra.mxu0 0.0
  %3845 = vmatprep.subr.mxu0 0.0
  %3846 = vmatpush1.msra.mxu0 0.0
  %3847 = vmatprep.subr.mxu0 0.0
  %3848 = vmatpush1.msra.mxu0 0.0
  %3849 = vmatprep.subr.mxu0 0.0
  %3850 = vmatpush1.msra.mxu0 0.0
  %3851 = vmatprep.subr.mxu0 0.0
  %3852 = vmatpush1.msra.mxu0 0.0
  %3853 = vmatprep.subr.mxu0 0.0
  %3854 = vmatpush1.msra.mxu0 0.0
  %3855 = vmatprep.mubr.f32.mxu0 0.0
  %3856 = vmatmul.mubr.f32.gmra.mrb[0].mxu0 %v3770
  %v3857 = vpop.f32.mrb[0].mxu0
  %v3858 = vadd.f32 0.0, %v3857
  %v3859 = vpop.f32.mrb[0].mxu0
  %3860 = vmatprep.mubr.f32.mxu0 0.0
  %3861 = vmatmul.mubr.f32.gmra.mrb[0].mxu0 %v3771
  %v3862 = vpop.f32.mrb[0].mxu0
  %v3863 = vadd.f32 0.0, %v3862
  %v3864 = vpop.f32.mrb[0].mxu0
  %3865 = vmatprep.mubr.f32.mxu0 0.0
  %3866 = vmatmul.mubr.f32.gmra.mrb[0].mxu0 %v3772
  %v3867 = vpop.f32.mrb[0].mxu0
  %v3868 = vadd.f32 0.0, %v3867
  %v3869 = vpop.f32.mrb[0].mxu0
  %3870 = vmatprep.mubr.f32.mxu0 0.0
  %3871 = vmatmul.mubr.f32.gmra.mrb[0].mxu0 %v3773
  %v3872 = vpop.f32.mrb[0].mxu0
  %v3873 = vadd.f32 0.0, %v3872
  %v3874 = vpop.f32.mrb[0].mxu0
  %3875 = vdwg.mxu0
  %v3876 = vadd.f32 %v3764, %v3858
  %v3877 = vadd.f32 %v3765, %v3863
  %v3878 = vadd.f32 %v3766, %v3868
  %v3879 = vadd.f32 %v3767, %v3873
  %v3880 = vadd.f32 %v3876, %v3877
  %v3881 = vrot.slane %v3880, 4
  %v3882 = vadd.f32 %v3880, %v3881
  %v3883 = vrot.slane %v3882, 2
  %v3884 = vadd.f32 %v3882, %v3883
  %v3885 = vrot.slane %v3884, 1
  %v3886 = vadd.f32 %v3884, %v3885
  %v3887 = vadd.f32 %v3878, %v3879
  %v3888 = vrot.slane %v3887, 4
  %v3889 = vadd.f32 %v3887, %v3888
  %v3890 = vrot.slane %v3889, 2
  %v3891 = vadd.f32 %v3889, %v3890
  %v3892 = vrot.slane %v3891, 1
  %v3893 = vadd.f32 %v3891, %v3892
  %v3894 = vld [vmem:[%s7] sm:$0x1]
  %v3896 = vlaneseq
  %v3897 = vshrl.u32 %v3896, 7
  %v3898 = vsub.s32 0, %v3897
  %v3899 = vrot.slane %v3894, %v3898
  %v3901 = vadd.f32 %v3886, %v3899
  %v3902 = vadd.f32 %v3893, %v3899
  %vm3903 = vcmp.gt.f32.partialorder %v3901, 0.0
  %vm3904 = vcmp.gt.f32.partialorder %v3902, 0.0
  %v3905 = vmul.f32 %v3901, 0.2
  %v3906 = vmul.f32 %v3902, 0.2
  %v3907 = vsel %vm3903, %v3901, %v3905
  %v3908 = vsel %vm3904, %v3902, %v3906
  %v3909 = vld [vmem:[%s8] sm:$0xff]
  %v3910 = vld [vmem:[%s8 + $0x8] sm:$0xff]
  %v3911 = vld [vmem:[%s8 + $0x10] sm:$0xff]
  %v3912 = vld [vmem:[%s8 + $0x18] sm:$0xff]
  %v3913 = vld [vmem:[%s8 + $0x20] sm:$0xff]
  %v3914 = vld [vmem:[%s8 + $0x28] sm:$0xff]
  %v3915 = vld [vmem:[%s8 + $0x30] sm:$0xff]
  %v3916 = vld [vmem:[%s8 + $0x38] sm:$0xff]
  %v3917 = vld [vmem:[%s8 + $0x40] sm:$0xff]
  %v3918 = vld [vmem:[%s8 + $0x48] sm:$0xff]
  %v3919 = vld [vmem:[%s8 + $0x50] sm:$0xff]
  %v3920 = vld [vmem:[%s8 + $0x58] sm:$0xff]
  %v3921 = vld [vmem:[%s8 + $0x60] sm:$0xff]
  %v3922 = vld [vmem:[%s8 + $0x68] sm:$0xff]
  %v3923 = vld [vmem:[%s8 + $0x70] sm:$0xff]
  %v3924 = vld [vmem:[%s8 + $0x78] sm:$0xff]
  %v3925 = vld [vmem:[%s9] sm:$0x1]
  %v3927 = vlaneseq
  %v3928 = vshrl.u32 %v3927, 7
  %v3929 = vsub.s32 0, %v3928
  %v3930 = vrot.slane %v3925, %v3929
  %v3934 = vrot.slane %v3908, 7
  %vm3935 = vcmask 1041409
  %v3936 = vsel %vm3935, %v3934, %v3907
  %3938 = vmatprep.subr.mxu0 0.0
  %3939 = vmatpush1.msra.mxu0 %v3909
  %3940 = vmatprep.subr.mxu0 0.0
  %3941 = vmatpush1.msra.mxu0 %v3910
  %3942 = vmatprep.subr.mxu0 0.0
  %3943 = vmatpush1.msra.mxu0 %v3911
  %3944 = vmatprep.subr.mxu0 0.0
  %3945 = vmatpush1.msra.mxu0 %v3912
  %3946 = vmatprep.subr.mxu0 0.0
  %3947 = vmatpush1.msra.mxu0 %v3913
  %3948 = vmatprep.subr.mxu0 0.0
  %3949 = vmatpush1.msra.mxu0 %v3914
  %3950 = vmatprep.subr.mxu0 0.0
  %3951 = vmatpush1.msra.mxu0 %v3915
  %3952 = vmatprep.subr.mxu0 0.0
  %3953 = vmatpush1.msra.mxu0 %v3916
  %3954 = vmatprep.subr.mxu0 0.0
  %3955 = vmatpush1.msra.mxu0 %v3917
  %3956 = vmatprep.subr.mxu0 0.0
  %3957 = vmatpush1.msra.mxu0 %v3918
  %3958 = vmatprep.subr.mxu0 0.0
  %3959 = vmatpush1.msra.mxu0 %v3919
  %3960 = vmatprep.subr.mxu0 0.0
  %3961 = vmatpush1.msra.mxu0 %v3920
  %3962 = vmatprep.subr.mxu0 0.0
  %3963 = vmatpush1.msra.mxu0 %v3921
  %3964 = vmatprep.subr.mxu0 0.0
  %3965 = vmatpush1.msra.mxu0 %v3922
  %3966 = vmatprep.subr.mxu0 0.0
  %3967 = vmatpush1.msra.mxu0 %v3923
  %3968 = vmatprep.subr.mxu0 0.0
  %3969 = vmatpush1.msra.mxu0 %v3924
  %3970 = vmatprep.subr.mxu0 0.0
  %3971 = vmatpush1.msra.mxu0 0.0
  %3972 = vmatprep.subr.mxu0 0.0
  %3973 = vmatpush1.msra.mxu0 0.0
  %3974 = vmatprep.subr.mxu0 0.0
  %3975 = vmatpush1.msra.mxu0 0.0
  %3976 = vmatprep.subr.mxu0 0.0
  %3977 = vmatpush1.msra.mxu0 0.0
  %3978 = vmatprep.subr.mxu0 0.0
  %3979 = vmatpush1.msra.mxu0 0.0
  %3980 = vmatprep.subr.mxu0 0.0
  %3981 = vmatpush1.msra.mxu0 0.0
  %3982 = vmatprep.subr.mxu0 0.0
  %3983 = vmatpush1.msra.mxu0 0.0
  %3984 = vmatprep.subr.mxu0 0.0
  %3985 = vmatpush1.msra.mxu0 0.0
  %3986 = vmatprep.subr.mxu0 0.0
  %3987 = vmatpush1.msra.mxu0 0.0
  %3988 = vmatprep.subr.mxu0 0.0
  %3989 = vmatpush1.msra.mxu0 0.0
  %3990 = vmatprep.subr.mxu0 0.0
  %3991 = vmatpush1.msra.mxu0 0.0
  %3992 = vmatprep.subr.mxu0 0.0
  %3993 = vmatpush1.msra.mxu0 0.0
  %3994 = vmatprep.subr.mxu0 0.0
  %3995 = vmatpush1.msra.mxu0 0.0
  %3996 = vmatprep.subr.mxu0 0.0
  %3997 = vmatpush1.msra.mxu0 0.0
  %3998 = vmatprep.subr.mxu0 0.0
  %3999 = vmatpush1.msra.mxu0 0.0
  %4000 = vmatprep.subr.mxu0 0.0
  %4001 = vmatpush1.msra.mxu0 0.0
  %4002 = vmatprep.mubr.f32.mxu0 0.0
  %4003 = vmatmul.mubr.f32.gmra.mrb[0].mxu0 %v3936
  %v4004 = vpop.f32.mrb[0].mxu0
  %v4005 = vadd.f32 %v3930, %v4004
  %v4006 = vpop.f32.mrb[0].mxu0
  %4007 = vdwg.mxu0
  %4008 = vst [vmem:[%s10] sm:$0x3] %v4005
  // Predicated region
  $region42: #{discriminator_forward.1} parent=0 // pred_check
    _
  $region43: #{discriminator_forward.1} parent=0 // pred_check_branch
    %4010 = sbr.rel (0) target = $region45
  $region44: #{discriminator_forward.1} parent=0 // pred_region
    _
  $region45: #{discriminator_forward.1} parent=0 // pred_fallthru
    _
  // Predicated region
  $region46: #{discriminator_forward.1} parent=0 // pred_check
    _
  $region47: #{discriminator_forward.1} parent=0 // pred_check_branch
    %4012 = sbr.rel (0) target = $region49
  $region48: #{discriminator_forward.1} parent=0 // pred_region
    _
  $region49: #{discriminator_forward.1} parent=0 // pred_fallthru
    _

</llo_original>
